<compile_context>
chip_gen: v5e
topology: v5e:2x2
jax: 0.10.0
libtpu: 0.0.40
codegen_flags: <defaults>
</compile_context>

<pallas_src>
import functools

import jax
import jax.numpy as jnp
from jax.experimental import pallas as pl
from jax.experimental.pallas import tpu as pltpu


# --------------------------------------------------------------------------
# Fused kernel: one (TR, N_pad) row band of both diag matrices + the matching
# (1, TR) intercept slices, per grid step.
# --------------------------------------------------------------------------
def _fused_band_kernel(neg_slope, lb_ref, ub_ref, alpha_ref,
                       lmat_ref, umat_ref, lint_ref, uint_ref):
    i = pl.program_id(0)
    t = lmat_ref.shape[0]                              # band height == diag block size

    # ---- per-neuron slope / intercept math on the (1, TR) column slice ----
    lb = lb_ref[...]                                   # (1, TR) f32
    ub = ub_ref[...]                                   # (1, TR) f32
    alpha = 1.0 / (1.0 + jnp.exp(-alpha_ref[...]))     # sigmoid(raw_alpha)

    # LeakyReLU chord slope / intercept for crossing neurons.  Explicit
    # diff==0 masking matches the reference's NaN -> 0 handling.
    diff = ub - lb
    safe_diff = jnp.where(diff == 0.0, 1.0, diff)
    lr_slope = (ub - lb * neg_slope) / safe_diff
    lr_slope = jnp.where(diff == 0.0, 0.0, lr_slope)
    lr_int = (1.0 - lr_slope) * ub

    ones = jnp.ones_like(lb)
    zeros = jnp.zeros_like(lb)
    lslope = ones
    uslope = ones
    lint = zeros
    uint = zeros

    below = ub <= 0.0
    lslope = jnp.where(below, neg_slope, lslope)
    uslope = jnp.where(below, neg_slope, uslope)
    above = lb >= 0.0
    lslope = jnp.where(above, 1.0, lslope)
    uslope = jnp.where(above, 1.0, uslope)
    crossing = jnp.logical_not(jnp.logical_or(below, above))

    # neg_slope is a static Python float -> trace-time branch, exactly like
    # the Python `if` in the PyTorch module.
    if neg_slope <= 1.0:
        uslope = jnp.where(crossing, lr_slope, uslope)
        uint = jnp.where(crossing, lr_int, uint)
        v1 = jnp.where(crossing, 1.0, lslope)
        v2 = jnp.where(crossing, neg_slope, lslope)
        lslope = alpha * v1 + (1.0 - alpha) * v2
    else:
        lslope = jnp.where(crossing, lr_slope, lslope)
        lint = jnp.where(crossing, lr_int, lint)
        v1 = jnp.where(crossing, 1.0, uslope)
        v2 = jnp.where(crossing, neg_slope, uslope)
        uslope = alpha * v1 + (1.0 - alpha) * v2

    lint_ref[...] = lint
    uint_ref[...] = uint

    # ---- materialize the row band of the diag matrices --------------------
    # Zero-fill the whole (TR, N_pad) band, then overwrite the (TR, TR)
    # diagonal sub-block at column offset i*TR.  The redundant VMEM write of
    # the sub-block is negligible; the HBM writeback DMA happens once and is
    # fully contiguous / lane-dense.
    lmat_ref[...] = jnp.zeros_like(lmat_ref)
    umat_ref[...] = jnp.zeros_like(umat_ref)

    row = jax.lax.broadcasted_iota(jnp.int32, (t, t), 0)
    col = jax.lax.broadcasted_iota(jnp.int32, (t, t), 1)
    eye = row == col
    start = pl.multiple_of(i * t, 128)                 # TR is a multiple of 128
    # (1, TR) slope rows broadcast against the (TR, TR) eye mask; diagonal
    # entry (r, r) picks slope[0, r].
    lmat_ref[:, pl.ds(start, t)] = jnp.where(eye, lslope, 0.0)
    umat_ref[:, pl.ds(start, t)] = jnp.where(eye, uslope, 0.0)


def _pick_band_rows(n_pad, budget_bytes=24 << 20):
    """Band height TR: multiple of 128 dividing n_pad, double-buffered matrix
    outputs within `budget_bytes`, and >= 2 bands whenever n_pad allows."""
    max_tr_budget = budget_bytes // (16 * n_pad)       # 2 mats x 2 bufs x 4 B
    for tr in (512, 256, 128):
        if n_pad % tr:
            continue
        if tr > max_tr_budget and tr > 128:
            continue
        if n_pad >= 2 * tr:                            # >=2 parallel bands (v7x megacore)
            return tr
    return 128                                         # n_pad == 128 (single band)


# --------------------------------------------------------------------------
# Wrapper
# --------------------------------------------------------------------------
def deep_poly_leaky_relu(lbounds, ubounds, raw_alpha, negative_slope):
    """Pallas implementation of DeepPolyLeakyReLU.forward.

    Returns (lslope (N,N), lintercept (1,N), uslope (N,N), uintercept (1,N)),
    i.e. the transformer tuple stored in the returned DeepPolyConstraints.
    """
    n = lbounds.size
    n_pad = ((n + 127) // 128) * 128                   # (8,128) lane alignment
    lb = lbounds.reshape(1, n).astype(jnp.float32)
    ub = ubounds.reshape(1, n).astype(jnp.float32)
    ra = raw_alpha.reshape(1, n).astype(jnp.float32)
    if n_pad != n:
        pad = ((0, 0), (0, n_pad - n))
        lb = jnp.pad(lb, pad)
        ub = jnp.pad(ub, pad)
        ra = jnp.pad(ra, pad)

    tr = _pick_band_rows(n_pad)
    grid = (n_pad // tr,)

    vec_spec = pl.BlockSpec((1, tr), lambda i: (0, i))          # lb/ub/alpha slices
    band_spec = pl.BlockSpec((tr, n_pad), lambda i: (i, 0))     # matrix row bands
    int_spec = pl.BlockSpec((1, tr), lambda i: (0, i))          # intercept slices

    mat_bytes = 2 * 2 * tr * n_pad * 4                          # 2 outs x 2 bufs
    vmem_limit = int(min(48 << 20, max(16 << 20, mat_bytes + (8 << 20))))

    kernel = functools.partial(_fused_band_kernel, float(negative_slope))
    lmat, umat, lint, uint = pl.pallas_call(
        kernel,
        grid=grid,
        in_specs=[vec_spec, vec_spec, vec_spec],
        out_specs=(band_spec, band_spec, int_spec, int_spec),
        out_shape=(
            jax.ShapeDtypeStruct((n_pad, n_pad), jnp.float32),
            jax.ShapeDtypeStruct((n_pad, n_pad), jnp.float32),
            jax.ShapeDtypeStruct((1, n_pad), jnp.float32),
            jax.ShapeDtypeStruct((1, n_pad), jnp.float32),
        ),
        compiler_params=pltpu.CompilerParams(
            dimension_semantics=("parallel",),
            vmem_limit_bytes=vmem_limit,
        ),
    )(lb, ub, ra)

    if n_pad != n:
        lmat = lmat[:n, :n]
        umat = umat[:n, :n]
        lint = lint[:, :n]
        uint = uint[:, :n]
    return lmat, lint, umat, uint


# --------------------------------------------------------------------------
# Pure-JAX reference (mirror of the PyTorch forward) for verification.
# --------------------------------------------------------------------------
def _reference(lbounds, ubounds, raw_alpha, neg_slope):
    n = lbounds.size
    lb = lbounds.reshape(1, n).astype(jnp.float32)
    ub = ubounds.reshape(1, n).astype(jnp.float32)
    alpha = 1.0 / (1.0 + jnp.exp(-raw_alpha.reshape(1, n).astype(jnp.float32)))
    lr_slope = (ub - lb * neg_slope) / (ub - lb)
    lr_slope = jnp.where(jnp.isnan(lr_slope), 0.0, lr_slope)
    lr_int = (1.0 - lr_slope) * ub
    lslope = jnp.ones((1, n), jnp.float32)
    uslope = jnp.ones((1, n), jnp.float32)
    lint = jnp.zeros((1, n), jnp.float32)
    uint = jnp.zeros((1, n), jnp.float32)
    below = ub <= 0
    lslope = jnp.where(below, neg_slope, lslope)
    uslope = jnp.where(below, neg_slope, uslope)
    above = lb >= 0
    lslope = jnp.where(above, 1.0, lslope)
    uslope = jnp.where(above, 1.0, uslope)
    crossing = ~(below | above)
    if neg_slope <= 1:
        uslope = jnp.where(crossing, lr_slope, uslope)
        uint = jnp.where(crossing, lr_int, uint)
        v1 = jnp.where(crossing, 1.0, lslope)
        v2 = jnp.where(crossing, neg_slope, lslope)
        lslope = alpha * v1 + (1.0 - alpha) * v2
    else:
        lslope = jnp.where(crossing, lr_slope, lslope)
        lint = jnp.where(crossing, lr_int, lint)
        v1 = jnp.where(crossing, 1.0, uslope)
        v2 = jnp.where(crossing, neg_slope, uslope)
        uslope = alpha * v1 + (1.0 - alpha) * v2
    return jnp.diag(lslope[0]), lint, jnp.diag(uslope[0]), uint


if __name__ == "__main__":
    # Module config: LeakyReLU(negative_slope=0.01), input_shape=(4, 16, 16)
    # -> N = 1024 (two full-width bands of 512 rows each).
    negative_slope = 0.01
    input_shape = (4, 16, 16)
    N = 1
    for d in input_shape:
        N *= d

    key = jax.random.PRNGKey(0)
    # Concrete bounds of the previous constraints (backsubstitution no-op):
    # some neurons strictly negative, some strictly positive, some crossing.
    x = jax.random.normal(key, (1, N), dtype=jnp.float32)
    eps = 0.5
    lbounds = x - eps
    ubounds = x + eps

    # Parameter init exactly as in __init__: raw_alpha = zeros(N).
    raw_alpha = jnp.zeros((N,), dtype=jnp.float32)

    outs = deep_poly_leaky_relu(lbounds, ubounds, raw_alpha, negative_slope)
    outs = jax.block_until_ready(outs)

    refs = _reference(lbounds, ubounds, raw_alpha, negative_slope)
    for o, r in zip(outs, refs):
        assert o.shape == r.shape and o.dtype == r.dtype
        assert jnp.allclose(o, r, atol=1e-5, rtol=1e-5), "mismatch vs reference"

    print("KERNEL_OK")
</pallas_src>

<mosaic_0001>
module attributes {stable_mosaic.version = 11 : i64} {
  func.func @_fused_band_kernel(%arg0: i32, %arg1: memref<1x512xf32, #tpu.memory_space<vmem>>, %arg2: memref<1x512xf32, #tpu.memory_space<vmem>>, %arg3: memref<1x512xf32, #tpu.memory_space<vmem>>, %arg4: memref<512x1024xf32, #tpu.memory_space<vmem>>, %arg5: memref<512x1024xf32, #tpu.memory_space<vmem>>, %arg6: memref<1x512xf32, #tpu.memory_space<vmem>>, %arg7: memref<1x512xf32, #tpu.memory_space<vmem>>) attributes {dimension_semantics = [#tpu.dimension_semantics<parallel>], iteration_bounds = array<i64: 2>, scalar_prefetch = 0 : i64, scratch_operands = 0 : i64, tpu.core_type = #tpu.core_type<tc>, window_params = [{transform_indices = @transform_0, window_bounds = array<i64: 1, 512>}, {transform_indices = @transform_1, window_bounds = array<i64: 1, 512>}, {transform_indices = @transform_2, window_bounds = array<i64: 1, 512>}, {transform_indices = @transform_3, window_bounds = array<i64: 512, 1024>}, {transform_indices = @transform_4, window_bounds = array<i64: 512, 1024>}, {transform_indices = @transform_5, window_bounds = array<i64: 1, 512>}, {transform_indices = @transform_6, window_bounds = array<i64: 1, 512>}]} {
    %c0 = arith.constant 0 : index
    %c0_0 = arith.constant 0 : index
    %0 = vector.load %arg1[%c0, %c0_0] : memref<1x512xf32, #tpu.memory_space<vmem>>, vector<1x512xf32>
    %c0_1 = arith.constant 0 : index
    %c0_2 = arith.constant 0 : index
    %1 = vector.load %arg2[%c0_1, %c0_2] : memref<1x512xf32, #tpu.memory_space<vmem>>, vector<1x512xf32>
    %c0_3 = arith.constant 0 : index
    %c0_4 = arith.constant 0 : index
    %2 = vector.load %arg3[%c0_3, %c0_4] : memref<1x512xf32, #tpu.memory_space<vmem>>, vector<1x512xf32>
    %cst = arith.constant 0.000000e+00 : f32
    %3 = vector.broadcast %cst : f32 to vector<1x512xf32>
    %4 = arith.subf %3, %2 : vector<1x512xf32>
    %5 = math.exp %4 : vector<1x512xf32>
    %cst_5 = arith.constant 1.000000e+00 : f32
    %6 = vector.broadcast %cst_5 : f32 to vector<1x512xf32>
    %7 = arith.addf %6, %5 : vector<1x512xf32>
    %cst_6 = arith.constant 1.000000e+00 : f32
    %8 = vector.broadcast %cst_6 : f32 to vector<1x512xf32>
    %9 = arith.divf %8, %7 : vector<1x512xf32>
    %10 = arith.subf %1, %0 : vector<1x512xf32>
    %cst_7 = arith.constant 0.000000e+00 : f32
    %11 = vector.broadcast %cst_7 : f32 to vector<1x512xf32>
    %12 = arith.cmpf oeq, %10, %11 : vector<1x512xf32>
    %cst_8 = arith.constant 1.000000e+00 : f32
    %13 = vector.broadcast %cst_8 : f32 to vector<1x512xf32>
    %14 = arith.select %12, %13, %10 : vector<1x512xi1>, vector<1x512xf32>
    %cst_9 = arith.constant 0.00999999977 : f32
    %15 = vector.broadcast %cst_9 : f32 to vector<1x512xf32>
    %16 = arith.mulf %0, %15 : vector<1x512xf32>
    %17 = arith.subf %1, %16 : vector<1x512xf32>
    %18 = arith.divf %17, %14 : vector<1x512xf32>
    %cst_10 = arith.constant 0.000000e+00 : f32
    %19 = vector.broadcast %cst_10 : f32 to vector<1x512xf32>
    %20 = arith.cmpf oeq, %10, %19 : vector<1x512xf32>
    %cst_11 = arith.constant 0.000000e+00 : f32
    %21 = vector.broadcast %cst_11 : f32 to vector<1x512xf32>
    %22 = arith.select %20, %21, %18 : vector<1x512xi1>, vector<1x512xf32>
    %cst_12 = arith.constant 1.000000e+00 : f32
    %23 = vector.broadcast %cst_12 : f32 to vector<1x512xf32>
    %24 = arith.subf %23, %22 : vector<1x512xf32>
    %25 = arith.mulf %24, %1 : vector<1x512xf32>
    %cst_13 = arith.constant 1.000000e+00 : f32
    %26 = vector.broadcast %cst_13 : f32 to vector<1x512xf32>
    %cst_14 = arith.constant 0.000000e+00 : f32
    %27 = vector.broadcast %cst_14 : f32 to vector<1x512xf32>
    %cst_15 = arith.constant 0.000000e+00 : f32
    %28 = vector.broadcast %cst_15 : f32 to vector<1x512xf32>
    %29 = arith.cmpf ole, %1, %28 : vector<1x512xf32>
    %cst_16 = arith.constant 0.00999999977 : f32
    %30 = vector.broadcast %cst_16 : f32 to vector<1x512xf32>
    %31 = arith.select %29, %30, %26 : vector<1x512xi1>, vector<1x512xf32>
    %cst_17 = arith.constant 0.00999999977 : f32
    %32 = vector.broadcast %cst_17 : f32 to vector<1x512xf32>
    %33 = arith.select %29, %32, %26 : vector<1x512xi1>, vector<1x512xf32>
    %cst_18 = arith.constant 0.000000e+00 : f32
    %34 = vector.broadcast %cst_18 : f32 to vector<1x512xf32>
    %35 = arith.cmpf oge, %0, %34 : vector<1x512xf32>
    %cst_19 = arith.constant 1.000000e+00 : f32
    %36 = vector.broadcast %cst_19 : f32 to vector<1x512xf32>
    %37 = arith.select %35, %36, %31 : vector<1x512xi1>, vector<1x512xf32>
    %cst_20 = arith.constant 1.000000e+00 : f32
    %38 = vector.broadcast %cst_20 : f32 to vector<1x512xf32>
    %39 = arith.select %35, %38, %33 : vector<1x512xi1>, vector<1x512xf32>
    %40 = arith.ori %29, %35 : vector<1x512xi1>
    %cst_21 = arith.constant dense<true> : vector<1x512xi1>
    %41 = arith.xori %40, %cst_21 : vector<1x512xi1>
    %42 = arith.select %41, %22, %39 : vector<1x512xi1>, vector<1x512xf32>
    %43 = arith.select %41, %25, %27 : vector<1x512xi1>, vector<1x512xf32>
    %cst_22 = arith.constant 1.000000e+00 : f32
    %44 = vector.broadcast %cst_22 : f32 to vector<1x512xf32>
    %45 = arith.select %41, %44, %37 : vector<1x512xi1>, vector<1x512xf32>
    %cst_23 = arith.constant 0.00999999977 : f32
    %46 = vector.broadcast %cst_23 : f32 to vector<1x512xf32>
    %47 = arith.select %41, %46, %37 : vector<1x512xi1>, vector<1x512xf32>
    %48 = arith.mulf %9, %45 : vector<1x512xf32>
    %cst_24 = arith.constant 1.000000e+00 : f32
    %49 = vector.broadcast %cst_24 : f32 to vector<1x512xf32>
    %50 = arith.subf %49, %9 : vector<1x512xf32>
    %51 = arith.mulf %50, %47 : vector<1x512xf32>
    %52 = arith.addf %48, %51 : vector<1x512xf32>
    %c0_25 = arith.constant 0 : index
    %c0_26 = arith.constant 0 : index
    %53 = vector.load %arg6[%c0_25, %c0_26] : memref<1x512xf32, #tpu.memory_space<vmem>>, vector<1x512xf32>
    tpu.vector_store %arg6[%c0_25, %c0_26], %27 {strides = array<i32>} : memref<1x512xf32, #tpu.memory_space<vmem>>, vector<1x512xf32>,
    %c0_27 = arith.constant 0 : index
    %c0_28 = arith.constant 0 : index
    %54 = vector.load %arg7[%c0_27, %c0_28] : memref<1x512xf32, #tpu.memory_space<vmem>>, vector<1x512xf32>
    tpu.vector_store %arg7[%c0_27, %c0_28], %43 {strides = array<i32>} : memref<1x512xf32, #tpu.memory_space<vmem>>, vector<1x512xf32>,
    %cst_29 = arith.constant 0.000000e+00 : f32
    %55 = vector.broadcast %cst_29 : f32 to vector<512x1024xf32>
    %c0_30 = arith.constant 0 : index
    %c0_31 = arith.constant 0 : index
    %56 = vector.load %arg4[%c0_30, %c0_31] : memref<512x1024xf32, #tpu.memory_space<vmem>>, vector<512x1024xf32>
    tpu.vector_store %arg4[%c0_30, %c0_31], %55 {strides = array<i32>} : memref<512x1024xf32, #tpu.memory_space<vmem>>, vector<512x1024xf32>,
    %cst_32 = arith.constant 0.000000e+00 : f32
    %57 = vector.broadcast %cst_32 : f32 to vector<512x1024xf32>
    %c0_33 = arith.constant 0 : index
    %c0_34 = arith.constant 0 : index
    %58 = vector.load %arg5[%c0_33, %c0_34] : memref<512x1024xf32, #tpu.memory_space<vmem>>, vector<512x1024xf32>
    tpu.vector_store %arg5[%c0_33, %c0_34], %57 {strides = array<i32>} : memref<512x1024xf32, #tpu.memory_space<vmem>>, vector<512x1024xf32>,
    %59 = tpu.iota {dimensions = array<i32: 0>} : vector<512x512xi32>
    %60 = tpu.iota {dimensions = array<i32: 1>} : vector<512x512xi32>
    %61 = arith.cmpi eq, %59, %60 : vector<512x512xi32>
    %c512_i32 = arith.constant 512 : i32
    %62 = arith.muli %arg0, %c512_i32 : i32
    %63 = tpu.assume_multiple %62, 128 : i32
    %cst_35 = arith.constant 0.000000e+00 : f32
    %64 = vector.shape_cast %52 : vector<1x512xf32> to vector<1x512xf32>
    %65 = vector.broadcast %64 : vector<1x512xf32> to vector<512x512xf32>
    %66 = vector.broadcast %cst_35 : f32 to vector<512x512xf32>
    %67 = arith.select %61, %65, %66 : vector<512x512xi1>, vector<512x512xf32>
    %c0_36 = arith.constant 0 : index
    %68 = arith.index_cast %63 : i32 to index
    %69 = vector.load %arg4[%c0_36, %68] : memref<512x1024xf32, #tpu.memory_space<vmem>>, vector<512x512xf32>
    tpu.vector_store %arg4[%c0_36, %68], %67 {strides = array<i32>} : memref<512x1024xf32, #tpu.memory_space<vmem>>, vector<512x512xf32>,
    %cst_37 = arith.constant 0.000000e+00 : f32
    %70 = vector.shape_cast %42 : vector<1x512xf32> to vector<1x512xf32>
    %71 = vector.broadcast %70 : vector<1x512xf32> to vector<512x512xf32>
    %72 = vector.broadcast %cst_37 : f32 to vector<512x512xf32>
    %73 = arith.select %61, %71, %72 : vector<512x512xi1>, vector<512x512xf32>
    %c0_38 = arith.constant 0 : index
    %74 = arith.index_cast %63 : i32 to index
    %75 = vector.load %arg5[%c0_38, %74] : memref<512x1024xf32, #tpu.memory_space<vmem>>, vector<512x512xf32>
    tpu.vector_store %arg5[%c0_38, %74], %73 {strides = array<i32>} : memref<512x1024xf32, #tpu.memory_space<vmem>>, vector<512x512xf32>,
    return
  }
  func.func @transform_0(%arg0: i32) -> (i32, i32) {
    %c0_i32 = arith.constant 0 : i32
    %c0_i32_0 = arith.constant 0 : i32
    return %c0_i32, %arg0 : i32, i32
  }
  func.func @transform_1(%arg0: i32) -> (i32, i32) {
    %c0_i32 = arith.constant 0 : i32
    %c0_i32_0 = arith.constant 0 : i32
    return %c0_i32, %arg0 : i32, i32
  }
  func.func @transform_2(%arg0: i32) -> (i32, i32) {
    %c0_i32 = arith.constant 0 : i32
    %c0_i32_0 = arith.constant 0 : i32
    return %c0_i32, %arg0 : i32, i32
  }
  func.func @transform_3(%arg0: i32) -> (i32, i32) {
    %c0_i32 = arith.constant 0 : i32
    %c0_i32_0 = arith.constant 0 : i32
    return %arg0, %c0_i32 : i32, i32
  }
  func.func @transform_4(%arg0: i32) -> (i32, i32) {
    %c0_i32 = arith.constant 0 : i32
    %c0_i32_0 = arith.constant 0 : i32
    return %arg0, %c0_i32 : i32, i32
  }
  func.func @transform_5(%arg0: i32) -> (i32, i32) {
    %c0_i32 = arith.constant 0 : i32
    %c0_i32_0 = arith.constant 0 : i32
    return %c0_i32, %arg0 : i32, i32
  }
  func.func @transform_6(%arg0: i32) -> (i32, i32) {
    %c0_i32 = arith.constant 0 : i32
    %c0_i32_0 = arith.constant 0 : i32
    return %c0_i32, %arg0 : i32, i32
  }
}

</mosaic_0001>

<llo_original>
// kernel: tpu_custom_call.1
$region0: #{tpu_custom_call.1}
  #allocation0 [shape = 'u32[]', space=smem, size = 0x4, offset = 0x4, fixed_abs, tag = 'smem constant byte address 0x4 - core index']
  #allocation1 [shape = 'u32[72,128]{1,0:T(1,128)}', space=vmem, size = 0x9000, scoped, tag = 'internal scratch']
  %s0 = inlined_call_operand.hbm [shape: f32[1,1024], index: 0, kind: input, shape index: {}]
  %s1 = inlined_call_operand.hbm [shape: f32[1,1024], index: 1, kind: input, shape index: {}]
  %s2 = inlined_call_operand.hbm [shape: f32[1,1024], index: 2, kind: input, shape index: {}]
  %s3 = inlined_call_operand.hbm [shape: f32[1024,1024], index: 3, kind: output, shape index: {0}]
  %s4 = inlined_call_operand.hbm [shape: f32[1024,1024], index: 4, kind: output, shape index: {1}]
  %s5 = inlined_call_operand.hbm [shape: f32[1,1024], index: 5, kind: output, shape index: {2}]
  %s6 = inlined_call_operand.hbm [shape: f32[1,1024], index: 6, kind: output, shape index: {3}]
  %7 = xla_tuple %s3, %s4, %s5, %s6
  %s8 = sld [smem:[#allocation0]]
  $region81: #{tpu_custom_call.1} parent=0
    _
  %s10 = ssub.s32 1, %s8
  %s11 = scalar_select 0, %s10, %s8
  $region1: #{tpu_custom_call.1} parent=0
    #allocation2 [shape = 'u8[4096]{0}', space=vmem, size = 0x1000, scoped, tag = 'input window, operand 0']
    #allocation3 [shape = 's32[2]{0}', space=sflag, size = 0x8, scoped, tag = 'scoped memory for tpu_custom_call.1']
    #allocation4 [shape = 's32[2]{0}', space=sflag, size = 0x8, scoped, tag = 'scoped memory for tpu_custom_call.1']
    #allocation5 [shape = 'u8[4096]{0}', space=vmem, size = 0x1000, scoped, tag = 'input window, operand 1']
    #allocation6 [shape = 's32[2]{0}', space=sflag, size = 0x8, scoped, tag = 'scoped memory for tpu_custom_call.1']
    #allocation7 [shape = 'u8[4096]{0}', space=vmem, size = 0x1000, scoped, tag = 'input window, operand 2']
    #allocation8 [shape = 'u8[4194304]{0}', space=vmem, size = 0x400000, scoped, tag = 'output window, operand 0']
    #allocation9 [shape = 'u8[4194304]{0}', space=vmem, size = 0x400000, scoped, tag = 'output window, operand 1']
    #allocation10 [shape = 's32[2]{0}', space=sflag, size = 0x8, scoped, tag = 'scoped memory for tpu_custom_call.1']
    #allocation11 [shape = 'u8[4096]{0}', space=vmem, size = 0x1000, scoped, tag = 'output window, operand 2']
    #allocation12 [shape = 'u8[4096]{0}', space=vmem, size = 0x1000, scoped, tag = 'output window, operand 3']
    #allocation13 [shape = 's32[2]{0}', space=sflag, size = 0x8, scoped, tag = 'scoped memory for tpu_custom_call.1']
    %12 = vsyncpa [#allocation3], 0
    %s13 = scalar_lea.sflag [#allocation3], 1
    %14 = vsyncpa %s13, 0
    %15 = vsyncpa [#allocation6], 0
    %s16 = scalar_lea.sflag [#allocation6], 1
    %17 = vsyncpa %s16, 0
    %18 = vsyncpa [#allocation4], 0
    %s19 = scalar_lea.sflag [#allocation4], 1
    %20 = vsyncpa %s19, 0
    %21 = vsyncpa [#allocation10], 0
    %s22 = scalar_lea.sflag [#allocation10], 1
    %23 = vsyncpa %s22, 0
    %24 = vsyncpa [#allocation13], 0
    %s25 = scalar_lea.sflag [#allocation13], 1
    %26 = vsyncpa %s25, 0
    loop: start=0, step=1, limit=4
    $region2: #{tpu_custom_call.1} parent=1 // loop_pre_header
      _
    $region3: #{tpu_custom_call.1} parent=1 // loop_header
      %s28 = sphi 0, %s32
      %p29 = scmp.ge.s32.totalorder %s28, 4
      %s38 = sphi 0, %s40
      %s41 = sphi 0, %s38
      %s42 = sphi 0, %s41
      %s58 = sphi 0, %s42
      %s64 = sphi 0, %s66
      %s67 = sphi 0, %s64
      %s68 = sphi 0, %s67
      %s84 = sphi 0, %s68
      %s90 = sphi 0, %s92
      %s93 = sphi 0, %s90
      %s94 = sphi 0, %s93
      %s110 = sphi 0, %s94
      %s116 = sphi 0, %s118
      %s119 = sphi 0, %s116
      %s120 = sphi 0, %s119
      %s136 = sphi 0, %s120
      %s142 = sphi 0, %s144
      %s145 = sphi 0, %s142
      %s146 = sphi 0, %s145
      %s162 = sphi 0, %s146
      %s168 = sphi 0, %s170
      %s171 = sphi 0, %s168
      %s172 = sphi 0, %s171
      %s188 = sphi 0, %s172
      %s194 = sphi 0, %s196
      %s197 = sphi 0, %s194
      %s198 = sphi 0, %s197
      %s214 = sphi 0, %s198
    $region4: #{tpu_custom_call.1} parent=1 // loop_header_branch
      %31 = sbr.rel (%p29) target = $region8
    $region5: #{tpu_custom_call.1} parent=1 // loop_body
      %s33 = ssub.s32 %s28, 1
      %s34 = ssub.s32 %s28, 2
      %s35 = sadd.s32 %s28, 1
      %s36 = ssub.s32 %s28, %s35
      %p37 = scmp.eq.s32.totalorder %s36, 0
      %s39 = sadd.s32 %s38, 1
      %s40 = scalar_select %p37, %s38, %s39
      %p43 = pneg %p37
      %p44 = scmp.eq.s32.totalorder %s28, 1
      %p45 = por %p43, %p44
      %p46 = scmp.ne.s32.totalorder %s38, %s41
      %p47 = scmp.eq.s32.totalorder %s28, 0
      %p48 = por %p46, %p47
      %p49 = scmp.ne.s32.totalorder %s38, %s41
      %p50 = scmp.eq.s32.totalorder %s33, 1
      %p51 = por %p49, %p50
      %p52 = scmp.ne.s32.totalorder %s41, %s42
      %p53 = scmp.eq.s32.totalorder %s33, 0
      %p54 = por %p52, %p53
      %p55 = scmp.ne.s32.totalorder %s41, %s42
      %p56 = scmp.eq.s32.totalorder %s34, 1
      %p57 = por %p55, %p56
      %p59 = scmp.ne.s32.totalorder %s42, %s58
      %p60 = scmp.eq.s32.totalorder %s34, 0
      %p61 = por %p59, %p60
      %s62 = ssub.s32 %s28, %s35
      %p63 = scmp.eq.s32.totalorder %s62, 0
      %s65 = sadd.s32 %s64, 1
      %s66 = scalar_select %p63, %s64, %s65
      %p69 = pneg %p63
      %p70 = scmp.eq.s32.totalorder %s28, 1
      %p71 = por %p69, %p70
      %p72 = scmp.ne.s32.totalorder %s64, %s67
      %p73 = scmp.eq.s32.totalorder %s28, 0
      %p74 = por %p72, %p73
      %p75 = scmp.ne.s32.totalorder %s64, %s67
      %p76 = scmp.eq.s32.totalorder %s33, 1
      %p77 = por %p75, %p76
      %p78 = scmp.ne.s32.totalorder %s67, %s68
      %p79 = scmp.eq.s32.totalorder %s33, 0
      %p80 = por %p78, %p79
      %p81 = scmp.ne.s32.totalorder %s67, %s68
      %p82 = scmp.eq.s32.totalorder %s34, 1
      %p83 = por %p81, %p82
      %p85 = scmp.ne.s32.totalorder %s68, %s84
      %p86 = scmp.eq.s32.totalorder %s34, 0
      %p87 = por %p85, %p86
      %s88 = ssub.s32 %s28, %s35
      %p89 = scmp.eq.s32.totalorder %s88, 0
      %s91 = sadd.s32 %s90, 1
      %s92 = scalar_select %p89, %s90, %s91
      %p95 = pneg %p89
      %p96 = scmp.eq.s32.totalorder %s28, 1
      %p97 = por %p95, %p96
      %p98 = scmp.ne.s32.totalorder %s90, %s93
      %p99 = scmp.eq.s32.totalorder %s28, 0
      %p100 = por %p98, %p99
      %p101 = scmp.ne.s32.totalorder %s90, %s93
      %p102 = scmp.eq.s32.totalorder %s33, 1
      %p103 = por %p101, %p102
      %p104 = scmp.ne.s32.totalorder %s93, %s94
      %p105 = scmp.eq.s32.totalorder %s33, 0
      %p106 = por %p104, %p105
      %p107 = scmp.ne.s32.totalorder %s93, %s94
      %p108 = scmp.eq.s32.totalorder %s34, 1
      %p109 = por %p107, %p108
      %p111 = scmp.ne.s32.totalorder %s94, %s110
      %p112 = scmp.eq.s32.totalorder %s34, 0
      %p113 = por %p111, %p112
      %s114 = ssub.s32 %s28, %s35
      %p115 = scmp.eq.s32.totalorder %s114, 0
      %s117 = sadd.s32 %s116, 1
      %s118 = scalar_select %p115, %s116, %s117
      %p121 = pneg %p115
      %p122 = scmp.eq.s32.totalorder %s28, 1
      %p123 = por %p121, %p122
      %p124 = scmp.ne.s32.totalorder %s116, %s119
      %p125 = scmp.eq.s32.totalorder %s28, 0
      %p126 = por %p124, %p125
      %p127 = scmp.ne.s32.totalorder %s116, %s119
      %p128 = scmp.eq.s32.totalorder %s33, 1
      %p129 = por %p127, %p128
      %p130 = scmp.ne.s32.totalorder %s119, %s120
      %p131 = scmp.eq.s32.totalorder %s33, 0
      %p132 = por %p130, %p131
      %p133 = scmp.ne.s32.totalorder %s119, %s120
      %p134 = scmp.eq.s32.totalorder %s34, 1
      %p135 = por %p133, %p134
      %p137 = scmp.ne.s32.totalorder %s120, %s136
      %p138 = scmp.eq.s32.totalorder %s34, 0
      %p139 = por %p137, %p138
      %s140 = ssub.s32 %s28, %s35
      %p141 = scmp.eq.s32.totalorder %s140, 0
      %s143 = sadd.s32 %s142, 1
      %s144 = scalar_select %p141, %s142, %s143
      %p147 = pneg %p141
      %p148 = scmp.eq.s32.totalorder %s28, 1
      %p149 = por %p147, %p148
      %p150 = scmp.ne.s32.totalorder %s142, %s145
      %p151 = scmp.eq.s32.totalorder %s28, 0
      %p152 = por %p150, %p151
      %p153 = scmp.ne.s32.totalorder %s142, %s145
      %p154 = scmp.eq.s32.totalorder %s33, 1
      %p155 = por %p153, %p154
      %p156 = scmp.ne.s32.totalorder %s145, %s146
      %p157 = scmp.eq.s32.totalorder %s33, 0
      %p158 = por %p156, %p157
      %p159 = scmp.ne.s32.totalorder %s145, %s146
      %p160 = scmp.eq.s32.totalorder %s34, 1
      %p161 = por %p159, %p160
      %p163 = scmp.ne.s32.totalorder %s146, %s162
      %p164 = scmp.eq.s32.totalorder %s34, 0
      %p165 = por %p163, %p164
      %s166 = ssub.s32 %s28, %s35
      %p167 = scmp.eq.s32.totalorder %s166, 0
      %s169 = sadd.s32 %s168, 1
      %s170 = scalar_select %p167, %s168, %s169
      %p173 = pneg %p167
      %p174 = scmp.eq.s32.totalorder %s28, 1
      %p175 = por %p173, %p174
      %p176 = scmp.ne.s32.totalorder %s168, %s171
      %p177 = scmp.eq.s32.totalorder %s28, 0
      %p178 = por %p176, %p177
      %p179 = scmp.ne.s32.totalorder %s168, %s171
      %p180 = scmp.eq.s32.totalorder %s33, 1
      %p181 = por %p179, %p180
      %p182 = scmp.ne.s32.totalorder %s171, %s172
      %p183 = scmp.eq.s32.totalorder %s33, 0
      %p184 = por %p182, %p183
      %p185 = scmp.ne.s32.totalorder %s171, %s172
      %p186 = scmp.eq.s32.totalorder %s34, 1
      %p187 = por %p185, %p186
      %p189 = scmp.ne.s32.totalorder %s172, %s188
      %p190 = scmp.eq.s32.totalorder %s34, 0
      %p191 = por %p189, %p190
      %s192 = ssub.s32 %s28, %s35
      %p193 = scmp.eq.s32.totalorder %s192, 0
      %s195 = sadd.s32 %s194, 1
      %s196 = scalar_select %p193, %s194, %s195
      %p199 = pneg %p193
      %p200 = scmp.eq.s32.totalorder %s28, 1
      %p201 = por %p199, %p200
      %p202 = scmp.ne.s32.totalorder %s194, %s197
      %p203 = scmp.eq.s32.totalorder %s28, 0
      %p204 = por %p202, %p203
      %p205 = scmp.ne.s32.totalorder %s194, %s197
      %p206 = scmp.eq.s32.totalorder %s33, 1
      %p207 = por %p205, %p206
      %p208 = scmp.ne.s32.totalorder %s197, %s198
      %p209 = scmp.eq.s32.totalorder %s33, 0
      %p210 = por %p208, %p209
      %p211 = scmp.ne.s32.totalorder %s197, %s198
      %p212 = scmp.eq.s32.totalorder %s34, 1
      %p213 = por %p211, %p212
      %p215 = scmp.ne.s32.totalorder %s198, %s214
      %p216 = scmp.eq.s32.totalorder %s34, 0
      %p217 = por %p215, %p216
      %p218 = scmp.le.s32.totalorder 1, %s28
      %p219 = scmp.lt.s32.totalorder %s28, 3
      %p220 = pnand %p218, %p219
      %p221 = pneg %p220
      // Predicated region
      $region9: #{tpu_custom_call.1} parent=5 // pred_check
        _
      $region10: #{tpu_custom_call.1} parent=5 // pred_check_branch
        %223 = sbr.rel (%p220) target = $region12
      $region11: #{tpu_custom_call.1} parent=5 // pred_region
        %s224 = ssub.s32 %s28, 1
      $region12: #{tpu_custom_call.1} parent=5 // pred_fallthru
        _
      %p225 = scmp.lt.s32.totalorder %s28, 2
      // Predicated region
      $region13: #{tpu_custom_call.1} parent=5 // pred_check
        %p226 = pneg %p225
      $region14: #{tpu_custom_call.1} parent=5 // pred_check_branch
        %228 = sbr.rel (%p226) target = $region16
      $region15: #{tpu_custom_call.1} parent=5 // pred_region
        // Predicated region
        $region17: #{tpu_custom_call.1} parent=15 // pred_check
          %p229 = pneg %p48
        $region18: #{tpu_custom_call.1} parent=15 // pred_check_branch
          %231 = sbr.rel (%p229) target = $region20
        $region19: #{tpu_custom_call.1} parent=15 // pred_region
          %s232 = sand.u32 %s38, 1
          %s233 = scalar_lea.sflag [#allocation3], %s232
          %s234 = sand.u32 %s38, 1
          %s235 = smul.addr %s234, 4
          %s236 = scalar_lea.vmem [#allocation2], %s235
          %s237 = smul.u32 4, %s28
          %239 = vsyncadd %s233, 0
          %s240 = scalar_lea.hbm %s0, %s237
          %s242 = sshll.u32 %s240, 4
          %s243 = int_to_ptr.hbm [resolvable:$true] %s242
          %s244 = sshll.u32 %s236, 4
          %s245 = int_to_ptr.vmem [resolvable:$true] %s244
          %247 = dma.hbm_to_vmem [thread:$0]  %s243, 64, %s245, %s233
        $region20: #{tpu_custom_call.1} parent=15 // pred_fallthru
          _
        // Predicated region
        $region21: #{tpu_custom_call.1} parent=15 // pred_check
          %p248 = pneg %p74
        $region22: #{tpu_custom_call.1} parent=15 // pred_check_branch
          %250 = sbr.rel (%p248) target = $region24
        $region23: #{tpu_custom_call.1} parent=15 // pred_region
          %s251 = sand.u32 %s28, 1
          %s252 = scalar_lea.sflag [#allocation6], %s251
          %s253 = sand.u32 %s64, 1
          %s254 = smul.addr %s253, 4
          %s255 = scalar_lea.vmem [#allocation5], %s254
          %s256 = smul.u32 4, %s28
          %258 = vsyncadd %s252, 0
          %s259 = scalar_lea.hbm %s1, %s256
          %s261 = sshll.u32 %s259, 4
          %s262 = int_to_ptr.hbm [resolvable:$true] %s261
          %s263 = sshll.u32 %s255, 4
          %s264 = int_to_ptr.vmem [resolvable:$true] %s263
          %266 = dma.hbm_to_vmem [thread:$0]  %s262, 64, %s264, %s252
        $region24: #{tpu_custom_call.1} parent=15 // pred_fallthru
          _
        // Predicated region
        $region25: #{tpu_custom_call.1} parent=15 // pred_check
          %p267 = pneg %p100
        $region26: #{tpu_custom_call.1} parent=15 // pred_check_branch
          %269 = sbr.rel (%p267) target = $region28
        $region27: #{tpu_custom_call.1} parent=15 // pred_region
          %s270 = sand.u32 %s28, 1
          %s271 = scalar_lea.sflag [#allocation6], %s270
          %s272 = sand.u32 %s90, 1
          %s273 = smul.addr %s272, 4
          %s274 = scalar_lea.vmem [#allocation7], %s273
          %s275 = smul.u32 4, %s28
          %277 = vsyncadd %s271, 0
          %s278 = scalar_lea.hbm %s2, %s275
          %s280 = sshll.u32 %s278, 4
          %s281 = int_to_ptr.hbm [resolvable:$true] %s280
          %s282 = sshll.u32 %s274, 4
          %s283 = int_to_ptr.vmem [resolvable:$true] %s282
          %285 = dma.hbm_to_vmem [thread:$0]  %s281, 64, %s283, %s271
        $region28: #{tpu_custom_call.1} parent=15 // pred_fallthru
          _
      $region16: #{tpu_custom_call.1} parent=5 // pred_fallthru
        _
      %p286 = scmp.le.s32.totalorder 1, %s28
      %p287 = scmp.lt.s32.totalorder %s28, 3
      %p288 = pnand %p286, %p287
      %p289 = pneg %p288
      // Predicated region
      $region29: #{tpu_custom_call.1} parent=5 // pred_check
        _
      $region30: #{tpu_custom_call.1} parent=5 // pred_check_branch
        %291 = sbr.rel (%p288) target = $region32
      $region31: #{tpu_custom_call.1} parent=5 // pred_region
        %s292 = ssub.s32 %s28, 1
        %s293 = sand.u32 %s41, 1
        %s294 = scalar_lea.sflag [#allocation3], %s293
        %s295 = sand.u32 %s41, 1
        %s296 = smul.addr %s295, 4
        %s297 = scalar_lea.vmem [#allocation2], %s296
        // Predicated region
        $region33: #{tpu_custom_call.1} parent=31 // pred_check
          %p298 = pneg %p54
        $region34: #{tpu_custom_call.1} parent=31 // pred_check_branch
          %300 = sbr.rel (%p298) target = $region36
        $region35: #{tpu_custom_call.1} parent=31 // pred_region
          %302 = dma.done %s294, 64
        $region36: #{tpu_custom_call.1} parent=31 // pred_fallthru
          _
        %s303 = sand.u32 %s33, 1
        %s304 = scalar_lea.sflag [#allocation6], %s303
        %s305 = sand.u32 %s67, 1
        %s306 = smul.addr %s305, 4
        %s307 = scalar_lea.vmem [#allocation5], %s306
        // Predicated region
        $region37: #{tpu_custom_call.1} parent=31 // pred_check
          %p308 = pneg %p80
        $region38: #{tpu_custom_call.1} parent=31 // pred_check_branch
          %310 = sbr.rel (%p308) target = $region40
        $region39: #{tpu_custom_call.1} parent=31 // pred_region
          %312 = dma.done %s304, 64
        $region40: #{tpu_custom_call.1} parent=31 // pred_fallthru
          _
        %s313 = sand.u32 %s33, 1
        %s314 = scalar_lea.sflag [#allocation6], %s313
        %s315 = sand.u32 %s93, 1
        %s316 = smul.addr %s315, 4
        %s317 = scalar_lea.vmem [#allocation7], %s316
        // Predicated region
        $region41: #{tpu_custom_call.1} parent=31 // pred_check
          %p318 = pneg %p106
        $region42: #{tpu_custom_call.1} parent=31 // pred_check_branch
          %320 = sbr.rel (%p318) target = $region44
        $region43: #{tpu_custom_call.1} parent=31 // pred_region
          %322 = dma.done %s314, 64
        $region44: #{tpu_custom_call.1} parent=31 // pred_fallthru
          _
        %s323 = sand.u32 %s41, 1
        %s324 = scalar_lea.sflag [#allocation3], %s323
        %s325 = sand.u32 %s41, 1
        %s326 = smul.addr %s325, 4
        %s327 = scalar_lea.vmem [#allocation2], %s326
        %p328 = pneg %p54
        %p329 = pneg %p51
        %s330 = sand.u32 %s33, 1
        %s331 = scalar_lea.sflag [#allocation6], %s330
        %s332 = sand.u32 %s67, 1
        %s333 = smul.addr %s332, 4
        %s334 = scalar_lea.vmem [#allocation5], %s333
        %p335 = pneg %p80
        %p336 = pneg %p77
        %s337 = sand.u32 %s33, 1
        %s338 = scalar_lea.sflag [#allocation6], %s337
        %s339 = sand.u32 %s93, 1
        %s340 = smul.addr %s339, 4
        %s341 = scalar_lea.vmem [#allocation7], %s340
        %p342 = pneg %p106
        %p343 = pneg %p103
        %p344 = pneg %p132
        %p345 = pneg %p129
        %s346 = sand.u32 %s119, 1
        %s347 = scalar_lea.sflag [#allocation4], %s346
        %s348 = sand.u32 %s119, 1
        %s349 = smul.addr %s348, 4096
        %s350 = scalar_lea.vmem [#allocation8], %s349
        %p351 = pneg %p158
        %p352 = pneg %p155
        %s353 = sand.u32 %s33, 1
        %s354 = scalar_lea.sflag [#allocation10], %s353
        %s355 = sand.u32 %s145, 1
        %s356 = smul.addr %s355, 4096
        %s357 = scalar_lea.vmem [#allocation9], %s356
        %p358 = pneg %p184
        %p359 = pneg %p181
        %s360 = sand.u32 %s33, 1
        %s361 = scalar_lea.sflag [#allocation10], %s360
        %s362 = sand.u32 %s171, 1
        %s363 = smul.addr %s362, 4
        %s364 = scalar_lea.vmem [#allocation11], %s363
        %p365 = pneg %p210
        %p366 = pneg %p207
        %s367 = sand.u32 %s197, 1
        %s368 = scalar_lea.sflag [#allocation13], %s367
        %s369 = sand.u32 %s197, 1
        %s370 = smul.addr %s369, 4
        %s371 = scalar_lea.vmem [#allocation12], %s370
        %s372 = smul.u32 4, %s33
        %s373 = smul.u32 4, %s33
        %s374 = smul.u32 4, %s33
        %s375 = smul.u32 64, %s33
        %s376 = smul.u32 64, %s33
        %s377 = smul.u32 4, %s33
        %s378 = smul.u32 4, %s33
        %v379 = vld [vmem:[%s297] sm:$0xf]
        %v380 = vld [vmem:[%s307] sm:$0xf]
        %v381 = vld [vmem:[%s317] sm:$0xf]
        %v382 = vsub.f32 0.0, %v381
        %v383 = vmul.f32 %v382, 1.442695
        %v384 = vpow.pop %v383
        %v385 = vadd.f32 %v384, 1.0
        %v386 = vrcp.pop %v385
        %v387 = vmul.f32 %v385, %v386
        %v388 = vsub.f32 1.0, %v387
        %v389 = vmul.f32 %v386, %v388
        %v390 = vadd.f32 %v386, %v389
        %vm391 = vweird.f32 %v385
        %vm392 = vweird.f32 %v386
        %vm393 = vmor %vm391, %vm392
        %v394 = vsel %vm393, %v386, %v390
        %v395 = vand.u32 2147483647, %v385
        %vm396 = vcmp.eq.f32.partialorder %v395, 8.507059e+37
        %v397 = vand.u32 %v385, 2147483648
        %v398 = vor.u32 1.1754944e-38, %v397
        %v399 = vsel %vm396, %v398, %v394
        %v400 = vmul.f32 1.0, %v399
        %v401 = vsub.f32 %v380, %v379
        %vm402 = vcmp.eq.f32.partialorder %v401, 0.0
        %v403 = vsel %vm402, 1.0, %v401
        %v404 = vmul.f32 %v379, 0.01
        %v405 = vsub.f32 %v380, %v404
        %v406 = vrcp.pop %v403
        %v407 = vmul.f32 %v403, %v406
        %v408 = vsub.f32 1.0, %v407
        %v409 = vmul.f32 %v406, %v408
        %v410 = vadd.f32 %v406, %v409
        %vm411 = vweird.f32 %v403
        %vm412 = vweird.f32 %v406
        %vm413 = vmor %vm411, %vm412
        %v414 = vsel %vm413, %v406, %v410
        %v415 = vand.u32 2147483647, %v403
        %vm416 = vcmp.eq.f32.partialorder %v415, 8.507059e+37
        %v417 = vand.u32 %v403, 2147483648
        %v418 = vor.u32 1.1754944e-38, %v417
        %v419 = vsel %vm416, %v418, %v414
        %v420 = vmul.f32 %v405, %v419
        %v421 = vsel %vm402, 0.0, %v420
        %v422 = vsub.f32 1.0, %v421
        %v423 = vmul.f32 %v422, %v380
        %vm424 = vcmp.le.f32.partialorder %v380, 0.0
        %v425 = vsel %vm424, 0.01, 1.0
        %vm426 = vcmp.ge.f32.partialorder %v379, 0.0
        %v427 = vsel %vm426, 1.0, %v425
        %vm428 = vmor %vm424, %vm426
        %vm429 = vmxor %vm428, 1
        %v430 = vsel %vm429, %v421, %v427
        %v431 = vsel %vm429, %v423, 0.0
        %v432 = vsel %vm429, 1.0, %v427
        %v433 = vsel %vm429, 0.01, %v427
        %v434 = vmul.f32 %v400, %v432
        %v435 = vsub.f32 1.0, %v400
        %v436 = vmul.f32 %v435, %v433
        %v437 = vadd.f32 %v434, %v436
        %v438 = vlaneseq
        %vm439 = vcmp.ge.s32.totalorder %v438, 0
        %vm440 = vcmp.lt.s32.totalorder %v438, 512
        %vm441 = vmand %vm439, %vm440
        %442 = vst.msk [vmem:[%s364] sm:$0xf] %vm441, 0.0
        %443 = vst.msk [vmem:[%s371] sm:$0xf] %vm441, %v431
        %444 = vst [vmem:[%s350] sm:$0xff] 0.0
        %445 = vst [vmem:[%s350 + $0x8] sm:$0xff] 0.0
        %446 = vst [vmem:[%s350 + $0x10] sm:$0xff] 0.0
        %447 = vst [vmem:[%s350 + $0x18] sm:$0xff] 0.0
        %448 = vst [vmem:[%s350 + $0x20] sm:$0xff] 0.0
        %449 = vst [vmem:[%s350 + $0x28] sm:$0xff] 0.0
        %450 = vst [vmem:[%s350 + $0x30] sm:$0xff] 0.0
        %451 = vst [vmem:[%s350 + $0x38] sm:$0xff] 0.0
        %452 = vst [vmem:[%s350 + $0x40] sm:$0xff] 0.0
        %453 = vst [vmem:[%s350 + $0x48] sm:$0xff] 0.0
        %454 = vst [vmem:[%s350 + $0x50] sm:$0xff] 0.0
        %455 = vst [vmem:[%s350 + $0x58] sm:$0xff] 0.0
        %456 = vst [vmem:[%s350 + $0x60] sm:$0xff] 0.0
        %457 = vst [vmem:[%s350 + $0x68] sm:$0xff] 0.0
        %458 = vst [vmem:[%s350 + $0x70] sm:$0xff] 0.0
        %459 = vst [vmem:[%s350 + $0x78] sm:$0xff] 0.0
        %460 = vst [vmem:[%s350 + $0x80] sm:$0xff] 0.0
        %461 = vst [vmem:[%s350 + $0x88] sm:$0xff] 0.0
        %462 = vst [vmem:[%s350 + $0x90] sm:$0xff] 0.0
        %463 = vst [vmem:[%s350 + $0x98] sm:$0xff] 0.0
        %464 = vst [vmem:[%s350 + $0xa0] sm:$0xff] 0.0
        %465 = vst [vmem:[%s350 + $0xa8] sm:$0xff] 0.0
        %466 = vst [vmem:[%s350 + $0xb0] sm:$0xff] 0.0
        %467 = vst [vmem:[%s350 + $0xb8] sm:$0xff] 0.0
        %468 = vst [vmem:[%s350 + $0xc0] sm:$0xff] 0.0
        %469 = vst [vmem:[%s350 + $0xc8] sm:$0xff] 0.0
        %470 = vst [vmem:[%s350 + $0xd0] sm:$0xff] 0.0
        %471 = vst [vmem:[%s350 + $0xd8] sm:$0xff] 0.0
        %472 = vst [vmem:[%s350 + $0xe0] sm:$0xff] 0.0
        %473 = vst [vmem:[%s350 + $0xe8] sm:$0xff] 0.0
        %474 = vst [vmem:[%s350 + $0xf0] sm:$0xff] 0.0
        %475 = vst [vmem:[%s350 + $0xf8] sm:$0xff] 0.0
        %476 = vst [vmem:[%s350 + $0x100] sm:$0xff] 0.0
        %477 = vst [vmem:[%s350 + $0x108] sm:$0xff] 0.0
        %478 = vst [vmem:[%s350 + $0x110] sm:$0xff] 0.0
        %479 = vst [vmem:[%s350 + $0x118] sm:$0xff] 0.0
        %480 = vst [vmem:[%s350 + $0x120] sm:$0xff] 0.0
        %481 = vst [vmem:[%s350 + $0x128] sm:$0xff] 0.0
        %482 = vst [vmem:[%s350 + $0x130] sm:$0xff] 0.0
        %483 = vst [vmem:[%s350 + $0x138] sm:$0xff] 0.0
        %484 = vst [vmem:[%s350 + $0x140] sm:$0xff] 0.0
        %485 = vst [vmem:[%s350 + $0x148] sm:$0xff] 0.0
        %486 = vst [vmem:[%s350 + $0x150] sm:$0xff] 0.0
        %487 = vst [vmem:[%s350 + $0x158] sm:$0xff] 0.0
        %488 = vst [vmem:[%s350 + $0x160] sm:$0xff] 0.0
        %489 = vst [vmem:[%s350 + $0x168] sm:$0xff] 0.0
        %490 = vst [vmem:[%s350 + $0x170] sm:$0xff] 0.0
        %491 = vst [vmem:[%s350 + $0x178] sm:$0xff] 0.0
        %492 = vst [vmem:[%s350 + $0x180] sm:$0xff] 0.0
        %493 = vst [vmem:[%s350 + $0x188] sm:$0xff] 0.0
        %494 = vst [vmem:[%s350 + $0x190] sm:$0xff] 0.0
        %495 = vst [vmem:[%s350 + $0x198] sm:$0xff] 0.0
        %496 = vst [vmem:[%s350 + $0x1a0] sm:$0xff] 0.0
        %497 = vst [vmem:[%s350 + $0x1a8] sm:$0xff] 0.0
        %498 = vst [vmem:[%s350 + $0x1b0] sm:$0xff] 0.0
        %499 = vst [vmem:[%s350 + $0x1b8] sm:$0xff] 0.0
        %500 = vst [vmem:[%s350 + $0x1c0] sm:$0xff] 0.0
        %501 = vst [vmem:[%s350 + $0x1c8] sm:$0xff] 0.0
        %502 = vst [vmem:[%s350 + $0x1d0] sm:$0xff] 0.0
        %503 = vst [vmem:[%s350 + $0x1d8] sm:$0xff] 0.0
        %504 = vst [vmem:[%s350 + $0x1e0] sm:$0xff] 0.0
        %505 = vst [vmem:[%s350 + $0x1e8] sm:$0xff] 0.0
        %506 = vst [vmem:[%s350 + $0x1f0] sm:$0xff] 0.0
        %507 = vst [vmem:[%s350 + $0x1f8] sm:$0xff] 0.0
        %508 = vst [vmem:[%s350 + $0x200] sm:$0xff] 0.0
        %509 = vst [vmem:[%s350 + $0x208] sm:$0xff] 0.0
        %510 = vst [vmem:[%s350 + $0x210] sm:$0xff] 0.0
        %511 = vst [vmem:[%s350 + $0x218] sm:$0xff] 0.0
        %512 = vst [vmem:[%s350 + $0x220] sm:$0xff] 0.0
        %513 = vst [vmem:[%s350 + $0x228] sm:$0xff] 0.0
        %514 = vst [vmem:[%s350 + $0x230] sm:$0xff] 0.0
        %515 = vst [vmem:[%s350 + $0x238] sm:$0xff] 0.0
        %516 = vst [vmem:[%s350 + $0x240] sm:$0xff] 0.0
        %517 = vst [vmem:[%s350 + $0x248] sm:$0xff] 0.0
        %518 = vst [vmem:[%s350 + $0x250] sm:$0xff] 0.0
        %519 = vst [vmem:[%s350 + $0x258] sm:$0xff] 0.0
        %520 = vst [vmem:[%s350 + $0x260] sm:$0xff] 0.0
        %521 = vst [vmem:[%s350 + $0x268] sm:$0xff] 0.0
        %522 = vst [vmem:[%s350 + $0x270] sm:$0xff] 0.0
        %523 = vst [vmem:[%s350 + $0x278] sm:$0xff] 0.0
        %524 = vst [vmem:[%s350 + $0x280] sm:$0xff] 0.0
        %525 = vst [vmem:[%s350 + $0x288] sm:$0xff] 0.0
        %526 = vst [vmem:[%s350 + $0x290] sm:$0xff] 0.0
        %527 = vst [vmem:[%s350 + $0x298] sm:$0xff] 0.0
        %528 = vst [vmem:[%s350 + $0x2a0] sm:$0xff] 0.0
        %529 = vst [vmem:[%s350 + $0x2a8] sm:$0xff] 0.0
        %530 = vst [vmem:[%s350 + $0x2b0] sm:$0xff] 0.0
        %531 = vst [vmem:[%s350 + $0x2b8] sm:$0xff] 0.0
        %532 = vst [vmem:[%s350 + $0x2c0] sm:$0xff] 0.0
        %533 = vst [vmem:[%s350 + $0x2c8] sm:$0xff] 0.0
        %534 = vst [vmem:[%s350 + $0x2d0] sm:$0xff] 0.0
        %535 = vst [vmem:[%s350 + $0x2d8] sm:$0xff] 0.0
        %536 = vst [vmem:[%s350 + $0x2e0] sm:$0xff] 0.0
        %537 = vst [vmem:[%s350 + $0x2e8] sm:$0xff] 0.0
        %538 = vst [vmem:[%s350 + $0x2f0] sm:$0xff] 0.0
        %539 = vst [vmem:[%s350 + $0x2f8] sm:$0xff] 0.0
        %540 = vst [vmem:[%s350 + $0x300] sm:$0xff] 0.0
        %541 = vst [vmem:[%s350 + $0x308] sm:$0xff] 0.0
        %542 = vst [vmem:[%s350 + $0x310] sm:$0xff] 0.0
        %543 = vst [vmem:[%s350 + $0x318] sm:$0xff] 0.0
        %544 = vst [vmem:[%s350 + $0x320] sm:$0xff] 0.0
        %545 = vst [vmem:[%s350 + $0x328] sm:$0xff] 0.0
        %546 = vst [vmem:[%s350 + $0x330] sm:$0xff] 0.0
        %547 = vst [vmem:[%s350 + $0x338] sm:$0xff] 0.0
        %548 = vst [vmem:[%s350 + $0x340] sm:$0xff] 0.0
        %549 = vst [vmem:[%s350 + $0x348] sm:$0xff] 0.0
        %550 = vst [vmem:[%s350 + $0x350] sm:$0xff] 0.0
        %551 = vst [vmem:[%s350 + $0x358] sm:$0xff] 0.0
        %552 = vst [vmem:[%s350 + $0x360] sm:$0xff] 0.0
        %553 = vst [vmem:[%s350 + $0x368] sm:$0xff] 0.0
        %554 = vst [vmem:[%s350 + $0x370] sm:$0xff] 0.0
        %555 = vst [vmem:[%s350 + $0x378] sm:$0xff] 0.0
        %556 = vst [vmem:[%s350 + $0x380] sm:$0xff] 0.0
        %557 = vst [vmem:[%s350 + $0x388] sm:$0xff] 0.0
        %558 = vst [vmem:[%s350 + $0x390] sm:$0xff] 0.0
        %559 = vst [vmem:[%s350 + $0x398] sm:$0xff] 0.0
        %560 = vst [vmem:[%s350 + $0x3a0] sm:$0xff] 0.0
        %561 = vst [vmem:[%s350 + $0x3a8] sm:$0xff] 0.0
        %562 = vst [vmem:[%s350 + $0x3b0] sm:$0xff] 0.0
        %563 = vst [vmem:[%s350 + $0x3b8] sm:$0xff] 0.0
        %564 = vst [vmem:[%s350 + $0x3c0] sm:$0xff] 0.0
        %565 = vst [vmem:[%s350 + $0x3c8] sm:$0xff] 0.0
        %566 = vst [vmem:[%s350 + $0x3d0] sm:$0xff] 0.0
        %567 = vst [vmem:[%s350 + $0x3d8] sm:$0xff] 0.0
        %568 = vst [vmem:[%s350 + $0x3e0] sm:$0xff] 0.0
        %569 = vst [vmem:[%s350 + $0x3e8] sm:$0xff] 0.0
        %570 = vst [vmem:[%s350 + $0x3f0] sm:$0xff] 0.0
        %571 = vst [vmem:[%s350 + $0x3f8] sm:$0xff] 0.0
        %572 = vst [vmem:[%s350 + $0x400] sm:$0xff] 0.0
        %573 = vst [vmem:[%s350 + $0x408] sm:$0xff] 0.0
        %574 = vst [vmem:[%s350 + $0x410] sm:$0xff] 0.0
        %575 = vst [vmem:[%s350 + $0x418] sm:$0xff] 0.0
        %576 = vst [vmem:[%s350 + $0x420] sm:$0xff] 0.0
        %577 = vst [vmem:[%s350 + $0x428] sm:$0xff] 0.0
        %578 = vst [vmem:[%s350 + $0x430] sm:$0xff] 0.0
        %579 = vst [vmem:[%s350 + $0x438] sm:$0xff] 0.0
        %580 = vst [vmem:[%s350 + $0x440] sm:$0xff] 0.0
        %581 = vst [vmem:[%s350 + $0x448] sm:$0xff] 0.0
        %582 = vst [vmem:[%s350 + $0x450] sm:$0xff] 0.0
        %583 = vst [vmem:[%s350 + $0x458] sm:$0xff] 0.0
        %584 = vst [vmem:[%s350 + $0x460] sm:$0xff] 0.0
        %585 = vst [vmem:[%s350 + $0x468] sm:$0xff] 0.0
        %586 = vst [vmem:[%s350 + $0x470] sm:$0xff] 0.0
        %587 = vst [vmem:[%s350 + $0x478] sm:$0xff] 0.0
        %588 = vst [vmem:[%s350 + $0x480] sm:$0xff] 0.0
        %589 = vst [vmem:[%s350 + $0x488] sm:$0xff] 0.0
        %590 = vst [vmem:[%s350 + $0x490] sm:$0xff] 0.0
        %591 = vst [vmem:[%s350 + $0x498] sm:$0xff] 0.0
        %592 = vst [vmem:[%s350 + $0x4a0] sm:$0xff] 0.0
        %593 = vst [vmem:[%s350 + $0x4a8] sm:$0xff] 0.0
        %594 = vst [vmem:[%s350 + $0x4b0] sm:$0xff] 0.0
        %595 = vst [vmem:[%s350 + $0x4b8] sm:$0xff] 0.0
        %596 = vst [vmem:[%s350 + $0x4c0] sm:$0xff] 0.0
        %597 = vst [vmem:[%s350 + $0x4c8] sm:$0xff] 0.0
        %598 = vst [vmem:[%s350 + $0x4d0] sm:$0xff] 0.0
        %599 = vst [vmem:[%s350 + $0x4d8] sm:$0xff] 0.0
        %600 = vst [vmem:[%s350 + $0x4e0] sm:$0xff] 0.0
        %601 = vst [vmem:[%s350 + $0x4e8] sm:$0xff] 0.0
        %602 = vst [vmem:[%s350 + $0x4f0] sm:$0xff] 0.0
        %603 = vst [vmem:[%s350 + $0x4f8] sm:$0xff] 0.0
        %604 = vst [vmem:[%s350 + $0x500] sm:$0xff] 0.0
        %605 = vst [vmem:[%s350 + $0x508] sm:$0xff] 0.0
        %606 = vst [vmem:[%s350 + $0x510] sm:$0xff] 0.0
        %607 = vst [vmem:[%s350 + $0x518] sm:$0xff] 0.0
        %608 = vst [vmem:[%s350 + $0x520] sm:$0xff] 0.0
        %609 = vst [vmem:[%s350 + $0x528] sm:$0xff] 0.0
        %610 = vst [vmem:[%s350 + $0x530] sm:$0xff] 0.0
        %611 = vst [vmem:[%s350 + $0x538] sm:$0xff] 0.0
        %612 = vst [vmem:[%s350 + $0x540] sm:$0xff] 0.0
        %613 = vst [vmem:[%s350 + $0x548] sm:$0xff] 0.0
        %614 = vst [vmem:[%s350 + $0x550] sm:$0xff] 0.0
        %615 = vst [vmem:[%s350 + $0x558] sm:$0xff] 0.0
        %616 = vst [vmem:[%s350 + $0x560] sm:$0xff] 0.0
        %617 = vst [vmem:[%s350 + $0x568] sm:$0xff] 0.0
        %618 = vst [vmem:[%s350 + $0x570] sm:$0xff] 0.0
        %619 = vst [vmem:[%s350 + $0x578] sm:$0xff] 0.0
        %620 = vst [vmem:[%s350 + $0x580] sm:$0xff] 0.0
        %621 = vst [vmem:[%s350 + $0x588] sm:$0xff] 0.0
        %622 = vst [vmem:[%s350 + $0x590] sm:$0xff] 0.0
        %623 = vst [vmem:[%s350 + $0x598] sm:$0xff] 0.0
        %624 = vst [vmem:[%s350 + $0x5a0] sm:$0xff] 0.0
        %625 = vst [vmem:[%s350 + $0x5a8] sm:$0xff] 0.0
        %626 = vst [vmem:[%s350 + $0x5b0] sm:$0xff] 0.0
        %627 = vst [vmem:[%s350 + $0x5b8] sm:$0xff] 0.0
        %628 = vst [vmem:[%s350 + $0x5c0] sm:$0xff] 0.0
        %629 = vst [vmem:[%s350 + $0x5c8] sm:$0xff] 0.0
        %630 = vst [vmem:[%s350 + $0x5d0] sm:$0xff] 0.0
        %631 = vst [vmem:[%s350 + $0x5d8] sm:$0xff] 0.0
        %632 = vst [vmem:[%s350 + $0x5e0] sm:$0xff] 0.0
        %633 = vst [vmem:[%s350 + $0x5e8] sm:$0xff] 0.0
        %634 = vst [vmem:[%s350 + $0x5f0] sm:$0xff] 0.0
        %635 = vst [vmem:[%s350 + $0x5f8] sm:$0xff] 0.0
        %636 = vst [vmem:[%s350 + $0x600] sm:$0xff] 0.0
        %637 = vst [vmem:[%s350 + $0x608] sm:$0xff] 0.0
        %638 = vst [vmem:[%s350 + $0x610] sm:$0xff] 0.0
        %639 = vst [vmem:[%s350 + $0x618] sm:$0xff] 0.0
        %640 = vst [vmem:[%s350 + $0x620] sm:$0xff] 0.0
        %641 = vst [vmem:[%s350 + $0x628] sm:$0xff] 0.0
        %642 = vst [vmem:[%s350 + $0x630] sm:$0xff] 0.0
        %643 = vst [vmem:[%s350 + $0x638] sm:$0xff] 0.0
        %644 = vst [vmem:[%s350 + $0x640] sm:$0xff] 0.0
        %645 = vst [vmem:[%s350 + $0x648] sm:$0xff] 0.0
        %646 = vst [vmem:[%s350 + $0x650] sm:$0xff] 0.0
        %647 = vst [vmem:[%s350 + $0x658] sm:$0xff] 0.0
        %648 = vst [vmem:[%s350 + $0x660] sm:$0xff] 0.0
        %649 = vst [vmem:[%s350 + $0x668] sm:$0xff] 0.0
        %650 = vst [vmem:[%s350 + $0x670] sm:$0xff] 0.0
        %651 = vst [vmem:[%s350 + $0x678] sm:$0xff] 0.0
        %652 = vst [vmem:[%s350 + $0x680] sm:$0xff] 0.0
        %653 = vst [vmem:[%s350 + $0x688] sm:$0xff] 0.0
        %654 = vst [vmem:[%s350 + $0x690] sm:$0xff] 0.0
        %655 = vst [vmem:[%s350 + $0x698] sm:$0xff] 0.0
        %656 = vst [vmem:[%s350 + $0x6a0] sm:$0xff] 0.0
        %657 = vst [vmem:[%s350 + $0x6a8] sm:$0xff] 0.0
        %658 = vst [vmem:[%s350 + $0x6b0] sm:$0xff] 0.0
        %659 = vst [vmem:[%s350 + $0x6b8] sm:$0xff] 0.0
        %660 = vst [vmem:[%s350 + $0x6c0] sm:$0xff] 0.0
        %661 = vst [vmem:[%s350 + $0x6c8] sm:$0xff] 0.0
        %662 = vst [vmem:[%s350 + $0x6d0] sm:$0xff] 0.0
        %663 = vst [vmem:[%s350 + $0x6d8] sm:$0xff] 0.0
        %664 = vst [vmem:[%s350 + $0x6e0] sm:$0xff] 0.0
        %665 = vst [vmem:[%s350 + $0x6e8] sm:$0xff] 0.0
        %666 = vst [vmem:[%s350 + $0x6f0] sm:$0xff] 0.0
        %667 = vst [vmem:[%s350 + $0x6f8] sm:$0xff] 0.0
        %668 = vst [vmem:[%s350 + $0x700] sm:$0xff] 0.0
        %669 = vst [vmem:[%s350 + $0x708] sm:$0xff] 0.0
        %670 = vst [vmem:[%s350 + $0x710] sm:$0xff] 0.0
        %671 = vst [vmem:[%s350 + $0x718] sm:$0xff] 0.0
        %672 = vst [vmem:[%s350 + $0x720] sm:$0xff] 0.0
        %673 = vst [vmem:[%s350 + $0x728] sm:$0xff] 0.0
        %674 = vst [vmem:[%s350 + $0x730] sm:$0xff] 0.0
        %675 = vst [vmem:[%s350 + $0x738] sm:$0xff] 0.0
        %676 = vst [vmem:[%s350 + $0x740] sm:$0xff] 0.0
        %677 = vst [vmem:[%s350 + $0x748] sm:$0xff] 0.0
        %678 = vst [vmem:[%s350 + $0x750] sm:$0xff] 0.0
        %679 = vst [vmem:[%s350 + $0x758] sm:$0xff] 0.0
        %680 = vst [vmem:[%s350 + $0x760] sm:$0xff] 0.0
        %681 = vst [vmem:[%s350 + $0x768] sm:$0xff] 0.0
        %682 = vst [vmem:[%s350 + $0x770] sm:$0xff] 0.0
        %683 = vst [vmem:[%s350 + $0x778] sm:$0xff] 0.0
        %684 = vst [vmem:[%s350 + $0x780] sm:$0xff] 0.0
        %685 = vst [vmem:[%s350 + $0x788] sm:$0xff] 0.0
        %686 = vst [vmem:[%s350 + $0x790] sm:$0xff] 0.0
        %687 = vst [vmem:[%s350 + $0x798] sm:$0xff] 0.0
        %688 = vst [vmem:[%s350 + $0x7a0] sm:$0xff] 0.0
        %689 = vst [vmem:[%s350 + $0x7a8] sm:$0xff] 0.0
        %690 = vst [vmem:[%s350 + $0x7b0] sm:$0xff] 0.0
        %691 = vst [vmem:[%s350 + $0x7b8] sm:$0xff] 0.0
        %692 = vst [vmem:[%s350 + $0x7c0] sm:$0xff] 0.0
        %693 = vst [vmem:[%s350 + $0x7c8] sm:$0xff] 0.0
        %694 = vst [vmem:[%s350 + $0x7d0] sm:$0xff] 0.0
        %695 = vst [vmem:[%s350 + $0x7d8] sm:$0xff] 0.0
        %696 = vst [vmem:[%s350 + $0x7e0] sm:$0xff] 0.0
        %697 = vst [vmem:[%s350 + $0x7e8] sm:$0xff] 0.0
        %698 = vst [vmem:[%s350 + $0x7f0] sm:$0xff] 0.0
        %699 = vst [vmem:[%s350 + $0x7f8] sm:$0xff] 0.0
        %700 = vst [vmem:[%s350 + $0x800] sm:$0xff] 0.0
        %701 = vst [vmem:[%s350 + $0x808] sm:$0xff] 0.0
        %702 = vst [vmem:[%s350 + $0x810] sm:$0xff] 0.0
        %703 = vst [vmem:[%s350 + $0x818] sm:$0xff] 0.0
        %704 = vst [vmem:[%s350 + $0x820] sm:$0xff] 0.0
        %705 = vst [vmem:[%s350 + $0x828] sm:$0xff] 0.0
        %706 = vst [vmem:[%s350 + $0x830] sm:$0xff] 0.0
        %707 = vst [vmem:[%s350 + $0x838] sm:$0xff] 0.0
        %708 = vst [vmem:[%s350 + $0x840] sm:$0xff] 0.0
        %709 = vst [vmem:[%s350 + $0x848] sm:$0xff] 0.0
        %710 = vst [vmem:[%s350 + $0x850] sm:$0xff] 0.0
        %711 = vst [vmem:[%s350 + $0x858] sm:$0xff] 0.0
        %712 = vst [vmem:[%s350 + $0x860] sm:$0xff] 0.0
        %713 = vst [vmem:[%s350 + $0x868] sm:$0xff] 0.0
        %714 = vst [vmem:[%s350 + $0x870] sm:$0xff] 0.0
        %715 = vst [vmem:[%s350 + $0x878] sm:$0xff] 0.0
        %716 = vst [vmem:[%s350 + $0x880] sm:$0xff] 0.0
        %717 = vst [vmem:[%s350 + $0x888] sm:$0xff] 0.0
        %718 = vst [vmem:[%s350 + $0x890] sm:$0xff] 0.0
        %719 = vst [vmem:[%s350 + $0x898] sm:$0xff] 0.0
        %720 = vst [vmem:[%s350 + $0x8a0] sm:$0xff] 0.0
        %721 = vst [vmem:[%s350 + $0x8a8] sm:$0xff] 0.0
        %722 = vst [vmem:[%s350 + $0x8b0] sm:$0xff] 0.0
        %723 = vst [vmem:[%s350 + $0x8b8] sm:$0xff] 0.0
        %724 = vst [vmem:[%s350 + $0x8c0] sm:$0xff] 0.0
        %725 = vst [vmem:[%s350 + $0x8c8] sm:$0xff] 0.0
        %726 = vst [vmem:[%s350 + $0x8d0] sm:$0xff] 0.0
        %727 = vst [vmem:[%s350 + $0x8d8] sm:$0xff] 0.0
        %728 = vst [vmem:[%s350 + $0x8e0] sm:$0xff] 0.0
        %729 = vst [vmem:[%s350 + $0x8e8] sm:$0xff] 0.0
        %730 = vst [vmem:[%s350 + $0x8f0] sm:$0xff] 0.0
        %731 = vst [vmem:[%s350 + $0x8f8] sm:$0xff] 0.0
        %732 = vst [vmem:[%s350 + $0x900] sm:$0xff] 0.0
        %733 = vst [vmem:[%s350 + $0x908] sm:$0xff] 0.0
        %734 = vst [vmem:[%s350 + $0x910] sm:$0xff] 0.0
        %735 = vst [vmem:[%s350 + $0x918] sm:$0xff] 0.0
        %736 = vst [vmem:[%s350 + $0x920] sm:$0xff] 0.0
        %737 = vst [vmem:[%s350 + $0x928] sm:$0xff] 0.0
        %738 = vst [vmem:[%s350 + $0x930] sm:$0xff] 0.0
        %739 = vst [vmem:[%s350 + $0x938] sm:$0xff] 0.0
        %740 = vst [vmem:[%s350 + $0x940] sm:$0xff] 0.0
        %741 = vst [vmem:[%s350 + $0x948] sm:$0xff] 0.0
        %742 = vst [vmem:[%s350 + $0x950] sm:$0xff] 0.0
        %743 = vst [vmem:[%s350 + $0x958] sm:$0xff] 0.0
        %744 = vst [vmem:[%s350 + $0x960] sm:$0xff] 0.0
        %745 = vst [vmem:[%s350 + $0x968] sm:$0xff] 0.0
        %746 = vst [vmem:[%s350 + $0x970] sm:$0xff] 0.0
        %747 = vst [vmem:[%s350 + $0x978] sm:$0xff] 0.0
        %748 = vst [vmem:[%s350 + $0x980] sm:$0xff] 0.0
        %749 = vst [vmem:[%s350 + $0x988] sm:$0xff] 0.0
        %750 = vst [vmem:[%s350 + $0x990] sm:$0xff] 0.0
        %751 = vst [vmem:[%s350 + $0x998] sm:$0xff] 0.0
        %752 = vst [vmem:[%s350 + $0x9a0] sm:$0xff] 0.0
        %753 = vst [vmem:[%s350 + $0x9a8] sm:$0xff] 0.0
        %754 = vst [vmem:[%s350 + $0x9b0] sm:$0xff] 0.0
        %755 = vst [vmem:[%s350 + $0x9b8] sm:$0xff] 0.0
        %756 = vst [vmem:[%s350 + $0x9c0] sm:$0xff] 0.0
        %757 = vst [vmem:[%s350 + $0x9c8] sm:$0xff] 0.0
        %758 = vst [vmem:[%s350 + $0x9d0] sm:$0xff] 0.0
        %759 = vst [vmem:[%s350 + $0x9d8] sm:$0xff] 0.0
        %760 = vst [vmem:[%s350 + $0x9e0] sm:$0xff] 0.0
        %761 = vst [vmem:[%s350 + $0x9e8] sm:$0xff] 0.0
        %762 = vst [vmem:[%s350 + $0x9f0] sm:$0xff] 0.0
        %763 = vst [vmem:[%s350 + $0x9f8] sm:$0xff] 0.0
        %764 = vst [vmem:[%s350 + $0xa00] sm:$0xff] 0.0
        %765 = vst [vmem:[%s350 + $0xa08] sm:$0xff] 0.0
        %766 = vst [vmem:[%s350 + $0xa10] sm:$0xff] 0.0
        %767 = vst [vmem:[%s350 + $0xa18] sm:$0xff] 0.0
        %768 = vst [vmem:[%s350 + $0xa20] sm:$0xff] 0.0
        %769 = vst [vmem:[%s350 + $0xa28] sm:$0xff] 0.0
        %770 = vst [vmem:[%s350 + $0xa30] sm:$0xff] 0.0
        %771 = vst [vmem:[%s350 + $0xa38] sm:$0xff] 0.0
        %772 = vst [vmem:[%s350 + $0xa40] sm:$0xff] 0.0
        %773 = vst [vmem:[%s350 + $0xa48] sm:$0xff] 0.0
        %774 = vst [vmem:[%s350 + $0xa50] sm:$0xff] 0.0
        %775 = vst [vmem:[%s350 + $0xa58] sm:$0xff] 0.0
        %776 = vst [vmem:[%s350 + $0xa60] sm:$0xff] 0.0
        %777 = vst [vmem:[%s350 + $0xa68] sm:$0xff] 0.0
        %778 = vst [vmem:[%s350 + $0xa70] sm:$0xff] 0.0
        %779 = vst [vmem:[%s350 + $0xa78] sm:$0xff] 0.0
        %780 = vst [vmem:[%s350 + $0xa80] sm:$0xff] 0.0
        %781 = vst [vmem:[%s350 + $0xa88] sm:$0xff] 0.0
        %782 = vst [vmem:[%s350 + $0xa90] sm:$0xff] 0.0
        %783 = vst [vmem:[%s350 + $0xa98] sm:$0xff] 0.0
        %784 = vst [vmem:[%s350 + $0xaa0] sm:$0xff] 0.0
        %785 = vst [vmem:[%s350 + $0xaa8] sm:$0xff] 0.0
        %786 = vst [vmem:[%s350 + $0xab0] sm:$0xff] 0.0
        %787 = vst [vmem:[%s350 + $0xab8] sm:$0xff] 0.0
        %788 = vst [vmem:[%s350 + $0xac0] sm:$0xff] 0.0
        %789 = vst [vmem:[%s350 + $0xac8] sm:$0xff] 0.0
        %790 = vst [vmem:[%s350 + $0xad0] sm:$0xff] 0.0
        %791 = vst [vmem:[%s350 + $0xad8] sm:$0xff] 0.0
        %792 = vst [vmem:[%s350 + $0xae0] sm:$0xff] 0.0
        %793 = vst [vmem:[%s350 + $0xae8] sm:$0xff] 0.0
        %794 = vst [vmem:[%s350 + $0xaf0] sm:$0xff] 0.0
        %795 = vst [vmem:[%s350 + $0xaf8] sm:$0xff] 0.0
        %796 = vst [vmem:[%s350 + $0xb00] sm:$0xff] 0.0
        %797 = vst [vmem:[%s350 + $0xb08] sm:$0xff] 0.0
        %798 = vst [vmem:[%s350 + $0xb10] sm:$0xff] 0.0
        %799 = vst [vmem:[%s350 + $0xb18] sm:$0xff] 0.0
        %800 = vst [vmem:[%s350 + $0xb20] sm:$0xff] 0.0
        %801 = vst [vmem:[%s350 + $0xb28] sm:$0xff] 0.0
        %802 = vst [vmem:[%s350 + $0xb30] sm:$0xff] 0.0
        %803 = vst [vmem:[%s350 + $0xb38] sm:$0xff] 0.0
        %804 = vst [vmem:[%s350 + $0xb40] sm:$0xff] 0.0
        %805 = vst [vmem:[%s350 + $0xb48] sm:$0xff] 0.0
        %806 = vst [vmem:[%s350 + $0xb50] sm:$0xff] 0.0
        %807 = vst [vmem:[%s350 + $0xb58] sm:$0xff] 0.0
        %808 = vst [vmem:[%s350 + $0xb60] sm:$0xff] 0.0
        %809 = vst [vmem:[%s350 + $0xb68] sm:$0xff] 0.0
        %810 = vst [vmem:[%s350 + $0xb70] sm:$0xff] 0.0
        %811 = vst [vmem:[%s350 + $0xb78] sm:$0xff] 0.0
        %812 = vst [vmem:[%s350 + $0xb80] sm:$0xff] 0.0
        %813 = vst [vmem:[%s350 + $0xb88] sm:$0xff] 0.0
        %814 = vst [vmem:[%s350 + $0xb90] sm:$0xff] 0.0
        %815 = vst [vmem:[%s350 + $0xb98] sm:$0xff] 0.0
        %816 = vst [vmem:[%s350 + $0xba0] sm:$0xff] 0.0
        %817 = vst [vmem:[%s350 + $0xba8] sm:$0xff] 0.0
        %818 = vst [vmem:[%s350 + $0xbb0] sm:$0xff] 0.0
        %819 = vst [vmem:[%s350 + $0xbb8] sm:$0xff] 0.0
        %820 = vst [vmem:[%s350 + $0xbc0] sm:$0xff] 0.0
        %821 = vst [vmem:[%s350 + $0xbc8] sm:$0xff] 0.0
        %822 = vst [vmem:[%s350 + $0xbd0] sm:$0xff] 0.0
        %823 = vst [vmem:[%s350 + $0xbd8] sm:$0xff] 0.0
        %824 = vst [vmem:[%s350 + $0xbe0] sm:$0xff] 0.0
        %825 = vst [vmem:[%s350 + $0xbe8] sm:$0xff] 0.0
        %826 = vst [vmem:[%s350 + $0xbf0] sm:$0xff] 0.0
        %827 = vst [vmem:[%s350 + $0xbf8] sm:$0xff] 0.0
        %828 = vst [vmem:[%s350 + $0xc00] sm:$0xff] 0.0
        %829 = vst [vmem:[%s350 + $0xc08] sm:$0xff] 0.0
        %830 = vst [vmem:[%s350 + $0xc10] sm:$0xff] 0.0
        %831 = vst [vmem:[%s350 + $0xc18] sm:$0xff] 0.0
        %832 = vst [vmem:[%s350 + $0xc20] sm:$0xff] 0.0
        %833 = vst [vmem:[%s350 + $0xc28] sm:$0xff] 0.0
        %834 = vst [vmem:[%s350 + $0xc30] sm:$0xff] 0.0
        %835 = vst [vmem:[%s350 + $0xc38] sm:$0xff] 0.0
        %836 = vst [vmem:[%s350 + $0xc40] sm:$0xff] 0.0
        %837 = vst [vmem:[%s350 + $0xc48] sm:$0xff] 0.0
        %838 = vst [vmem:[%s350 + $0xc50] sm:$0xff] 0.0
        %839 = vst [vmem:[%s350 + $0xc58] sm:$0xff] 0.0
        %840 = vst [vmem:[%s350 + $0xc60] sm:$0xff] 0.0
        %841 = vst [vmem:[%s350 + $0xc68] sm:$0xff] 0.0
        %842 = vst [vmem:[%s350 + $0xc70] sm:$0xff] 0.0
        %843 = vst [vmem:[%s350 + $0xc78] sm:$0xff] 0.0
        %844 = vst [vmem:[%s350 + $0xc80] sm:$0xff] 0.0
        %845 = vst [vmem:[%s350 + $0xc88] sm:$0xff] 0.0
        %846 = vst [vmem:[%s350 + $0xc90] sm:$0xff] 0.0
        %847 = vst [vmem:[%s350 + $0xc98] sm:$0xff] 0.0
        %848 = vst [vmem:[%s350 + $0xca0] sm:$0xff] 0.0
        %849 = vst [vmem:[%s350 + $0xca8] sm:$0xff] 0.0
        %850 = vst [vmem:[%s350 + $0xcb0] sm:$0xff] 0.0
        %851 = vst [vmem:[%s350 + $0xcb8] sm:$0xff] 0.0
        %852 = vst [vmem:[%s350 + $0xcc0] sm:$0xff] 0.0
        %853 = vst [vmem:[%s350 + $0xcc8] sm:$0xff] 0.0
        %854 = vst [vmem:[%s350 + $0xcd0] sm:$0xff] 0.0
        %855 = vst [vmem:[%s350 + $0xcd8] sm:$0xff] 0.0
        %856 = vst [vmem:[%s350 + $0xce0] sm:$0xff] 0.0
        %857 = vst [vmem:[%s350 + $0xce8] sm:$0xff] 0.0
        %858 = vst [vmem:[%s350 + $0xcf0] sm:$0xff] 0.0
        %859 = vst [vmem:[%s350 + $0xcf8] sm:$0xff] 0.0
        %860 = vst [vmem:[%s350 + $0xd00] sm:$0xff] 0.0
        %861 = vst [vmem:[%s350 + $0xd08] sm:$0xff] 0.0
        %862 = vst [vmem:[%s350 + $0xd10] sm:$0xff] 0.0
        %863 = vst [vmem:[%s350 + $0xd18] sm:$0xff] 0.0
        %864 = vst [vmem:[%s350 + $0xd20] sm:$0xff] 0.0
        %865 = vst [vmem:[%s350 + $0xd28] sm:$0xff] 0.0
        %866 = vst [vmem:[%s350 + $0xd30] sm:$0xff] 0.0
        %867 = vst [vmem:[%s350 + $0xd38] sm:$0xff] 0.0
        %868 = vst [vmem:[%s350 + $0xd40] sm:$0xff] 0.0
        %869 = vst [vmem:[%s350 + $0xd48] sm:$0xff] 0.0
        %870 = vst [vmem:[%s350 + $0xd50] sm:$0xff] 0.0
        %871 = vst [vmem:[%s350 + $0xd58] sm:$0xff] 0.0
        %872 = vst [vmem:[%s350 + $0xd60] sm:$0xff] 0.0
        %873 = vst [vmem:[%s350 + $0xd68] sm:$0xff] 0.0
        %874 = vst [vmem:[%s350 + $0xd70] sm:$0xff] 0.0
        %875 = vst [vmem:[%s350 + $0xd78] sm:$0xff] 0.0
        %876 = vst [vmem:[%s350 + $0xd80] sm:$0xff] 0.0
        %877 = vst [vmem:[%s350 + $0xd88] sm:$0xff] 0.0
        %878 = vst [vmem:[%s350 + $0xd90] sm:$0xff] 0.0
        %879 = vst [vmem:[%s350 + $0xd98] sm:$0xff] 0.0
        %880 = vst [vmem:[%s350 + $0xda0] sm:$0xff] 0.0
        %881 = vst [vmem:[%s350 + $0xda8] sm:$0xff] 0.0
        %882 = vst [vmem:[%s350 + $0xdb0] sm:$0xff] 0.0
        %883 = vst [vmem:[%s350 + $0xdb8] sm:$0xff] 0.0
        %884 = vst [vmem:[%s350 + $0xdc0] sm:$0xff] 0.0
        %885 = vst [vmem:[%s350 + $0xdc8] sm:$0xff] 0.0
        %886 = vst [vmem:[%s350 + $0xdd0] sm:$0xff] 0.0
        %887 = vst [vmem:[%s350 + $0xdd8] sm:$0xff] 0.0
        %888 = vst [vmem:[%s350 + $0xde0] sm:$0xff] 0.0
        %889 = vst [vmem:[%s350 + $0xde8] sm:$0xff] 0.0
        %890 = vst [vmem:[%s350 + $0xdf0] sm:$0xff] 0.0
        %891 = vst [vmem:[%s350 + $0xdf8] sm:$0xff] 0.0
        %892 = vst [vmem:[%s350 + $0xe00] sm:$0xff] 0.0
        %893 = vst [vmem:[%s350 + $0xe08] sm:$0xff] 0.0
        %894 = vst [vmem:[%s350 + $0xe10] sm:$0xff] 0.0
        %895 = vst [vmem:[%s350 + $0xe18] sm:$0xff] 0.0
        %896 = vst [vmem:[%s350 + $0xe20] sm:$0xff] 0.0
        %897 = vst [vmem:[%s350 + $0xe28] sm:$0xff] 0.0
        %898 = vst [vmem:[%s350 + $0xe30] sm:$0xff] 0.0
        %899 = vst [vmem:[%s350 + $0xe38] sm:$0xff] 0.0
        %900 = vst [vmem:[%s350 + $0xe40] sm:$0xff] 0.0
        %901 = vst [vmem:[%s350 + $0xe48] sm:$0xff] 0.0
        %902 = vst [vmem:[%s350 + $0xe50] sm:$0xff] 0.0
        %903 = vst [vmem:[%s350 + $0xe58] sm:$0xff] 0.0
        %904 = vst [vmem:[%s350 + $0xe60] sm:$0xff] 0.0
        %905 = vst [vmem:[%s350 + $0xe68] sm:$0xff] 0.0
        %906 = vst [vmem:[%s350 + $0xe70] sm:$0xff] 0.0
        %907 = vst [vmem:[%s350 + $0xe78] sm:$0xff] 0.0
        %908 = vst [vmem:[%s350 + $0xe80] sm:$0xff] 0.0
        %909 = vst [vmem:[%s350 + $0xe88] sm:$0xff] 0.0
        %910 = vst [vmem:[%s350 + $0xe90] sm:$0xff] 0.0
        %911 = vst [vmem:[%s350 + $0xe98] sm:$0xff] 0.0
        %912 = vst [vmem:[%s350 + $0xea0] sm:$0xff] 0.0
        %913 = vst [vmem:[%s350 + $0xea8] sm:$0xff] 0.0
        %914 = vst [vmem:[%s350 + $0xeb0] sm:$0xff] 0.0
        %915 = vst [vmem:[%s350 + $0xeb8] sm:$0xff] 0.0
        %916 = vst [vmem:[%s350 + $0xec0] sm:$0xff] 0.0
        %917 = vst [vmem:[%s350 + $0xec8] sm:$0xff] 0.0
        %918 = vst [vmem:[%s350 + $0xed0] sm:$0xff] 0.0
        %919 = vst [vmem:[%s350 + $0xed8] sm:$0xff] 0.0
        %920 = vst [vmem:[%s350 + $0xee0] sm:$0xff] 0.0
        %921 = vst [vmem:[%s350 + $0xee8] sm:$0xff] 0.0
        %922 = vst [vmem:[%s350 + $0xef0] sm:$0xff] 0.0
        %923 = vst [vmem:[%s350 + $0xef8] sm:$0xff] 0.0
        %924 = vst [vmem:[%s350 + $0xf00] sm:$0xff] 0.0
        %925 = vst [vmem:[%s350 + $0xf08] sm:$0xff] 0.0
        %926 = vst [vmem:[%s350 + $0xf10] sm:$0xff] 0.0
        %927 = vst [vmem:[%s350 + $0xf18] sm:$0xff] 0.0
        %928 = vst [vmem:[%s350 + $0xf20] sm:$0xff] 0.0
        %929 = vst [vmem:[%s350 + $0xf28] sm:$0xff] 0.0
        %930 = vst [vmem:[%s350 + $0xf30] sm:$0xff] 0.0
        %931 = vst [vmem:[%s350 + $0xf38] sm:$0xff] 0.0
        %932 = vst [vmem:[%s350 + $0xf40] sm:$0xff] 0.0
        %933 = vst [vmem:[%s350 + $0xf48] sm:$0xff] 0.0
        %934 = vst [vmem:[%s350 + $0xf50] sm:$0xff] 0.0
        %935 = vst [vmem:[%s350 + $0xf58] sm:$0xff] 0.0
        %936 = vst [vmem:[%s350 + $0xf60] sm:$0xff] 0.0
        %937 = vst [vmem:[%s350 + $0xf68] sm:$0xff] 0.0
        %938 = vst [vmem:[%s350 + $0xf70] sm:$0xff] 0.0
        %939 = vst [vmem:[%s350 + $0xf78] sm:$0xff] 0.0
        %940 = vst [vmem:[%s350 + $0xf80] sm:$0xff] 0.0
        %941 = vst [vmem:[%s350 + $0xf88] sm:$0xff] 0.0
        %942 = vst [vmem:[%s350 + $0xf90] sm:$0xff] 0.0
        %943 = vst [vmem:[%s350 + $0xf98] sm:$0xff] 0.0
        %944 = vst [vmem:[%s350 + $0xfa0] sm:$0xff] 0.0
        %945 = vst [vmem:[%s350 + $0xfa8] sm:$0xff] 0.0
        %946 = vst [vmem:[%s350 + $0xfb0] sm:$0xff] 0.0
        %947 = vst [vmem:[%s350 + $0xfb8] sm:$0xff] 0.0
        %948 = vst [vmem:[%s350 + $0xfc0] sm:$0xff] 0.0
        %949 = vst [vmem:[%s350 + $0xfc8] sm:$0xff] 0.0
        %950 = vst [vmem:[%s350 + $0xfd0] sm:$0xff] 0.0
        %951 = vst [vmem:[%s350 + $0xfd8] sm:$0xff] 0.0
        %952 = vst [vmem:[%s350 + $0xfe0] sm:$0xff] 0.0
        %953 = vst [vmem:[%s350 + $0xfe8] sm:$0xff] 0.0
        %954 = vst [vmem:[%s350 + $0xff0] sm:$0xff] 0.0
        %955 = vst [vmem:[%s350 + $0xff8] sm:$0xff] 0.0
        %956 = vst [vmem:[%s357] sm:$0xff] 0.0
        %957 = vst [vmem:[%s357 + $0x8] sm:$0xff] 0.0
        %958 = vst [vmem:[%s357 + $0x10] sm:$0xff] 0.0
        %959 = vst [vmem:[%s357 + $0x18] sm:$0xff] 0.0
        %960 = vst [vmem:[%s357 + $0x20] sm:$0xff] 0.0
        %961 = vst [vmem:[%s357 + $0x28] sm:$0xff] 0.0
        %962 = vst [vmem:[%s357 + $0x30] sm:$0xff] 0.0
        %963 = vst [vmem:[%s357 + $0x38] sm:$0xff] 0.0
        %964 = vst [vmem:[%s357 + $0x40] sm:$0xff] 0.0
        %965 = vst [vmem:[%s357 + $0x48] sm:$0xff] 0.0
        %966 = vst [vmem:[%s357 + $0x50] sm:$0xff] 0.0
        %967 = vst [vmem:[%s357 + $0x58] sm:$0xff] 0.0
        %968 = vst [vmem:[%s357 + $0x60] sm:$0xff] 0.0
        %969 = vst [vmem:[%s357 + $0x68] sm:$0xff] 0.0
        %970 = vst [vmem:[%s357 + $0x70] sm:$0xff] 0.0
        %971 = vst [vmem:[%s357 + $0x78] sm:$0xff] 0.0
        %972 = vst [vmem:[%s357 + $0x80] sm:$0xff] 0.0
        %973 = vst [vmem:[%s357 + $0x88] sm:$0xff] 0.0
        %974 = vst [vmem:[%s357 + $0x90] sm:$0xff] 0.0
        %975 = vst [vmem:[%s357 + $0x98] sm:$0xff] 0.0
        %976 = vst [vmem:[%s357 + $0xa0] sm:$0xff] 0.0
        %977 = vst [vmem:[%s357 + $0xa8] sm:$0xff] 0.0
        %978 = vst [vmem:[%s357 + $0xb0] sm:$0xff] 0.0
        %979 = vst [vmem:[%s357 + $0xb8] sm:$0xff] 0.0
        %980 = vst [vmem:[%s357 + $0xc0] sm:$0xff] 0.0
        %981 = vst [vmem:[%s357 + $0xc8] sm:$0xff] 0.0
        %982 = vst [vmem:[%s357 + $0xd0] sm:$0xff] 0.0
        %983 = vst [vmem:[%s357 + $0xd8] sm:$0xff] 0.0
        %984 = vst [vmem:[%s357 + $0xe0] sm:$0xff] 0.0
        %985 = vst [vmem:[%s357 + $0xe8] sm:$0xff] 0.0
        %986 = vst [vmem:[%s357 + $0xf0] sm:$0xff] 0.0
        %987 = vst [vmem:[%s357 + $0xf8] sm:$0xff] 0.0
        %988 = vst [vmem:[%s357 + $0x100] sm:$0xff] 0.0
        %989 = vst [vmem:[%s357 + $0x108] sm:$0xff] 0.0
        %990 = vst [vmem:[%s357 + $0x110] sm:$0xff] 0.0
        %991 = vst [vmem:[%s357 + $0x118] sm:$0xff] 0.0
        %992 = vst [vmem:[%s357 + $0x120] sm:$0xff] 0.0
        %993 = vst [vmem:[%s357 + $0x128] sm:$0xff] 0.0
        %994 = vst [vmem:[%s357 + $0x130] sm:$0xff] 0.0
        %995 = vst [vmem:[%s357 + $0x138] sm:$0xff] 0.0
        %996 = vst [vmem:[%s357 + $0x140] sm:$0xff] 0.0
        %997 = vst [vmem:[%s357 + $0x148] sm:$0xff] 0.0
        %998 = vst [vmem:[%s357 + $0x150] sm:$0xff] 0.0
        %999 = vst [vmem:[%s357 + $0x158] sm:$0xff] 0.0
        %1000 = vst [vmem:[%s357 + $0x160] sm:$0xff] 0.0
        %1001 = vst [vmem:[%s357 + $0x168] sm:$0xff] 0.0
        %1002 = vst [vmem:[%s357 + $0x170] sm:$0xff] 0.0
        %1003 = vst [vmem:[%s357 + $0x178] sm:$0xff] 0.0
        %1004 = vst [vmem:[%s357 + $0x180] sm:$0xff] 0.0
        %1005 = vst [vmem:[%s357 + $0x188] sm:$0xff] 0.0
        %1006 = vst [vmem:[%s357 + $0x190] sm:$0xff] 0.0
        %1007 = vst [vmem:[%s357 + $0x198] sm:$0xff] 0.0
        %1008 = vst [vmem:[%s357 + $0x1a0] sm:$0xff] 0.0
        %1009 = vst [vmem:[%s357 + $0x1a8] sm:$0xff] 0.0
        %1010 = vst [vmem:[%s357 + $0x1b0] sm:$0xff] 0.0
        %1011 = vst [vmem:[%s357 + $0x1b8] sm:$0xff] 0.0
        %1012 = vst [vmem:[%s357 + $0x1c0] sm:$0xff] 0.0
        %1013 = vst [vmem:[%s357 + $0x1c8] sm:$0xff] 0.0
        %1014 = vst [vmem:[%s357 + $0x1d0] sm:$0xff] 0.0
        %1015 = vst [vmem:[%s357 + $0x1d8] sm:$0xff] 0.0
        %1016 = vst [vmem:[%s357 + $0x1e0] sm:$0xff] 0.0
        %1017 = vst [vmem:[%s357 + $0x1e8] sm:$0xff] 0.0
        %1018 = vst [vmem:[%s357 + $0x1f0] sm:$0xff] 0.0
        %1019 = vst [vmem:[%s357 + $0x1f8] sm:$0xff] 0.0
        %1020 = vst [vmem:[%s357 + $0x200] sm:$0xff] 0.0
        %1021 = vst [vmem:[%s357 + $0x208] sm:$0xff] 0.0
        %1022 = vst [vmem:[%s357 + $0x210] sm:$0xff] 0.0
        %1023 = vst [vmem:[%s357 + $0x218] sm:$0xff] 0.0
        %1024 = vst [vmem:[%s357 + $0x220] sm:$0xff] 0.0
        %1025 = vst [vmem:[%s357 + $0x228] sm:$0xff] 0.0
        %1026 = vst [vmem:[%s357 + $0x230] sm:$0xff] 0.0
        %1027 = vst [vmem:[%s357 + $0x238] sm:$0xff] 0.0
        %1028 = vst [vmem:[%s357 + $0x240] sm:$0xff] 0.0
        %1029 = vst [vmem:[%s357 + $0x248] sm:$0xff] 0.0
        %1030 = vst [vmem:[%s357 + $0x250] sm:$0xff] 0.0
        %1031 = vst [vmem:[%s357 + $0x258] sm:$0xff] 0.0
        %1032 = vst [vmem:[%s357 + $0x260] sm:$0xff] 0.0
        %1033 = vst [vmem:[%s357 + $0x268] sm:$0xff] 0.0
        %1034 = vst [vmem:[%s357 + $0x270] sm:$0xff] 0.0
        %1035 = vst [vmem:[%s357 + $0x278] sm:$0xff] 0.0
        %1036 = vst [vmem:[%s357 + $0x280] sm:$0xff] 0.0
        %1037 = vst [vmem:[%s357 + $0x288] sm:$0xff] 0.0
        %1038 = vst [vmem:[%s357 + $0x290] sm:$0xff] 0.0
        %1039 = vst [vmem:[%s357 + $0x298] sm:$0xff] 0.0
        %1040 = vst [vmem:[%s357 + $0x2a0] sm:$0xff] 0.0
        %1041 = vst [vmem:[%s357 + $0x2a8] sm:$0xff] 0.0
        %1042 = vst [vmem:[%s357 + $0x2b0] sm:$0xff] 0.0
        %1043 = vst [vmem:[%s357 + $0x2b8] sm:$0xff] 0.0
        %1044 = vst [vmem:[%s357 + $0x2c0] sm:$0xff] 0.0
        %1045 = vst [vmem:[%s357 + $0x2c8] sm:$0xff] 0.0
        %1046 = vst [vmem:[%s357 + $0x2d0] sm:$0xff] 0.0
        %1047 = vst [vmem:[%s357 + $0x2d8] sm:$0xff] 0.0
        %1048 = vst [vmem:[%s357 + $0x2e0] sm:$0xff] 0.0
        %1049 = vst [vmem:[%s357 + $0x2e8] sm:$0xff] 0.0
        %1050 = vst [vmem:[%s357 + $0x2f0] sm:$0xff] 0.0
        %1051 = vst [vmem:[%s357 + $0x2f8] sm:$0xff] 0.0
        %1052 = vst [vmem:[%s357 + $0x300] sm:$0xff] 0.0
        %1053 = vst [vmem:[%s357 + $0x308] sm:$0xff] 0.0
        %1054 = vst [vmem:[%s357 + $0x310] sm:$0xff] 0.0
        %1055 = vst [vmem:[%s357 + $0x318] sm:$0xff] 0.0
        %1056 = vst [vmem:[%s357 + $0x320] sm:$0xff] 0.0
        %1057 = vst [vmem:[%s357 + $0x328] sm:$0xff] 0.0
        %1058 = vst [vmem:[%s357 + $0x330] sm:$0xff] 0.0
        %1059 = vst [vmem:[%s357 + $0x338] sm:$0xff] 0.0
        %1060 = vst [vmem:[%s357 + $0x340] sm:$0xff] 0.0
        %1061 = vst [vmem:[%s357 + $0x348] sm:$0xff] 0.0
        %1062 = vst [vmem:[%s357 + $0x350] sm:$0xff] 0.0
        %1063 = vst [vmem:[%s357 + $0x358] sm:$0xff] 0.0
        %1064 = vst [vmem:[%s357 + $0x360] sm:$0xff] 0.0
        %1065 = vst [vmem:[%s357 + $0x368] sm:$0xff] 0.0
        %1066 = vst [vmem:[%s357 + $0x370] sm:$0xff] 0.0
        %1067 = vst [vmem:[%s357 + $0x378] sm:$0xff] 0.0
        %1068 = vst [vmem:[%s357 + $0x380] sm:$0xff] 0.0
        %1069 = vst [vmem:[%s357 + $0x388] sm:$0xff] 0.0
        %1070 = vst [vmem:[%s357 + $0x390] sm:$0xff] 0.0
        %1071 = vst [vmem:[%s357 + $0x398] sm:$0xff] 0.0
        %1072 = vst [vmem:[%s357 + $0x3a0] sm:$0xff] 0.0
        %1073 = vst [vmem:[%s357 + $0x3a8] sm:$0xff] 0.0
        %1074 = vst [vmem:[%s357 + $0x3b0] sm:$0xff] 0.0
        %1075 = vst [vmem:[%s357 + $0x3b8] sm:$0xff] 0.0
        %1076 = vst [vmem:[%s357 + $0x3c0] sm:$0xff] 0.0
        %1077 = vst [vmem:[%s357 + $0x3c8] sm:$0xff] 0.0
        %1078 = vst [vmem:[%s357 + $0x3d0] sm:$0xff] 0.0
        %1079 = vst [vmem:[%s357 + $0x3d8] sm:$0xff] 0.0
        %1080 = vst [vmem:[%s357 + $0x3e0] sm:$0xff] 0.0
        %1081 = vst [vmem:[%s357 + $0x3e8] sm:$0xff] 0.0
        %1082 = vst [vmem:[%s357 + $0x3f0] sm:$0xff] 0.0
        %1083 = vst [vmem:[%s357 + $0x3f8] sm:$0xff] 0.0
        %1084 = vst [vmem:[%s357 + $0x400] sm:$0xff] 0.0
        %1085 = vst [vmem:[%s357 + $0x408] sm:$0xff] 0.0
        %1086 = vst [vmem:[%s357 + $0x410] sm:$0xff] 0.0
        %1087 = vst [vmem:[%s357 + $0x418] sm:$0xff] 0.0
        %1088 = vst [vmem:[%s357 + $0x420] sm:$0xff] 0.0
        %1089 = vst [vmem:[%s357 + $0x428] sm:$0xff] 0.0
        %1090 = vst [vmem:[%s357 + $0x430] sm:$0xff] 0.0
        %1091 = vst [vmem:[%s357 + $0x438] sm:$0xff] 0.0
        %1092 = vst [vmem:[%s357 + $0x440] sm:$0xff] 0.0
        %1093 = vst [vmem:[%s357 + $0x448] sm:$0xff] 0.0
        %1094 = vst [vmem:[%s357 + $0x450] sm:$0xff] 0.0
        %1095 = vst [vmem:[%s357 + $0x458] sm:$0xff] 0.0
        %1096 = vst [vmem:[%s357 + $0x460] sm:$0xff] 0.0
        %1097 = vst [vmem:[%s357 + $0x468] sm:$0xff] 0.0
        %1098 = vst [vmem:[%s357 + $0x470] sm:$0xff] 0.0
        %1099 = vst [vmem:[%s357 + $0x478] sm:$0xff] 0.0
        %1100 = vst [vmem:[%s357 + $0x480] sm:$0xff] 0.0
        %1101 = vst [vmem:[%s357 + $0x488] sm:$0xff] 0.0
        %1102 = vst [vmem:[%s357 + $0x490] sm:$0xff] 0.0
        %1103 = vst [vmem:[%s357 + $0x498] sm:$0xff] 0.0
        %1104 = vst [vmem:[%s357 + $0x4a0] sm:$0xff] 0.0
        %1105 = vst [vmem:[%s357 + $0x4a8] sm:$0xff] 0.0
        %1106 = vst [vmem:[%s357 + $0x4b0] sm:$0xff] 0.0
        %1107 = vst [vmem:[%s357 + $0x4b8] sm:$0xff] 0.0
        %1108 = vst [vmem:[%s357 + $0x4c0] sm:$0xff] 0.0
        %1109 = vst [vmem:[%s357 + $0x4c8] sm:$0xff] 0.0
        %1110 = vst [vmem:[%s357 + $0x4d0] sm:$0xff] 0.0
        %1111 = vst [vmem:[%s357 + $0x4d8] sm:$0xff] 0.0
        %1112 = vst [vmem:[%s357 + $0x4e0] sm:$0xff] 0.0
        %1113 = vst [vmem:[%s357 + $0x4e8] sm:$0xff] 0.0
        %1114 = vst [vmem:[%s357 + $0x4f0] sm:$0xff] 0.0
        %1115 = vst [vmem:[%s357 + $0x4f8] sm:$0xff] 0.0
        %1116 = vst [vmem:[%s357 + $0x500] sm:$0xff] 0.0
        %1117 = vst [vmem:[%s357 + $0x508] sm:$0xff] 0.0
        %1118 = vst [vmem:[%s357 + $0x510] sm:$0xff] 0.0
        %1119 = vst [vmem:[%s357 + $0x518] sm:$0xff] 0.0
        %1120 = vst [vmem:[%s357 + $0x520] sm:$0xff] 0.0
        %1121 = vst [vmem:[%s357 + $0x528] sm:$0xff] 0.0
        %1122 = vst [vmem:[%s357 + $0x530] sm:$0xff] 0.0
        %1123 = vst [vmem:[%s357 + $0x538] sm:$0xff] 0.0
        %1124 = vst [vmem:[%s357 + $0x540] sm:$0xff] 0.0
        %1125 = vst [vmem:[%s357 + $0x548] sm:$0xff] 0.0
        %1126 = vst [vmem:[%s357 + $0x550] sm:$0xff] 0.0
        %1127 = vst [vmem:[%s357 + $0x558] sm:$0xff] 0.0
        %1128 = vst [vmem:[%s357 + $0x560] sm:$0xff] 0.0
        %1129 = vst [vmem:[%s357 + $0x568] sm:$0xff] 0.0
        %1130 = vst [vmem:[%s357 + $0x570] sm:$0xff] 0.0
        %1131 = vst [vmem:[%s357 + $0x578] sm:$0xff] 0.0
        %1132 = vst [vmem:[%s357 + $0x580] sm:$0xff] 0.0
        %1133 = vst [vmem:[%s357 + $0x588] sm:$0xff] 0.0
        %1134 = vst [vmem:[%s357 + $0x590] sm:$0xff] 0.0
        %1135 = vst [vmem:[%s357 + $0x598] sm:$0xff] 0.0
        %1136 = vst [vmem:[%s357 + $0x5a0] sm:$0xff] 0.0
        %1137 = vst [vmem:[%s357 + $0x5a8] sm:$0xff] 0.0
        %1138 = vst [vmem:[%s357 + $0x5b0] sm:$0xff] 0.0
        %1139 = vst [vmem:[%s357 + $0x5b8] sm:$0xff] 0.0
        %1140 = vst [vmem:[%s357 + $0x5c0] sm:$0xff] 0.0
        %1141 = vst [vmem:[%s357 + $0x5c8] sm:$0xff] 0.0
        %1142 = vst [vmem:[%s357 + $0x5d0] sm:$0xff] 0.0
        %1143 = vst [vmem:[%s357 + $0x5d8] sm:$0xff] 0.0
        %1144 = vst [vmem:[%s357 + $0x5e0] sm:$0xff] 0.0
        %1145 = vst [vmem:[%s357 + $0x5e8] sm:$0xff] 0.0
        %1146 = vst [vmem:[%s357 + $0x5f0] sm:$0xff] 0.0
        %1147 = vst [vmem:[%s357 + $0x5f8] sm:$0xff] 0.0
        %1148 = vst [vmem:[%s357 + $0x600] sm:$0xff] 0.0
        %1149 = vst [vmem:[%s357 + $0x608] sm:$0xff] 0.0
        %1150 = vst [vmem:[%s357 + $0x610] sm:$0xff] 0.0
        %1151 = vst [vmem:[%s357 + $0x618] sm:$0xff] 0.0
        %1152 = vst [vmem:[%s357 + $0x620] sm:$0xff] 0.0
        %1153 = vst [vmem:[%s357 + $0x628] sm:$0xff] 0.0
        %1154 = vst [vmem:[%s357 + $0x630] sm:$0xff] 0.0
        %1155 = vst [vmem:[%s357 + $0x638] sm:$0xff] 0.0
        %1156 = vst [vmem:[%s357 + $0x640] sm:$0xff] 0.0
        %1157 = vst [vmem:[%s357 + $0x648] sm:$0xff] 0.0
        %1158 = vst [vmem:[%s357 + $0x650] sm:$0xff] 0.0
        %1159 = vst [vmem:[%s357 + $0x658] sm:$0xff] 0.0
        %1160 = vst [vmem:[%s357 + $0x660] sm:$0xff] 0.0
        %1161 = vst [vmem:[%s357 + $0x668] sm:$0xff] 0.0
        %1162 = vst [vmem:[%s357 + $0x670] sm:$0xff] 0.0
        %1163 = vst [vmem:[%s357 + $0x678] sm:$0xff] 0.0
        %1164 = vst [vmem:[%s357 + $0x680] sm:$0xff] 0.0
        %1165 = vst [vmem:[%s357 + $0x688] sm:$0xff] 0.0
        %1166 = vst [vmem:[%s357 + $0x690] sm:$0xff] 0.0
        %1167 = vst [vmem:[%s357 + $0x698] sm:$0xff] 0.0
        %1168 = vst [vmem:[%s357 + $0x6a0] sm:$0xff] 0.0
        %1169 = vst [vmem:[%s357 + $0x6a8] sm:$0xff] 0.0
        %1170 = vst [vmem:[%s357 + $0x6b0] sm:$0xff] 0.0
        %1171 = vst [vmem:[%s357 + $0x6b8] sm:$0xff] 0.0
        %1172 = vst [vmem:[%s357 + $0x6c0] sm:$0xff] 0.0
        %1173 = vst [vmem:[%s357 + $0x6c8] sm:$0xff] 0.0
        %1174 = vst [vmem:[%s357 + $0x6d0] sm:$0xff] 0.0
        %1175 = vst [vmem:[%s357 + $0x6d8] sm:$0xff] 0.0
        %1176 = vst [vmem:[%s357 + $0x6e0] sm:$0xff] 0.0
        %1177 = vst [vmem:[%s357 + $0x6e8] sm:$0xff] 0.0
        %1178 = vst [vmem:[%s357 + $0x6f0] sm:$0xff] 0.0
        %1179 = vst [vmem:[%s357 + $0x6f8] sm:$0xff] 0.0
        %1180 = vst [vmem:[%s357 + $0x700] sm:$0xff] 0.0
        %1181 = vst [vmem:[%s357 + $0x708] sm:$0xff] 0.0
        %1182 = vst [vmem:[%s357 + $0x710] sm:$0xff] 0.0
        %1183 = vst [vmem:[%s357 + $0x718] sm:$0xff] 0.0
        %1184 = vst [vmem:[%s357 + $0x720] sm:$0xff] 0.0
        %1185 = vst [vmem:[%s357 + $0x728] sm:$0xff] 0.0
        %1186 = vst [vmem:[%s357 + $0x730] sm:$0xff] 0.0
        %1187 = vst [vmem:[%s357 + $0x738] sm:$0xff] 0.0
        %1188 = vst [vmem:[%s357 + $0x740] sm:$0xff] 0.0
        %1189 = vst [vmem:[%s357 + $0x748] sm:$0xff] 0.0
        %1190 = vst [vmem:[%s357 + $0x750] sm:$0xff] 0.0
        %1191 = vst [vmem:[%s357 + $0x758] sm:$0xff] 0.0
        %1192 = vst [vmem:[%s357 + $0x760] sm:$0xff] 0.0
        %1193 = vst [vmem:[%s357 + $0x768] sm:$0xff] 0.0
        %1194 = vst [vmem:[%s357 + $0x770] sm:$0xff] 0.0
        %1195 = vst [vmem:[%s357 + $0x778] sm:$0xff] 0.0
        %1196 = vst [vmem:[%s357 + $0x780] sm:$0xff] 0.0
        %1197 = vst [vmem:[%s357 + $0x788] sm:$0xff] 0.0
        %1198 = vst [vmem:[%s357 + $0x790] sm:$0xff] 0.0
        %1199 = vst [vmem:[%s357 + $0x798] sm:$0xff] 0.0
        %1200 = vst [vmem:[%s357 + $0x7a0] sm:$0xff] 0.0
        %1201 = vst [vmem:[%s357 + $0x7a8] sm:$0xff] 0.0
        %1202 = vst [vmem:[%s357 + $0x7b0] sm:$0xff] 0.0
        %1203 = vst [vmem:[%s357 + $0x7b8] sm:$0xff] 0.0
        %1204 = vst [vmem:[%s357 + $0x7c0] sm:$0xff] 0.0
        %1205 = vst [vmem:[%s357 + $0x7c8] sm:$0xff] 0.0
        %1206 = vst [vmem:[%s357 + $0x7d0] sm:$0xff] 0.0
        %1207 = vst [vmem:[%s357 + $0x7d8] sm:$0xff] 0.0
        %1208 = vst [vmem:[%s357 + $0x7e0] sm:$0xff] 0.0
        %1209 = vst [vmem:[%s357 + $0x7e8] sm:$0xff] 0.0
        %1210 = vst [vmem:[%s357 + $0x7f0] sm:$0xff] 0.0
        %1211 = vst [vmem:[%s357 + $0x7f8] sm:$0xff] 0.0
        %1212 = vst [vmem:[%s357 + $0x800] sm:$0xff] 0.0
        %1213 = vst [vmem:[%s357 + $0x808] sm:$0xff] 0.0
        %1214 = vst [vmem:[%s357 + $0x810] sm:$0xff] 0.0
        %1215 = vst [vmem:[%s357 + $0x818] sm:$0xff] 0.0
        %1216 = vst [vmem:[%s357 + $0x820] sm:$0xff] 0.0
        %1217 = vst [vmem:[%s357 + $0x828] sm:$0xff] 0.0
        %1218 = vst [vmem:[%s357 + $0x830] sm:$0xff] 0.0
        %1219 = vst [vmem:[%s357 + $0x838] sm:$0xff] 0.0
        %1220 = vst [vmem:[%s357 + $0x840] sm:$0xff] 0.0
        %1221 = vst [vmem:[%s357 + $0x848] sm:$0xff] 0.0
        %1222 = vst [vmem:[%s357 + $0x850] sm:$0xff] 0.0
        %1223 = vst [vmem:[%s357 + $0x858] sm:$0xff] 0.0
        %1224 = vst [vmem:[%s357 + $0x860] sm:$0xff] 0.0
        %1225 = vst [vmem:[%s357 + $0x868] sm:$0xff] 0.0
        %1226 = vst [vmem:[%s357 + $0x870] sm:$0xff] 0.0
        %1227 = vst [vmem:[%s357 + $0x878] sm:$0xff] 0.0
        %1228 = vst [vmem:[%s357 + $0x880] sm:$0xff] 0.0
        %1229 = vst [vmem:[%s357 + $0x888] sm:$0xff] 0.0
        %1230 = vst [vmem:[%s357 + $0x890] sm:$0xff] 0.0
        %1231 = vst [vmem:[%s357 + $0x898] sm:$0xff] 0.0
        %1232 = vst [vmem:[%s357 + $0x8a0] sm:$0xff] 0.0
        %1233 = vst [vmem:[%s357 + $0x8a8] sm:$0xff] 0.0
        %1234 = vst [vmem:[%s357 + $0x8b0] sm:$0xff] 0.0
        %1235 = vst [vmem:[%s357 + $0x8b8] sm:$0xff] 0.0
        %1236 = vst [vmem:[%s357 + $0x8c0] sm:$0xff] 0.0
        %1237 = vst [vmem:[%s357 + $0x8c8] sm:$0xff] 0.0
        %1238 = vst [vmem:[%s357 + $0x8d0] sm:$0xff] 0.0
        %1239 = vst [vmem:[%s357 + $0x8d8] sm:$0xff] 0.0
        %1240 = vst [vmem:[%s357 + $0x8e0] sm:$0xff] 0.0
        %1241 = vst [vmem:[%s357 + $0x8e8] sm:$0xff] 0.0
        %1242 = vst [vmem:[%s357 + $0x8f0] sm:$0xff] 0.0
        %1243 = vst [vmem:[%s357 + $0x8f8] sm:$0xff] 0.0
        %1244 = vst [vmem:[%s357 + $0x900] sm:$0xff] 0.0
        %1245 = vst [vmem:[%s357 + $0x908] sm:$0xff] 0.0
        %1246 = vst [vmem:[%s357 + $0x910] sm:$0xff] 0.0
        %1247 = vst [vmem:[%s357 + $0x918] sm:$0xff] 0.0
        %1248 = vst [vmem:[%s357 + $0x920] sm:$0xff] 0.0
        %1249 = vst [vmem:[%s357 + $0x928] sm:$0xff] 0.0
        %1250 = vst [vmem:[%s357 + $0x930] sm:$0xff] 0.0
        %1251 = vst [vmem:[%s357 + $0x938] sm:$0xff] 0.0
        %1252 = vst [vmem:[%s357 + $0x940] sm:$0xff] 0.0
        %1253 = vst [vmem:[%s357 + $0x948] sm:$0xff] 0.0
        %1254 = vst [vmem:[%s357 + $0x950] sm:$0xff] 0.0
        %1255 = vst [vmem:[%s357 + $0x958] sm:$0xff] 0.0
        %1256 = vst [vmem:[%s357 + $0x960] sm:$0xff] 0.0
        %1257 = vst [vmem:[%s357 + $0x968] sm:$0xff] 0.0
        %1258 = vst [vmem:[%s357 + $0x970] sm:$0xff] 0.0
        %1259 = vst [vmem:[%s357 + $0x978] sm:$0xff] 0.0
        %1260 = vst [vmem:[%s357 + $0x980] sm:$0xff] 0.0
        %1261 = vst [vmem:[%s357 + $0x988] sm:$0xff] 0.0
        %1262 = vst [vmem:[%s357 + $0x990] sm:$0xff] 0.0
        %1263 = vst [vmem:[%s357 + $0x998] sm:$0xff] 0.0
        %1264 = vst [vmem:[%s357 + $0x9a0] sm:$0xff] 0.0
        %1265 = vst [vmem:[%s357 + $0x9a8] sm:$0xff] 0.0
        %1266 = vst [vmem:[%s357 + $0x9b0] sm:$0xff] 0.0
        %1267 = vst [vmem:[%s357 + $0x9b8] sm:$0xff] 0.0
        %1268 = vst [vmem:[%s357 + $0x9c0] sm:$0xff] 0.0
        %1269 = vst [vmem:[%s357 + $0x9c8] sm:$0xff] 0.0
        %1270 = vst [vmem:[%s357 + $0x9d0] sm:$0xff] 0.0
        %1271 = vst [vmem:[%s357 + $0x9d8] sm:$0xff] 0.0
        %1272 = vst [vmem:[%s357 + $0x9e0] sm:$0xff] 0.0
        %1273 = vst [vmem:[%s357 + $0x9e8] sm:$0xff] 0.0
        %1274 = vst [vmem:[%s357 + $0x9f0] sm:$0xff] 0.0
        %1275 = vst [vmem:[%s357 + $0x9f8] sm:$0xff] 0.0
        %1276 = vst [vmem:[%s357 + $0xa00] sm:$0xff] 0.0
        %1277 = vst [vmem:[%s357 + $0xa08] sm:$0xff] 0.0
        %1278 = vst [vmem:[%s357 + $0xa10] sm:$0xff] 0.0
        %1279 = vst [vmem:[%s357 + $0xa18] sm:$0xff] 0.0
        %1280 = vst [vmem:[%s357 + $0xa20] sm:$0xff] 0.0
        %1281 = vst [vmem:[%s357 + $0xa28] sm:$0xff] 0.0
        %1282 = vst [vmem:[%s357 + $0xa30] sm:$0xff] 0.0
        %1283 = vst [vmem:[%s357 + $0xa38] sm:$0xff] 0.0
        %1284 = vst [vmem:[%s357 + $0xa40] sm:$0xff] 0.0
        %1285 = vst [vmem:[%s357 + $0xa48] sm:$0xff] 0.0
        %1286 = vst [vmem:[%s357 + $0xa50] sm:$0xff] 0.0
        %1287 = vst [vmem:[%s357 + $0xa58] sm:$0xff] 0.0
        %1288 = vst [vmem:[%s357 + $0xa60] sm:$0xff] 0.0
        %1289 = vst [vmem:[%s357 + $0xa68] sm:$0xff] 0.0
        %1290 = vst [vmem:[%s357 + $0xa70] sm:$0xff] 0.0
        %1291 = vst [vmem:[%s357 + $0xa78] sm:$0xff] 0.0
        %1292 = vst [vmem:[%s357 + $0xa80] sm:$0xff] 0.0
        %1293 = vst [vmem:[%s357 + $0xa88] sm:$0xff] 0.0
        %1294 = vst [vmem:[%s357 + $0xa90] sm:$0xff] 0.0
        %1295 = vst [vmem:[%s357 + $0xa98] sm:$0xff] 0.0
        %1296 = vst [vmem:[%s357 + $0xaa0] sm:$0xff] 0.0
        %1297 = vst [vmem:[%s357 + $0xaa8] sm:$0xff] 0.0
        %1298 = vst [vmem:[%s357 + $0xab0] sm:$0xff] 0.0
        %1299 = vst [vmem:[%s357 + $0xab8] sm:$0xff] 0.0
        %1300 = vst [vmem:[%s357 + $0xac0] sm:$0xff] 0.0
        %1301 = vst [vmem:[%s357 + $0xac8] sm:$0xff] 0.0
        %1302 = vst [vmem:[%s357 + $0xad0] sm:$0xff] 0.0
        %1303 = vst [vmem:[%s357 + $0xad8] sm:$0xff] 0.0
        %1304 = vst [vmem:[%s357 + $0xae0] sm:$0xff] 0.0
        %1305 = vst [vmem:[%s357 + $0xae8] sm:$0xff] 0.0
        %1306 = vst [vmem:[%s357 + $0xaf0] sm:$0xff] 0.0
        %1307 = vst [vmem:[%s357 + $0xaf8] sm:$0xff] 0.0
        %1308 = vst [vmem:[%s357 + $0xb00] sm:$0xff] 0.0
        %1309 = vst [vmem:[%s357 + $0xb08] sm:$0xff] 0.0
        %1310 = vst [vmem:[%s357 + $0xb10] sm:$0xff] 0.0
        %1311 = vst [vmem:[%s357 + $0xb18] sm:$0xff] 0.0
        %1312 = vst [vmem:[%s357 + $0xb20] sm:$0xff] 0.0
        %1313 = vst [vmem:[%s357 + $0xb28] sm:$0xff] 0.0
        %1314 = vst [vmem:[%s357 + $0xb30] sm:$0xff] 0.0
        %1315 = vst [vmem:[%s357 + $0xb38] sm:$0xff] 0.0
        %1316 = vst [vmem:[%s357 + $0xb40] sm:$0xff] 0.0
        %1317 = vst [vmem:[%s357 + $0xb48] sm:$0xff] 0.0
        %1318 = vst [vmem:[%s357 + $0xb50] sm:$0xff] 0.0
        %1319 = vst [vmem:[%s357 + $0xb58] sm:$0xff] 0.0
        %1320 = vst [vmem:[%s357 + $0xb60] sm:$0xff] 0.0
        %1321 = vst [vmem:[%s357 + $0xb68] sm:$0xff] 0.0
        %1322 = vst [vmem:[%s357 + $0xb70] sm:$0xff] 0.0
        %1323 = vst [vmem:[%s357 + $0xb78] sm:$0xff] 0.0
        %1324 = vst [vmem:[%s357 + $0xb80] sm:$0xff] 0.0
        %1325 = vst [vmem:[%s357 + $0xb88] sm:$0xff] 0.0
        %1326 = vst [vmem:[%s357 + $0xb90] sm:$0xff] 0.0
        %1327 = vst [vmem:[%s357 + $0xb98] sm:$0xff] 0.0
        %1328 = vst [vmem:[%s357 + $0xba0] sm:$0xff] 0.0
        %1329 = vst [vmem:[%s357 + $0xba8] sm:$0xff] 0.0
        %1330 = vst [vmem:[%s357 + $0xbb0] sm:$0xff] 0.0
        %1331 = vst [vmem:[%s357 + $0xbb8] sm:$0xff] 0.0
        %1332 = vst [vmem:[%s357 + $0xbc0] sm:$0xff] 0.0
        %1333 = vst [vmem:[%s357 + $0xbc8] sm:$0xff] 0.0
        %1334 = vst [vmem:[%s357 + $0xbd0] sm:$0xff] 0.0
        %1335 = vst [vmem:[%s357 + $0xbd8] sm:$0xff] 0.0
        %1336 = vst [vmem:[%s357 + $0xbe0] sm:$0xff] 0.0
        %1337 = vst [vmem:[%s357 + $0xbe8] sm:$0xff] 0.0
        %1338 = vst [vmem:[%s357 + $0xbf0] sm:$0xff] 0.0
        %1339 = vst [vmem:[%s357 + $0xbf8] sm:$0xff] 0.0
        %1340 = vst [vmem:[%s357 + $0xc00] sm:$0xff] 0.0
        %1341 = vst [vmem:[%s357 + $0xc08] sm:$0xff] 0.0
        %1342 = vst [vmem:[%s357 + $0xc10] sm:$0xff] 0.0
        %1343 = vst [vmem:[%s357 + $0xc18] sm:$0xff] 0.0
        %1344 = vst [vmem:[%s357 + $0xc20] sm:$0xff] 0.0
        %1345 = vst [vmem:[%s357 + $0xc28] sm:$0xff] 0.0
        %1346 = vst [vmem:[%s357 + $0xc30] sm:$0xff] 0.0
        %1347 = vst [vmem:[%s357 + $0xc38] sm:$0xff] 0.0
        %1348 = vst [vmem:[%s357 + $0xc40] sm:$0xff] 0.0
        %1349 = vst [vmem:[%s357 + $0xc48] sm:$0xff] 0.0
        %1350 = vst [vmem:[%s357 + $0xc50] sm:$0xff] 0.0
        %1351 = vst [vmem:[%s357 + $0xc58] sm:$0xff] 0.0
        %1352 = vst [vmem:[%s357 + $0xc60] sm:$0xff] 0.0
        %1353 = vst [vmem:[%s357 + $0xc68] sm:$0xff] 0.0
        %1354 = vst [vmem:[%s357 + $0xc70] sm:$0xff] 0.0
        %1355 = vst [vmem:[%s357 + $0xc78] sm:$0xff] 0.0
        %1356 = vst [vmem:[%s357 + $0xc80] sm:$0xff] 0.0
        %1357 = vst [vmem:[%s357 + $0xc88] sm:$0xff] 0.0
        %1358 = vst [vmem:[%s357 + $0xc90] sm:$0xff] 0.0
        %1359 = vst [vmem:[%s357 + $0xc98] sm:$0xff] 0.0
        %1360 = vst [vmem:[%s357 + $0xca0] sm:$0xff] 0.0
        %1361 = vst [vmem:[%s357 + $0xca8] sm:$0xff] 0.0
        %1362 = vst [vmem:[%s357 + $0xcb0] sm:$0xff] 0.0
        %1363 = vst [vmem:[%s357 + $0xcb8] sm:$0xff] 0.0
        %1364 = vst [vmem:[%s357 + $0xcc0] sm:$0xff] 0.0
        %1365 = vst [vmem:[%s357 + $0xcc8] sm:$0xff] 0.0
        %1366 = vst [vmem:[%s357 + $0xcd0] sm:$0xff] 0.0
        %1367 = vst [vmem:[%s357 + $0xcd8] sm:$0xff] 0.0
        %1368 = vst [vmem:[%s357 + $0xce0] sm:$0xff] 0.0
        %1369 = vst [vmem:[%s357 + $0xce8] sm:$0xff] 0.0
        %1370 = vst [vmem:[%s357 + $0xcf0] sm:$0xff] 0.0
        %1371 = vst [vmem:[%s357 + $0xcf8] sm:$0xff] 0.0
        %1372 = vst [vmem:[%s357 + $0xd00] sm:$0xff] 0.0
        %1373 = vst [vmem:[%s357 + $0xd08] sm:$0xff] 0.0
        %1374 = vst [vmem:[%s357 + $0xd10] sm:$0xff] 0.0
        %1375 = vst [vmem:[%s357 + $0xd18] sm:$0xff] 0.0
        %1376 = vst [vmem:[%s357 + $0xd20] sm:$0xff] 0.0
        %1377 = vst [vmem:[%s357 + $0xd28] sm:$0xff] 0.0
        %1378 = vst [vmem:[%s357 + $0xd30] sm:$0xff] 0.0
        %1379 = vst [vmem:[%s357 + $0xd38] sm:$0xff] 0.0
        %1380 = vst [vmem:[%s357 + $0xd40] sm:$0xff] 0.0
        %1381 = vst [vmem:[%s357 + $0xd48] sm:$0xff] 0.0
        %1382 = vst [vmem:[%s357 + $0xd50] sm:$0xff] 0.0
        %1383 = vst [vmem:[%s357 + $0xd58] sm:$0xff] 0.0
        %1384 = vst [vmem:[%s357 + $0xd60] sm:$0xff] 0.0
        %1385 = vst [vmem:[%s357 + $0xd68] sm:$0xff] 0.0
        %1386 = vst [vmem:[%s357 + $0xd70] sm:$0xff] 0.0
        %1387 = vst [vmem:[%s357 + $0xd78] sm:$0xff] 0.0
        %1388 = vst [vmem:[%s357 + $0xd80] sm:$0xff] 0.0
        %1389 = vst [vmem:[%s357 + $0xd88] sm:$0xff] 0.0
        %1390 = vst [vmem:[%s357 + $0xd90] sm:$0xff] 0.0
        %1391 = vst [vmem:[%s357 + $0xd98] sm:$0xff] 0.0
        %1392 = vst [vmem:[%s357 + $0xda0] sm:$0xff] 0.0
        %1393 = vst [vmem:[%s357 + $0xda8] sm:$0xff] 0.0
        %1394 = vst [vmem:[%s357 + $0xdb0] sm:$0xff] 0.0
        %1395 = vst [vmem:[%s357 + $0xdb8] sm:$0xff] 0.0
        %1396 = vst [vmem:[%s357 + $0xdc0] sm:$0xff] 0.0
        %1397 = vst [vmem:[%s357 + $0xdc8] sm:$0xff] 0.0
        %1398 = vst [vmem:[%s357 + $0xdd0] sm:$0xff] 0.0
        %1399 = vst [vmem:[%s357 + $0xdd8] sm:$0xff] 0.0
        %1400 = vst [vmem:[%s357 + $0xde0] sm:$0xff] 0.0
        %1401 = vst [vmem:[%s357 + $0xde8] sm:$0xff] 0.0
        %1402 = vst [vmem:[%s357 + $0xdf0] sm:$0xff] 0.0
        %1403 = vst [vmem:[%s357 + $0xdf8] sm:$0xff] 0.0
        %1404 = vst [vmem:[%s357 + $0xe00] sm:$0xff] 0.0
        %1405 = vst [vmem:[%s357 + $0xe08] sm:$0xff] 0.0
        %1406 = vst [vmem:[%s357 + $0xe10] sm:$0xff] 0.0
        %1407 = vst [vmem:[%s357 + $0xe18] sm:$0xff] 0.0
        %1408 = vst [vmem:[%s357 + $0xe20] sm:$0xff] 0.0
        %1409 = vst [vmem:[%s357 + $0xe28] sm:$0xff] 0.0
        %1410 = vst [vmem:[%s357 + $0xe30] sm:$0xff] 0.0
        %1411 = vst [vmem:[%s357 + $0xe38] sm:$0xff] 0.0
        %1412 = vst [vmem:[%s357 + $0xe40] sm:$0xff] 0.0
        %1413 = vst [vmem:[%s357 + $0xe48] sm:$0xff] 0.0
        %1414 = vst [vmem:[%s357 + $0xe50] sm:$0xff] 0.0
        %1415 = vst [vmem:[%s357 + $0xe58] sm:$0xff] 0.0
        %1416 = vst [vmem:[%s357 + $0xe60] sm:$0xff] 0.0
        %1417 = vst [vmem:[%s357 + $0xe68] sm:$0xff] 0.0
        %1418 = vst [vmem:[%s357 + $0xe70] sm:$0xff] 0.0
        %1419 = vst [vmem:[%s357 + $0xe78] sm:$0xff] 0.0
        %1420 = vst [vmem:[%s357 + $0xe80] sm:$0xff] 0.0
        %1421 = vst [vmem:[%s357 + $0xe88] sm:$0xff] 0.0
        %1422 = vst [vmem:[%s357 + $0xe90] sm:$0xff] 0.0
        %1423 = vst [vmem:[%s357 + $0xe98] sm:$0xff] 0.0
        %1424 = vst [vmem:[%s357 + $0xea0] sm:$0xff] 0.0
        %1425 = vst [vmem:[%s357 + $0xea8] sm:$0xff] 0.0
        %1426 = vst [vmem:[%s357 + $0xeb0] sm:$0xff] 0.0
        %1427 = vst [vmem:[%s357 + $0xeb8] sm:$0xff] 0.0
        %1428 = vst [vmem:[%s357 + $0xec0] sm:$0xff] 0.0
        %1429 = vst [vmem:[%s357 + $0xec8] sm:$0xff] 0.0
        %1430 = vst [vmem:[%s357 + $0xed0] sm:$0xff] 0.0
        %1431 = vst [vmem:[%s357 + $0xed8] sm:$0xff] 0.0
        %1432 = vst [vmem:[%s357 + $0xee0] sm:$0xff] 0.0
        %1433 = vst [vmem:[%s357 + $0xee8] sm:$0xff] 0.0
        %1434 = vst [vmem:[%s357 + $0xef0] sm:$0xff] 0.0
        %1435 = vst [vmem:[%s357 + $0xef8] sm:$0xff] 0.0
        %1436 = vst [vmem:[%s357 + $0xf00] sm:$0xff] 0.0
        %1437 = vst [vmem:[%s357 + $0xf08] sm:$0xff] 0.0
        %1438 = vst [vmem:[%s357 + $0xf10] sm:$0xff] 0.0
        %1439 = vst [vmem:[%s357 + $0xf18] sm:$0xff] 0.0
        %1440 = vst [vmem:[%s357 + $0xf20] sm:$0xff] 0.0
        %1441 = vst [vmem:[%s357 + $0xf28] sm:$0xff] 0.0
        %1442 = vst [vmem:[%s357 + $0xf30] sm:$0xff] 0.0
        %1443 = vst [vmem:[%s357 + $0xf38] sm:$0xff] 0.0
        %1444 = vst [vmem:[%s357 + $0xf40] sm:$0xff] 0.0
        %1445 = vst [vmem:[%s357 + $0xf48] sm:$0xff] 0.0
        %1446 = vst [vmem:[%s357 + $0xf50] sm:$0xff] 0.0
        %1447 = vst [vmem:[%s357 + $0xf58] sm:$0xff] 0.0
        %1448 = vst [vmem:[%s357 + $0xf60] sm:$0xff] 0.0
        %1449 = vst [vmem:[%s357 + $0xf68] sm:$0xff] 0.0
        %1450 = vst [vmem:[%s357 + $0xf70] sm:$0xff] 0.0
        %1451 = vst [vmem:[%s357 + $0xf78] sm:$0xff] 0.0
        %1452 = vst [vmem:[%s357 + $0xf80] sm:$0xff] 0.0
        %1453 = vst [vmem:[%s357 + $0xf88] sm:$0xff] 0.0
        %1454 = vst [vmem:[%s357 + $0xf90] sm:$0xff] 0.0
        %1455 = vst [vmem:[%s357 + $0xf98] sm:$0xff] 0.0
        %1456 = vst [vmem:[%s357 + $0xfa0] sm:$0xff] 0.0
        %1457 = vst [vmem:[%s357 + $0xfa8] sm:$0xff] 0.0
        %1458 = vst [vmem:[%s357 + $0xfb0] sm:$0xff] 0.0
        %1459 = vst [vmem:[%s357 + $0xfb8] sm:$0xff] 0.0
        %1460 = vst [vmem:[%s357 + $0xfc0] sm:$0xff] 0.0
        %1461 = vst [vmem:[%s357 + $0xfc8] sm:$0xff] 0.0
        %1462 = vst [vmem:[%s357 + $0xfd0] sm:$0xff] 0.0
        %1463 = vst [vmem:[%s357 + $0xfd8] sm:$0xff] 0.0
        %1464 = vst [vmem:[%s357 + $0xfe0] sm:$0xff] 0.0
        %1465 = vst [vmem:[%s357 + $0xfe8] sm:$0xff] 0.0
        %1466 = vst [vmem:[%s357 + $0xff0] sm:$0xff] 0.0
        %1467 = vst [vmem:[%s357 + $0xff8] sm:$0xff] 0.0
        %v1468 = vlaneseq
        %v1469 = vshrl.u32 %v1468, 7
        %v1470 = vadd.s32 %v1469, 8
        %v1471 = vadd.s32 %v1469, 16
        %v1472 = vadd.s32 %v1469, 24
        %v1473 = vadd.s32 %v1469, 32
        %v1474 = vadd.s32 %v1469, 40
        %v1475 = vadd.s32 %v1469, 48
        %v1476 = vadd.s32 %v1469, 56
        %v1477 = vadd.s32 %v1469, 64
        %v1478 = vadd.s32 %v1469, 72
        %v1479 = vadd.s32 %v1469, 80
        %v1480 = vadd.s32 %v1469, 88
        %v1481 = vadd.s32 %v1469, 96
        %v1482 = vadd.s32 %v1469, 104
        %v1483 = vadd.s32 %v1469, 112
        %v1484 = vadd.s32 %v1469, 120
        %v1485 = vadd.s32 %v1469, 128
        %v1486 = vadd.s32 %v1469, 136
        %v1487 = vadd.s32 %v1469, 144
        %v1488 = vadd.s32 %v1469, 152
        %v1489 = vadd.s32 %v1469, 160
        %v1490 = vadd.s32 %v1469, 168
        %v1491 = vadd.s32 %v1469, 176
        %v1492 = vadd.s32 %v1469, 184
        %v1493 = vadd.s32 %v1469, 192
        %v1494 = vadd.s32 %v1469, 200
        %v1495 = vadd.s32 %v1469, 208
        %v1496 = vadd.s32 %v1469, 216
        %v1497 = vadd.s32 %v1469, 224
        %v1498 = vadd.s32 %v1469, 232
        %v1499 = vadd.s32 %v1469, 240
        %v1500 = vadd.s32 %v1469, 248
        %v1501 = vadd.s32 %v1469, 256
        %v1502 = vadd.s32 %v1469, 264
        %v1503 = vadd.s32 %v1469, 272
        %v1504 = vadd.s32 %v1469, 280
        %v1505 = vadd.s32 %v1469, 288
        %v1506 = vadd.s32 %v1469, 296
        %v1507 = vadd.s32 %v1469, 304
        %v1508 = vadd.s32 %v1469, 312
        %v1509 = vadd.s32 %v1469, 320
        %v1510 = vadd.s32 %v1469, 328
        %v1511 = vadd.s32 %v1469, 336
        %v1512 = vadd.s32 %v1469, 344
        %v1513 = vadd.s32 %v1469, 352
        %v1514 = vadd.s32 %v1469, 360
        %v1515 = vadd.s32 %v1469, 368
        %v1516 = vadd.s32 %v1469, 376
        %v1517 = vadd.s32 %v1469, 384
        %v1518 = vadd.s32 %v1469, 392
        %v1519 = vadd.s32 %v1469, 400
        %v1520 = vadd.s32 %v1469, 408
        %v1521 = vadd.s32 %v1469, 416
        %v1522 = vadd.s32 %v1469, 424
        %v1523 = vadd.s32 %v1469, 432
        %v1524 = vadd.s32 %v1469, 440
        %v1525 = vadd.s32 %v1469, 448
        %v1526 = vadd.s32 %v1469, 456
        %v1527 = vadd.s32 %v1469, 464
        %v1528 = vadd.s32 %v1469, 472
        %v1529 = vadd.s32 %v1469, 480
        %v1530 = vadd.s32 %v1469, 488
        %v1531 = vadd.s32 %v1469, 496
        %v1532 = vadd.s32 %v1469, 504
        %v1533 = vlaneseq
        %v1534 = vand.u32 %v1533, 127
        %v1535 = vadd.s32 %v1534, 128
        %v1536 = vadd.s32 %v1534, 256
        %v1537 = vadd.s32 %v1534, 384
        %vm1538 = vcmp.eq.s32.totalorder %v1469, %v1534
        %vm1539 = vcmp.eq.s32.totalorder %v1469, %v1535
        %vm1540 = vcmp.eq.s32.totalorder %v1469, %v1536
        %vm1541 = vcmp.eq.s32.totalorder %v1469, %v1537
        %vm1542 = vcmp.eq.s32.totalorder %v1470, %v1534
        %vm1543 = vcmp.eq.s32.totalorder %v1470, %v1535
        %vm1544 = vcmp.eq.s32.totalorder %v1470, %v1536
        %vm1545 = vcmp.eq.s32.totalorder %v1470, %v1537
        %vm1546 = vcmp.eq.s32.totalorder %v1471, %v1534
        %vm1547 = vcmp.eq.s32.totalorder %v1471, %v1535
        %vm1548 = vcmp.eq.s32.totalorder %v1471, %v1536
        %vm1549 = vcmp.eq.s32.totalorder %v1471, %v1537
        %vm1550 = vcmp.eq.s32.totalorder %v1472, %v1534
        %vm1551 = vcmp.eq.s32.totalorder %v1472, %v1535
        %vm1552 = vcmp.eq.s32.totalorder %v1472, %v1536
        %vm1553 = vcmp.eq.s32.totalorder %v1472, %v1537
        %vm1554 = vcmp.eq.s32.totalorder %v1473, %v1534
        %vm1555 = vcmp.eq.s32.totalorder %v1473, %v1535
        %vm1556 = vcmp.eq.s32.totalorder %v1473, %v1536
        %vm1557 = vcmp.eq.s32.totalorder %v1473, %v1537
        %vm1558 = vcmp.eq.s32.totalorder %v1474, %v1534
        %vm1559 = vcmp.eq.s32.totalorder %v1474, %v1535
        %vm1560 = vcmp.eq.s32.totalorder %v1474, %v1536
        %vm1561 = vcmp.eq.s32.totalorder %v1474, %v1537
        %vm1562 = vcmp.eq.s32.totalorder %v1475, %v1534
        %vm1563 = vcmp.eq.s32.totalorder %v1475, %v1535
        %vm1564 = vcmp.eq.s32.totalorder %v1475, %v1536
        %vm1565 = vcmp.eq.s32.totalorder %v1475, %v1537
        %vm1566 = vcmp.eq.s32.totalorder %v1476, %v1534
        %vm1567 = vcmp.eq.s32.totalorder %v1476, %v1535
        %vm1568 = vcmp.eq.s32.totalorder %v1476, %v1536
        %vm1569 = vcmp.eq.s32.totalorder %v1476, %v1537
        %vm1570 = vcmp.eq.s32.totalorder %v1477, %v1534
        %vm1571 = vcmp.eq.s32.totalorder %v1477, %v1535
        %vm1572 = vcmp.eq.s32.totalorder %v1477, %v1536
        %vm1573 = vcmp.eq.s32.totalorder %v1477, %v1537
        %vm1574 = vcmp.eq.s32.totalorder %v1478, %v1534
        %vm1575 = vcmp.eq.s32.totalorder %v1478, %v1535
        %vm1576 = vcmp.eq.s32.totalorder %v1478, %v1536
        %vm1577 = vcmp.eq.s32.totalorder %v1478, %v1537
        %vm1578 = vcmp.eq.s32.totalorder %v1479, %v1534
        %vm1579 = vcmp.eq.s32.totalorder %v1479, %v1535
        %vm1580 = vcmp.eq.s32.totalorder %v1479, %v1536
        %vm1581 = vcmp.eq.s32.totalorder %v1479, %v1537
        %vm1582 = vcmp.eq.s32.totalorder %v1480, %v1534
        %vm1583 = vcmp.eq.s32.totalorder %v1480, %v1535
        %vm1584 = vcmp.eq.s32.totalorder %v1480, %v1536
        %vm1585 = vcmp.eq.s32.totalorder %v1480, %v1537
        %vm1586 = vcmp.eq.s32.totalorder %v1481, %v1534
        %vm1587 = vcmp.eq.s32.totalorder %v1481, %v1535
        %vm1588 = vcmp.eq.s32.totalorder %v1481, %v1536
        %vm1589 = vcmp.eq.s32.totalorder %v1481, %v1537
        %vm1590 = vcmp.eq.s32.totalorder %v1482, %v1534
        %vm1591 = vcmp.eq.s32.totalorder %v1482, %v1535
        %vm1592 = vcmp.eq.s32.totalorder %v1482, %v1536
        %vm1593 = vcmp.eq.s32.totalorder %v1482, %v1537
        %vm1594 = vcmp.eq.s32.totalorder %v1483, %v1534
        %vm1595 = vcmp.eq.s32.totalorder %v1483, %v1535
        %vm1596 = vcmp.eq.s32.totalorder %v1483, %v1536
        %vm1597 = vcmp.eq.s32.totalorder %v1483, %v1537
        %vm1598 = vcmp.eq.s32.totalorder %v1484, %v1534
        %vm1599 = vcmp.eq.s32.totalorder %v1484, %v1535
        %vm1600 = vcmp.eq.s32.totalorder %v1484, %v1536
        %vm1601 = vcmp.eq.s32.totalorder %v1484, %v1537
        %vm1602 = vcmp.eq.s32.totalorder %v1485, %v1534
        %vm1603 = vcmp.eq.s32.totalorder %v1485, %v1535
        %vm1604 = vcmp.eq.s32.totalorder %v1485, %v1536
        %vm1605 = vcmp.eq.s32.totalorder %v1485, %v1537
        %vm1606 = vcmp.eq.s32.totalorder %v1486, %v1534
        %vm1607 = vcmp.eq.s32.totalorder %v1486, %v1535
        %vm1608 = vcmp.eq.s32.totalorder %v1486, %v1536
        %vm1609 = vcmp.eq.s32.totalorder %v1486, %v1537
        %vm1610 = vcmp.eq.s32.totalorder %v1487, %v1534
        %vm1611 = vcmp.eq.s32.totalorder %v1487, %v1535
        %vm1612 = vcmp.eq.s32.totalorder %v1487, %v1536
        %vm1613 = vcmp.eq.s32.totalorder %v1487, %v1537
        %vm1614 = vcmp.eq.s32.totalorder %v1488, %v1534
        %vm1615 = vcmp.eq.s32.totalorder %v1488, %v1535
        %vm1616 = vcmp.eq.s32.totalorder %v1488, %v1536
        %vm1617 = vcmp.eq.s32.totalorder %v1488, %v1537
        %vm1618 = vcmp.eq.s32.totalorder %v1489, %v1534
        %vm1619 = vcmp.eq.s32.totalorder %v1489, %v1535
        %vm1620 = vcmp.eq.s32.totalorder %v1489, %v1536
        %vm1621 = vcmp.eq.s32.totalorder %v1489, %v1537
        %vm1622 = vcmp.eq.s32.totalorder %v1490, %v1534
        %vm1623 = vcmp.eq.s32.totalorder %v1490, %v1535
        %vm1624 = vcmp.eq.s32.totalorder %v1490, %v1536
        %vm1625 = vcmp.eq.s32.totalorder %v1490, %v1537
        %vm1626 = vcmp.eq.s32.totalorder %v1491, %v1534
        %vm1627 = vcmp.eq.s32.totalorder %v1491, %v1535
        %vm1628 = vcmp.eq.s32.totalorder %v1491, %v1536
        %vm1629 = vcmp.eq.s32.totalorder %v1491, %v1537
        %vm1630 = vcmp.eq.s32.totalorder %v1492, %v1534
        %vm1631 = vcmp.eq.s32.totalorder %v1492, %v1535
        %vm1632 = vcmp.eq.s32.totalorder %v1492, %v1536
        %vm1633 = vcmp.eq.s32.totalorder %v1492, %v1537
        %vm1634 = vcmp.eq.s32.totalorder %v1493, %v1534
        %vm1635 = vcmp.eq.s32.totalorder %v1493, %v1535
        %vm1636 = vcmp.eq.s32.totalorder %v1493, %v1536
        %vm1637 = vcmp.eq.s32.totalorder %v1493, %v1537
        %vm1638 = vcmp.eq.s32.totalorder %v1494, %v1534
        %vm1639 = vcmp.eq.s32.totalorder %v1494, %v1535
        %vm1640 = vcmp.eq.s32.totalorder %v1494, %v1536
        %vm1641 = vcmp.eq.s32.totalorder %v1494, %v1537
        %vm1642 = vcmp.eq.s32.totalorder %v1495, %v1534
        %vm1643 = vcmp.eq.s32.totalorder %v1495, %v1535
        %vm1644 = vcmp.eq.s32.totalorder %v1495, %v1536
        %vm1645 = vcmp.eq.s32.totalorder %v1495, %v1537
        %vm1646 = vcmp.eq.s32.totalorder %v1496, %v1534
        %vm1647 = vcmp.eq.s32.totalorder %v1496, %v1535
        %vm1648 = vcmp.eq.s32.totalorder %v1496, %v1536
        %vm1649 = vcmp.eq.s32.totalorder %v1496, %v1537
        %vm1650 = vcmp.eq.s32.totalorder %v1497, %v1534
        %vm1651 = vcmp.eq.s32.totalorder %v1497, %v1535
        %vm1652 = vcmp.eq.s32.totalorder %v1497, %v1536
        %vm1653 = vcmp.eq.s32.totalorder %v1497, %v1537
        %vm1654 = vcmp.eq.s32.totalorder %v1498, %v1534
        %vm1655 = vcmp.eq.s32.totalorder %v1498, %v1535
        %vm1656 = vcmp.eq.s32.totalorder %v1498, %v1536
        %vm1657 = vcmp.eq.s32.totalorder %v1498, %v1537
        %vm1658 = vcmp.eq.s32.totalorder %v1499, %v1534
        %vm1659 = vcmp.eq.s32.totalorder %v1499, %v1535
        %vm1660 = vcmp.eq.s32.totalorder %v1499, %v1536
        %vm1661 = vcmp.eq.s32.totalorder %v1499, %v1537
        %vm1662 = vcmp.eq.s32.totalorder %v1500, %v1534
        %vm1663 = vcmp.eq.s32.totalorder %v1500, %v1535
        %vm1664 = vcmp.eq.s32.totalorder %v1500, %v1536
        %vm1665 = vcmp.eq.s32.totalorder %v1500, %v1537
        %vm1666 = vcmp.eq.s32.totalorder %v1501, %v1534
        %vm1667 = vcmp.eq.s32.totalorder %v1501, %v1535
        %vm1668 = vcmp.eq.s32.totalorder %v1501, %v1536
        %vm1669 = vcmp.eq.s32.totalorder %v1501, %v1537
        %vm1670 = vcmp.eq.s32.totalorder %v1502, %v1534
        %vm1671 = vcmp.eq.s32.totalorder %v1502, %v1535
        %vm1672 = vcmp.eq.s32.totalorder %v1502, %v1536
        %vm1673 = vcmp.eq.s32.totalorder %v1502, %v1537
        %vm1674 = vcmp.eq.s32.totalorder %v1503, %v1534
        %vm1675 = vcmp.eq.s32.totalorder %v1503, %v1535
        %vm1676 = vcmp.eq.s32.totalorder %v1503, %v1536
        %vm1677 = vcmp.eq.s32.totalorder %v1503, %v1537
        %vm1678 = vcmp.eq.s32.totalorder %v1504, %v1534
        %vm1679 = vcmp.eq.s32.totalorder %v1504, %v1535
        %vm1680 = vcmp.eq.s32.totalorder %v1504, %v1536
        %vm1681 = vcmp.eq.s32.totalorder %v1504, %v1537
        %vm1682 = vcmp.eq.s32.totalorder %v1505, %v1534
        %vm1683 = vcmp.eq.s32.totalorder %v1505, %v1535
        %vm1684 = vcmp.eq.s32.totalorder %v1505, %v1536
        %vm1685 = vcmp.eq.s32.totalorder %v1505, %v1537
        %vm1686 = vcmp.eq.s32.totalorder %v1506, %v1534
        %vm1687 = vcmp.eq.s32.totalorder %v1506, %v1535
        %vm1688 = vcmp.eq.s32.totalorder %v1506, %v1536
        %vm1689 = vcmp.eq.s32.totalorder %v1506, %v1537
        %vm1690 = vcmp.eq.s32.totalorder %v1507, %v1534
        %vm1691 = vcmp.eq.s32.totalorder %v1507, %v1535
        %vm1692 = vcmp.eq.s32.totalorder %v1507, %v1536
        %vm1693 = vcmp.eq.s32.totalorder %v1507, %v1537
        %vm1694 = vcmp.eq.s32.totalorder %v1508, %v1534
        %vm1695 = vcmp.eq.s32.totalorder %v1508, %v1535
        %vm1696 = vcmp.eq.s32.totalorder %v1508, %v1536
        %vm1697 = vcmp.eq.s32.totalorder %v1508, %v1537
        %vm1698 = vcmp.eq.s32.totalorder %v1509, %v1534
        %vm1699 = vcmp.eq.s32.totalorder %v1509, %v1535
        %vm1700 = vcmp.eq.s32.totalorder %v1509, %v1536
        %vm1701 = vcmp.eq.s32.totalorder %v1509, %v1537
        %vm1702 = vcmp.eq.s32.totalorder %v1510, %v1534
        %vm1703 = vcmp.eq.s32.totalorder %v1510, %v1535
        %vm1704 = vcmp.eq.s32.totalorder %v1510, %v1536
        %vm1705 = vcmp.eq.s32.totalorder %v1510, %v1537
        %vm1706 = vcmp.eq.s32.totalorder %v1511, %v1534
        %vm1707 = vcmp.eq.s32.totalorder %v1511, %v1535
        %vm1708 = vcmp.eq.s32.totalorder %v1511, %v1536
        %vm1709 = vcmp.eq.s32.totalorder %v1511, %v1537
        %vm1710 = vcmp.eq.s32.totalorder %v1512, %v1534
        %vm1711 = vcmp.eq.s32.totalorder %v1512, %v1535
        %vm1712 = vcmp.eq.s32.totalorder %v1512, %v1536
        %vm1713 = vcmp.eq.s32.totalorder %v1512, %v1537
        %vm1714 = vcmp.eq.s32.totalorder %v1513, %v1534
        %vm1715 = vcmp.eq.s32.totalorder %v1513, %v1535
        %vm1716 = vcmp.eq.s32.totalorder %v1513, %v1536
        %vm1717 = vcmp.eq.s32.totalorder %v1513, %v1537
        %vm1718 = vcmp.eq.s32.totalorder %v1514, %v1534
        %vm1719 = vcmp.eq.s32.totalorder %v1514, %v1535
        %vm1720 = vcmp.eq.s32.totalorder %v1514, %v1536
        %vm1721 = vcmp.eq.s32.totalorder %v1514, %v1537
        %vm1722 = vcmp.eq.s32.totalorder %v1515, %v1534
        %vm1723 = vcmp.eq.s32.totalorder %v1515, %v1535
        %vm1724 = vcmp.eq.s32.totalorder %v1515, %v1536
        %vm1725 = vcmp.eq.s32.totalorder %v1515, %v1537
        %vm1726 = vcmp.eq.s32.totalorder %v1516, %v1534
        %vm1727 = vcmp.eq.s32.totalorder %v1516, %v1535
        %vm1728 = vcmp.eq.s32.totalorder %v1516, %v1536
        %vm1729 = vcmp.eq.s32.totalorder %v1516, %v1537
        %vm1730 = vcmp.eq.s32.totalorder %v1517, %v1534
        %vm1731 = vcmp.eq.s32.totalorder %v1517, %v1535
        %vm1732 = vcmp.eq.s32.totalorder %v1517, %v1536
        %vm1733 = vcmp.eq.s32.totalorder %v1517, %v1537
        %vm1734 = vcmp.eq.s32.totalorder %v1518, %v1534
        %vm1735 = vcmp.eq.s32.totalorder %v1518, %v1535
        %vm1736 = vcmp.eq.s32.totalorder %v1518, %v1536
        %vm1737 = vcmp.eq.s32.totalorder %v1518, %v1537
        %vm1738 = vcmp.eq.s32.totalorder %v1519, %v1534
        %vm1739 = vcmp.eq.s32.totalorder %v1519, %v1535
        %vm1740 = vcmp.eq.s32.totalorder %v1519, %v1536
        %vm1741 = vcmp.eq.s32.totalorder %v1519, %v1537
        %vm1742 = vcmp.eq.s32.totalorder %v1520, %v1534
        %vm1743 = vcmp.eq.s32.totalorder %v1520, %v1535
        %vm1744 = vcmp.eq.s32.totalorder %v1520, %v1536
        %vm1745 = vcmp.eq.s32.totalorder %v1520, %v1537
        %vm1746 = vcmp.eq.s32.totalorder %v1521, %v1534
        %vm1747 = vcmp.eq.s32.totalorder %v1521, %v1535
        %vm1748 = vcmp.eq.s32.totalorder %v1521, %v1536
        %vm1749 = vcmp.eq.s32.totalorder %v1521, %v1537
        %vm1750 = vcmp.eq.s32.totalorder %v1522, %v1534
        %vm1751 = vcmp.eq.s32.totalorder %v1522, %v1535
        %vm1752 = vcmp.eq.s32.totalorder %v1522, %v1536
        %vm1753 = vcmp.eq.s32.totalorder %v1522, %v1537
        %vm1754 = vcmp.eq.s32.totalorder %v1523, %v1534
        %vm1755 = vcmp.eq.s32.totalorder %v1523, %v1535
        %vm1756 = vcmp.eq.s32.totalorder %v1523, %v1536
        %vm1757 = vcmp.eq.s32.totalorder %v1523, %v1537
        %vm1758 = vcmp.eq.s32.totalorder %v1524, %v1534
        %vm1759 = vcmp.eq.s32.totalorder %v1524, %v1535
        %vm1760 = vcmp.eq.s32.totalorder %v1524, %v1536
        %vm1761 = vcmp.eq.s32.totalorder %v1524, %v1537
        %vm1762 = vcmp.eq.s32.totalorder %v1525, %v1534
        %vm1763 = vcmp.eq.s32.totalorder %v1525, %v1535
        %vm1764 = vcmp.eq.s32.totalorder %v1525, %v1536
        %vm1765 = vcmp.eq.s32.totalorder %v1525, %v1537
        %vm1766 = vcmp.eq.s32.totalorder %v1526, %v1534
        %vm1767 = vcmp.eq.s32.totalorder %v1526, %v1535
        %vm1768 = vcmp.eq.s32.totalorder %v1526, %v1536
        %vm1769 = vcmp.eq.s32.totalorder %v1526, %v1537
        %vm1770 = vcmp.eq.s32.totalorder %v1527, %v1534
        %vm1771 = vcmp.eq.s32.totalorder %v1527, %v1535
        %vm1772 = vcmp.eq.s32.totalorder %v1527, %v1536
        %vm1773 = vcmp.eq.s32.totalorder %v1527, %v1537
        %vm1774 = vcmp.eq.s32.totalorder %v1528, %v1534
        %vm1775 = vcmp.eq.s32.totalorder %v1528, %v1535
        %vm1776 = vcmp.eq.s32.totalorder %v1528, %v1536
        %vm1777 = vcmp.eq.s32.totalorder %v1528, %v1537
        %vm1778 = vcmp.eq.s32.totalorder %v1529, %v1534
        %vm1779 = vcmp.eq.s32.totalorder %v1529, %v1535
        %vm1780 = vcmp.eq.s32.totalorder %v1529, %v1536
        %vm1781 = vcmp.eq.s32.totalorder %v1529, %v1537
        %vm1782 = vcmp.eq.s32.totalorder %v1530, %v1534
        %vm1783 = vcmp.eq.s32.totalorder %v1530, %v1535
        %vm1784 = vcmp.eq.s32.totalorder %v1530, %v1536
        %vm1785 = vcmp.eq.s32.totalorder %v1530, %v1537
        %vm1786 = vcmp.eq.s32.totalorder %v1531, %v1534
        %vm1787 = vcmp.eq.s32.totalorder %v1531, %v1535
        %vm1788 = vcmp.eq.s32.totalorder %v1531, %v1536
        %vm1789 = vcmp.eq.s32.totalorder %v1531, %v1537
        %vm1790 = vcmp.eq.s32.totalorder %v1532, %v1534
        %vm1791 = vcmp.eq.s32.totalorder %v1532, %v1535
        %vm1792 = vcmp.eq.s32.totalorder %v1532, %v1536
        %vm1793 = vcmp.eq.s32.totalorder %v1532, %v1537
        %s1794 = smul.u32 %s33, 512
        %v1796 = vperm.slane %v437, 0
        %v1797 = vperm.slane %v437, 1
        %v1798 = vperm.slane %v437, 2
        %v1799 = vperm.slane %v437, 3
        %v1804 = vsel %vm1538, %v1796, 0.0
        %v1805 = vsel %vm1539, %v1797, 0.0
        %v1806 = vsel %vm1540, %v1798, 0.0
        %v1807 = vsel %vm1541, %v1799, 0.0
        %v1808 = vsel %vm1542, %v1796, 0.0
        %v1809 = vsel %vm1543, %v1797, 0.0
        %v1810 = vsel %vm1544, %v1798, 0.0
        %v1811 = vsel %vm1545, %v1799, 0.0
        %v1812 = vsel %vm1546, %v1796, 0.0
        %v1813 = vsel %vm1547, %v1797, 0.0
        %v1814 = vsel %vm1548, %v1798, 0.0
        %v1815 = vsel %vm1549, %v1799, 0.0
        %v1816 = vsel %vm1550, %v1796, 0.0
        %v1817 = vsel %vm1551, %v1797, 0.0
        %v1818 = vsel %vm1552, %v1798, 0.0
        %v1819 = vsel %vm1553, %v1799, 0.0
        %v1820 = vsel %vm1554, %v1796, 0.0
        %v1821 = vsel %vm1555, %v1797, 0.0
        %v1822 = vsel %vm1556, %v1798, 0.0
        %v1823 = vsel %vm1557, %v1799, 0.0
        %v1824 = vsel %vm1558, %v1796, 0.0
        %v1825 = vsel %vm1559, %v1797, 0.0
        %v1826 = vsel %vm1560, %v1798, 0.0
        %v1827 = vsel %vm1561, %v1799, 0.0
        %v1828 = vsel %vm1562, %v1796, 0.0
        %v1829 = vsel %vm1563, %v1797, 0.0
        %v1830 = vsel %vm1564, %v1798, 0.0
        %v1831 = vsel %vm1565, %v1799, 0.0
        %v1832 = vsel %vm1566, %v1796, 0.0
        %v1833 = vsel %vm1567, %v1797, 0.0
        %v1834 = vsel %vm1568, %v1798, 0.0
        %v1835 = vsel %vm1569, %v1799, 0.0
        %v1836 = vsel %vm1570, %v1796, 0.0
        %v1837 = vsel %vm1571, %v1797, 0.0
        %v1838 = vsel %vm1572, %v1798, 0.0
        %v1839 = vsel %vm1573, %v1799, 0.0
        %v1840 = vsel %vm1574, %v1796, 0.0
        %v1841 = vsel %vm1575, %v1797, 0.0
        %v1842 = vsel %vm1576, %v1798, 0.0
        %v1843 = vsel %vm1577, %v1799, 0.0
        %v1844 = vsel %vm1578, %v1796, 0.0
        %v1845 = vsel %vm1579, %v1797, 0.0
        %v1846 = vsel %vm1580, %v1798, 0.0
        %v1847 = vsel %vm1581, %v1799, 0.0
        %v1848 = vsel %vm1582, %v1796, 0.0
        %v1849 = vsel %vm1583, %v1797, 0.0
        %v1850 = vsel %vm1584, %v1798, 0.0
        %v1851 = vsel %vm1585, %v1799, 0.0
        %v1852 = vsel %vm1586, %v1796, 0.0
        %v1853 = vsel %vm1587, %v1797, 0.0
        %v1854 = vsel %vm1588, %v1798, 0.0
        %v1855 = vsel %vm1589, %v1799, 0.0
        %v1856 = vsel %vm1590, %v1796, 0.0
        %v1857 = vsel %vm1591, %v1797, 0.0
        %v1858 = vsel %vm1592, %v1798, 0.0
        %v1859 = vsel %vm1593, %v1799, 0.0
        %v1860 = vsel %vm1594, %v1796, 0.0
        %v1861 = vsel %vm1595, %v1797, 0.0
        %v1862 = vsel %vm1596, %v1798, 0.0
        %v1863 = vsel %vm1597, %v1799, 0.0
        %v1864 = vsel %vm1598, %v1796, 0.0
        %v1865 = vsel %vm1599, %v1797, 0.0
        %v1866 = vsel %vm1600, %v1798, 0.0
        %v1867 = vsel %vm1601, %v1799, 0.0
        %v1868 = vsel %vm1602, %v1796, 0.0
        %v1869 = vsel %vm1603, %v1797, 0.0
        %v1870 = vsel %vm1604, %v1798, 0.0
        %v1871 = vsel %vm1605, %v1799, 0.0
        %v1872 = vsel %vm1606, %v1796, 0.0
        %v1873 = vsel %vm1607, %v1797, 0.0
        %v1874 = vsel %vm1608, %v1798, 0.0
        %v1875 = vsel %vm1609, %v1799, 0.0
        %v1876 = vsel %vm1610, %v1796, 0.0
        %v1877 = vsel %vm1611, %v1797, 0.0
        %v1878 = vsel %vm1612, %v1798, 0.0
        %v1879 = vsel %vm1613, %v1799, 0.0
        %v1880 = vsel %vm1614, %v1796, 0.0
        %v1881 = vsel %vm1615, %v1797, 0.0
        %v1882 = vsel %vm1616, %v1798, 0.0
        %v1883 = vsel %vm1617, %v1799, 0.0
        %v1884 = vsel %vm1618, %v1796, 0.0
        %v1885 = vsel %vm1619, %v1797, 0.0
        %v1886 = vsel %vm1620, %v1798, 0.0
        %v1887 = vsel %vm1621, %v1799, 0.0
        %v1888 = vsel %vm1622, %v1796, 0.0
        %v1889 = vsel %vm1623, %v1797, 0.0
        %v1890 = vsel %vm1624, %v1798, 0.0
        %v1891 = vsel %vm1625, %v1799, 0.0
        %v1892 = vsel %vm1626, %v1796, 0.0
        %v1893 = vsel %vm1627, %v1797, 0.0
        %v1894 = vsel %vm1628, %v1798, 0.0
        %v1895 = vsel %vm1629, %v1799, 0.0
        %v1896 = vsel %vm1630, %v1796, 0.0
        %v1897 = vsel %vm1631, %v1797, 0.0
        %v1898 = vsel %vm1632, %v1798, 0.0
        %v1899 = vsel %vm1633, %v1799, 0.0
        %v1900 = vsel %vm1634, %v1796, 0.0
        %v1901 = vsel %vm1635, %v1797, 0.0
        %v1902 = vsel %vm1636, %v1798, 0.0
        %v1903 = vsel %vm1637, %v1799, 0.0
        %v1904 = vsel %vm1638, %v1796, 0.0
        %v1905 = vsel %vm1639, %v1797, 0.0
        %v1906 = vsel %vm1640, %v1798, 0.0
        %v1907 = vsel %vm1641, %v1799, 0.0
        %v1908 = vsel %vm1642, %v1796, 0.0
        %v1909 = vsel %vm1643, %v1797, 0.0
        %v1910 = vsel %vm1644, %v1798, 0.0
        %v1911 = vsel %vm1645, %v1799, 0.0
        %v1912 = vsel %vm1646, %v1796, 0.0
        %v1913 = vsel %vm1647, %v1797, 0.0
        %v1914 = vsel %vm1648, %v1798, 0.0
        %v1915 = vsel %vm1649, %v1799, 0.0
        %v1916 = vsel %vm1650, %v1796, 0.0
        %v1917 = vsel %vm1651, %v1797, 0.0
        %v1918 = vsel %vm1652, %v1798, 0.0
        %v1919 = vsel %vm1653, %v1799, 0.0
        %v1920 = vsel %vm1654, %v1796, 0.0
        %v1921 = vsel %vm1655, %v1797, 0.0
        %v1922 = vsel %vm1656, %v1798, 0.0
        %v1923 = vsel %vm1657, %v1799, 0.0
        %v1924 = vsel %vm1658, %v1796, 0.0
        %v1925 = vsel %vm1659, %v1797, 0.0
        %v1926 = vsel %vm1660, %v1798, 0.0
        %v1927 = vsel %vm1661, %v1799, 0.0
        %v1928 = vsel %vm1662, %v1796, 0.0
        %v1929 = vsel %vm1663, %v1797, 0.0
        %v1930 = vsel %vm1664, %v1798, 0.0
        %v1931 = vsel %vm1665, %v1799, 0.0
        %v1932 = vsel %vm1666, %v1796, 0.0
        %v1933 = vsel %vm1667, %v1797, 0.0
        %v1934 = vsel %vm1668, %v1798, 0.0
        %v1935 = vsel %vm1669, %v1799, 0.0
        %v1936 = vsel %vm1670, %v1796, 0.0
        %v1937 = vsel %vm1671, %v1797, 0.0
        %v1938 = vsel %vm1672, %v1798, 0.0
        %v1939 = vsel %vm1673, %v1799, 0.0
        %v1940 = vsel %vm1674, %v1796, 0.0
        %v1941 = vsel %vm1675, %v1797, 0.0
        %v1942 = vsel %vm1676, %v1798, 0.0
        %v1943 = vsel %vm1677, %v1799, 0.0
        %v1944 = vsel %vm1678, %v1796, 0.0
        %v1945 = vsel %vm1679, %v1797, 0.0
        %v1946 = vsel %vm1680, %v1798, 0.0
        %v1947 = vsel %vm1681, %v1799, 0.0
        %v1948 = vsel %vm1682, %v1796, 0.0
        %v1949 = vsel %vm1683, %v1797, 0.0
        %v1950 = vsel %vm1684, %v1798, 0.0
        %v1951 = vsel %vm1685, %v1799, 0.0
        %v1952 = vsel %vm1686, %v1796, 0.0
        %v1953 = vsel %vm1687, %v1797, 0.0
        %v1954 = vsel %vm1688, %v1798, 0.0
        %v1955 = vsel %vm1689, %v1799, 0.0
        %v1956 = vsel %vm1690, %v1796, 0.0
        %v1957 = vsel %vm1691, %v1797, 0.0
        %v1958 = vsel %vm1692, %v1798, 0.0
        %v1959 = vsel %vm1693, %v1799, 0.0
        %v1960 = vsel %vm1694, %v1796, 0.0
        %v1961 = vsel %vm1695, %v1797, 0.0
        %v1962 = vsel %vm1696, %v1798, 0.0
        %v1963 = vsel %vm1697, %v1799, 0.0
        %v1964 = vsel %vm1698, %v1796, 0.0
        %v1965 = vsel %vm1699, %v1797, 0.0
        %v1966 = vsel %vm1700, %v1798, 0.0
        %v1967 = vsel %vm1701, %v1799, 0.0
        %v1968 = vsel %vm1702, %v1796, 0.0
        %v1969 = vsel %vm1703, %v1797, 0.0
        %v1970 = vsel %vm1704, %v1798, 0.0
        %v1971 = vsel %vm1705, %v1799, 0.0
        %v1972 = vsel %vm1706, %v1796, 0.0
        %v1973 = vsel %vm1707, %v1797, 0.0
        %v1974 = vsel %vm1708, %v1798, 0.0
        %v1975 = vsel %vm1709, %v1799, 0.0
        %v1976 = vsel %vm1710, %v1796, 0.0
        %v1977 = vsel %vm1711, %v1797, 0.0
        %v1978 = vsel %vm1712, %v1798, 0.0
        %v1979 = vsel %vm1713, %v1799, 0.0
        %v1980 = vsel %vm1714, %v1796, 0.0
        %v1981 = vsel %vm1715, %v1797, 0.0
        %v1982 = vsel %vm1716, %v1798, 0.0
        %v1983 = vsel %vm1717, %v1799, 0.0
        %v1984 = vsel %vm1718, %v1796, 0.0
        %v1985 = vsel %vm1719, %v1797, 0.0
        %v1986 = vsel %vm1720, %v1798, 0.0
        %v1987 = vsel %vm1721, %v1799, 0.0
        %v1988 = vsel %vm1722, %v1796, 0.0
        %v1989 = vsel %vm1723, %v1797, 0.0
        %v1990 = vsel %vm1724, %v1798, 0.0
        %v1991 = vsel %vm1725, %v1799, 0.0
        %v1992 = vsel %vm1726, %v1796, 0.0
        %v1993 = vsel %vm1727, %v1797, 0.0
        %v1994 = vsel %vm1728, %v1798, 0.0
        %v1995 = vsel %vm1729, %v1799, 0.0
        %v1996 = vsel %vm1730, %v1796, 0.0
        %v1997 = vsel %vm1731, %v1797, 0.0
        %v1998 = vsel %vm1732, %v1798, 0.0
        %v1999 = vsel %vm1733, %v1799, 0.0
        %v2000 = vsel %vm1734, %v1796, 0.0
        %v2001 = vsel %vm1735, %v1797, 0.0
        %v2002 = vsel %vm1736, %v1798, 0.0
        %v2003 = vsel %vm1737, %v1799, 0.0
        %v2004 = vsel %vm1738, %v1796, 0.0
        %v2005 = vsel %vm1739, %v1797, 0.0
        %v2006 = vsel %vm1740, %v1798, 0.0
        %v2007 = vsel %vm1741, %v1799, 0.0
        %v2008 = vsel %vm1742, %v1796, 0.0
        %v2009 = vsel %vm1743, %v1797, 0.0
        %v2010 = vsel %vm1744, %v1798, 0.0
        %v2011 = vsel %vm1745, %v1799, 0.0
        %v2012 = vsel %vm1746, %v1796, 0.0
        %v2013 = vsel %vm1747, %v1797, 0.0
        %v2014 = vsel %vm1748, %v1798, 0.0
        %v2015 = vsel %vm1749, %v1799, 0.0
        %v2016 = vsel %vm1750, %v1796, 0.0
        %v2017 = vsel %vm1751, %v1797, 0.0
        %v2018 = vsel %vm1752, %v1798, 0.0
        %v2019 = vsel %vm1753, %v1799, 0.0
        %v2020 = vsel %vm1754, %v1796, 0.0
        %v2021 = vsel %vm1755, %v1797, 0.0
        %v2022 = vsel %vm1756, %v1798, 0.0
        %v2023 = vsel %vm1757, %v1799, 0.0
        %v2024 = vsel %vm1758, %v1796, 0.0
        %v2025 = vsel %vm1759, %v1797, 0.0
        %v2026 = vsel %vm1760, %v1798, 0.0
        %v2027 = vsel %vm1761, %v1799, 0.0
        %v2028 = vsel %vm1762, %v1796, 0.0
        %v2029 = vsel %vm1763, %v1797, 0.0
        %v2030 = vsel %vm1764, %v1798, 0.0
        %v2031 = vsel %vm1765, %v1799, 0.0
        %v2032 = vsel %vm1766, %v1796, 0.0
        %v2033 = vsel %vm1767, %v1797, 0.0
        %v2034 = vsel %vm1768, %v1798, 0.0
        %v2035 = vsel %vm1769, %v1799, 0.0
        %v2036 = vsel %vm1770, %v1796, 0.0
        %v2037 = vsel %vm1771, %v1797, 0.0
        %v2038 = vsel %vm1772, %v1798, 0.0
        %v2039 = vsel %vm1773, %v1799, 0.0
        %v2040 = vsel %vm1774, %v1796, 0.0
        %v2041 = vsel %vm1775, %v1797, 0.0
        %v2042 = vsel %vm1776, %v1798, 0.0
        %v2043 = vsel %vm1777, %v1799, 0.0
        %v2044 = vsel %vm1778, %v1796, 0.0
        %v2045 = vsel %vm1779, %v1797, 0.0
        %v2046 = vsel %vm1780, %v1798, 0.0
        %v2047 = vsel %vm1781, %v1799, 0.0
        %v2048 = vsel %vm1782, %v1796, 0.0
        %v2049 = vsel %vm1783, %v1797, 0.0
        %v2050 = vsel %vm1784, %v1798, 0.0
        %v2051 = vsel %vm1785, %v1799, 0.0
        %v2052 = vsel %vm1786, %v1796, 0.0
        %v2053 = vsel %vm1787, %v1797, 0.0
        %v2054 = vsel %vm1788, %v1798, 0.0
        %v2055 = vsel %vm1789, %v1799, 0.0
        %v2056 = vsel %vm1790, %v1796, 0.0
        %v2057 = vsel %vm1791, %v1797, 0.0
        %v2058 = vsel %vm1792, %v1798, 0.0
        %v2059 = vsel %vm1793, %v1799, 0.0
        %s2060 = sshra.s32 %s1794, 7
        %s2061 = sand.u32 %s1794, 127
        %s2062 = smul.addr %s2060, 8
        %s2063 = scalar_lea.vmem %s350, %s2062 [#allocation8]
        %2064 = vst [vmem:[%s2063] sm:$0xff] %v1804
        %2065 = vst [vmem:[%s2063 + $0x8] sm:$0xff] %v1805
        %2066 = vst [vmem:[%s2063 + $0x10] sm:$0xff] %v1806
        %2067 = vst [vmem:[%s2063 + $0x18] sm:$0xff] %v1807
        %2068 = vst [vmem:[%s2063 + $0x40] sm:$0xff] %v1808
        %2069 = vst [vmem:[%s2063 + $0x48] sm:$0xff] %v1809
        %2070 = vst [vmem:[%s2063 + $0x50] sm:$0xff] %v1810
        %2071 = vst [vmem:[%s2063 + $0x58] sm:$0xff] %v1811
        %2072 = vst [vmem:[%s2063 + $0x80] sm:$0xff] %v1812
        %2073 = vst [vmem:[%s2063 + $0x88] sm:$0xff] %v1813
        %2074 = vst [vmem:[%s2063 + $0x90] sm:$0xff] %v1814
        %2075 = vst [vmem:[%s2063 + $0x98] sm:$0xff] %v1815
        %2076 = vst [vmem:[%s2063 + $0xc0] sm:$0xff] %v1816
        %2077 = vst [vmem:[%s2063 + $0xc8] sm:$0xff] %v1817
        %2078 = vst [vmem:[%s2063 + $0xd0] sm:$0xff] %v1818
        %2079 = vst [vmem:[%s2063 + $0xd8] sm:$0xff] %v1819
        %2080 = vst [vmem:[%s2063 + $0x100] sm:$0xff] %v1820
        %2081 = vst [vmem:[%s2063 + $0x108] sm:$0xff] %v1821
        %2082 = vst [vmem:[%s2063 + $0x110] sm:$0xff] %v1822
        %2083 = vst [vmem:[%s2063 + $0x118] sm:$0xff] %v1823
        %2084 = vst [vmem:[%s2063 + $0x140] sm:$0xff] %v1824
        %2085 = vst [vmem:[%s2063 + $0x148] sm:$0xff] %v1825
        %2086 = vst [vmem:[%s2063 + $0x150] sm:$0xff] %v1826
        %2087 = vst [vmem:[%s2063 + $0x158] sm:$0xff] %v1827
        %2088 = vst [vmem:[%s2063 + $0x180] sm:$0xff] %v1828
        %2089 = vst [vmem:[%s2063 + $0x188] sm:$0xff] %v1829
        %2090 = vst [vmem:[%s2063 + $0x190] sm:$0xff] %v1830
        %2091 = vst [vmem:[%s2063 + $0x198] sm:$0xff] %v1831
        %2092 = vst [vmem:[%s2063 + $0x1c0] sm:$0xff] %v1832
        %2093 = vst [vmem:[%s2063 + $0x1c8] sm:$0xff] %v1833
        %2094 = vst [vmem:[%s2063 + $0x1d0] sm:$0xff] %v1834
        %2095 = vst [vmem:[%s2063 + $0x1d8] sm:$0xff] %v1835
        %2096 = vst [vmem:[%s2063 + $0x200] sm:$0xff] %v1836
        %2097 = vst [vmem:[%s2063 + $0x208] sm:$0xff] %v1837
        %2098 = vst [vmem:[%s2063 + $0x210] sm:$0xff] %v1838
        %2099 = vst [vmem:[%s2063 + $0x218] sm:$0xff] %v1839
        %2100 = vst [vmem:[%s2063 + $0x240] sm:$0xff] %v1840
        %2101 = vst [vmem:[%s2063 + $0x248] sm:$0xff] %v1841
        %2102 = vst [vmem:[%s2063 + $0x250] sm:$0xff] %v1842
        %2103 = vst [vmem:[%s2063 + $0x258] sm:$0xff] %v1843
        %2104 = vst [vmem:[%s2063 + $0x280] sm:$0xff] %v1844
        %2105 = vst [vmem:[%s2063 + $0x288] sm:$0xff] %v1845
        %2106 = vst [vmem:[%s2063 + $0x290] sm:$0xff] %v1846
        %2107 = vst [vmem:[%s2063 + $0x298] sm:$0xff] %v1847
        %2108 = vst [vmem:[%s2063 + $0x2c0] sm:$0xff] %v1848
        %2109 = vst [vmem:[%s2063 + $0x2c8] sm:$0xff] %v1849
        %2110 = vst [vmem:[%s2063 + $0x2d0] sm:$0xff] %v1850
        %2111 = vst [vmem:[%s2063 + $0x2d8] sm:$0xff] %v1851
        %2112 = vst [vmem:[%s2063 + $0x300] sm:$0xff] %v1852
        %2113 = vst [vmem:[%s2063 + $0x308] sm:$0xff] %v1853
        %2114 = vst [vmem:[%s2063 + $0x310] sm:$0xff] %v1854
        %2115 = vst [vmem:[%s2063 + $0x318] sm:$0xff] %v1855
        %2116 = vst [vmem:[%s2063 + $0x340] sm:$0xff] %v1856
        %2117 = vst [vmem:[%s2063 + $0x348] sm:$0xff] %v1857
        %2118 = vst [vmem:[%s2063 + $0x350] sm:$0xff] %v1858
        %2119 = vst [vmem:[%s2063 + $0x358] sm:$0xff] %v1859
        %2120 = vst [vmem:[%s2063 + $0x380] sm:$0xff] %v1860
        %2121 = vst [vmem:[%s2063 + $0x388] sm:$0xff] %v1861
        %2122 = vst [vmem:[%s2063 + $0x390] sm:$0xff] %v1862
        %2123 = vst [vmem:[%s2063 + $0x398] sm:$0xff] %v1863
        %2124 = vst [vmem:[%s2063 + $0x3c0] sm:$0xff] %v1864
        %2125 = vst [vmem:[%s2063 + $0x3c8] sm:$0xff] %v1865
        %2126 = vst [vmem:[%s2063 + $0x3d0] sm:$0xff] %v1866
        %2127 = vst [vmem:[%s2063 + $0x3d8] sm:$0xff] %v1867
        %2128 = vst [vmem:[%s2063 + $0x400] sm:$0xff] %v1868
        %2129 = vst [vmem:[%s2063 + $0x408] sm:$0xff] %v1869
        %2130 = vst [vmem:[%s2063 + $0x410] sm:$0xff] %v1870
        %2131 = vst [vmem:[%s2063 + $0x418] sm:$0xff] %v1871
        %2132 = vst [vmem:[%s2063 + $0x440] sm:$0xff] %v1872
        %2133 = vst [vmem:[%s2063 + $0x448] sm:$0xff] %v1873
        %2134 = vst [vmem:[%s2063 + $0x450] sm:$0xff] %v1874
        %2135 = vst [vmem:[%s2063 + $0x458] sm:$0xff] %v1875
        %2136 = vst [vmem:[%s2063 + $0x480] sm:$0xff] %v1876
        %2137 = vst [vmem:[%s2063 + $0x488] sm:$0xff] %v1877
        %2138 = vst [vmem:[%s2063 + $0x490] sm:$0xff] %v1878
        %2139 = vst [vmem:[%s2063 + $0x498] sm:$0xff] %v1879
        %2140 = vst [vmem:[%s2063 + $0x4c0] sm:$0xff] %v1880
        %2141 = vst [vmem:[%s2063 + $0x4c8] sm:$0xff] %v1881
        %2142 = vst [vmem:[%s2063 + $0x4d0] sm:$0xff] %v1882
        %2143 = vst [vmem:[%s2063 + $0x4d8] sm:$0xff] %v1883
        %2144 = vst [vmem:[%s2063 + $0x500] sm:$0xff] %v1884
        %2145 = vst [vmem:[%s2063 + $0x508] sm:$0xff] %v1885
        %2146 = vst [vmem:[%s2063 + $0x510] sm:$0xff] %v1886
        %2147 = vst [vmem:[%s2063 + $0x518] sm:$0xff] %v1887
        %2148 = vst [vmem:[%s2063 + $0x540] sm:$0xff] %v1888
        %2149 = vst [vmem:[%s2063 + $0x548] sm:$0xff] %v1889
        %2150 = vst [vmem:[%s2063 + $0x550] sm:$0xff] %v1890
        %2151 = vst [vmem:[%s2063 + $0x558] sm:$0xff] %v1891
        %2152 = vst [vmem:[%s2063 + $0x580] sm:$0xff] %v1892
        %2153 = vst [vmem:[%s2063 + $0x588] sm:$0xff] %v1893
        %2154 = vst [vmem:[%s2063 + $0x590] sm:$0xff] %v1894
        %2155 = vst [vmem:[%s2063 + $0x598] sm:$0xff] %v1895
        %2156 = vst [vmem:[%s2063 + $0x5c0] sm:$0xff] %v1896
        %2157 = vst [vmem:[%s2063 + $0x5c8] sm:$0xff] %v1897
        %2158 = vst [vmem:[%s2063 + $0x5d0] sm:$0xff] %v1898
        %2159 = vst [vmem:[%s2063 + $0x5d8] sm:$0xff] %v1899
        %2160 = vst [vmem:[%s2063 + $0x600] sm:$0xff] %v1900
        %2161 = vst [vmem:[%s2063 + $0x608] sm:$0xff] %v1901
        %2162 = vst [vmem:[%s2063 + $0x610] sm:$0xff] %v1902
        %2163 = vst [vmem:[%s2063 + $0x618] sm:$0xff] %v1903
        %2164 = vst [vmem:[%s2063 + $0x640] sm:$0xff] %v1904
        %2165 = vst [vmem:[%s2063 + $0x648] sm:$0xff] %v1905
        %2166 = vst [vmem:[%s2063 + $0x650] sm:$0xff] %v1906
        %2167 = vst [vmem:[%s2063 + $0x658] sm:$0xff] %v1907
        %2168 = vst [vmem:[%s2063 + $0x680] sm:$0xff] %v1908
        %2169 = vst [vmem:[%s2063 + $0x688] sm:$0xff] %v1909
        %2170 = vst [vmem:[%s2063 + $0x690] sm:$0xff] %v1910
        %2171 = vst [vmem:[%s2063 + $0x698] sm:$0xff] %v1911
        %2172 = vst [vmem:[%s2063 + $0x6c0] sm:$0xff] %v1912
        %2173 = vst [vmem:[%s2063 + $0x6c8] sm:$0xff] %v1913
        %2174 = vst [vmem:[%s2063 + $0x6d0] sm:$0xff] %v1914
        %2175 = vst [vmem:[%s2063 + $0x6d8] sm:$0xff] %v1915
        %2176 = vst [vmem:[%s2063 + $0x700] sm:$0xff] %v1916
        %2177 = vst [vmem:[%s2063 + $0x708] sm:$0xff] %v1917
        %2178 = vst [vmem:[%s2063 + $0x710] sm:$0xff] %v1918
        %2179 = vst [vmem:[%s2063 + $0x718] sm:$0xff] %v1919
        %2180 = vst [vmem:[%s2063 + $0x740] sm:$0xff] %v1920
        %2181 = vst [vmem:[%s2063 + $0x748] sm:$0xff] %v1921
        %2182 = vst [vmem:[%s2063 + $0x750] sm:$0xff] %v1922
        %2183 = vst [vmem:[%s2063 + $0x758] sm:$0xff] %v1923
        %2184 = vst [vmem:[%s2063 + $0x780] sm:$0xff] %v1924
        %2185 = vst [vmem:[%s2063 + $0x788] sm:$0xff] %v1925
        %2186 = vst [vmem:[%s2063 + $0x790] sm:$0xff] %v1926
        %2187 = vst [vmem:[%s2063 + $0x798] sm:$0xff] %v1927
        %2188 = vst [vmem:[%s2063 + $0x7c0] sm:$0xff] %v1928
        %2189 = vst [vmem:[%s2063 + $0x7c8] sm:$0xff] %v1929
        %2190 = vst [vmem:[%s2063 + $0x7d0] sm:$0xff] %v1930
        %2191 = vst [vmem:[%s2063 + $0x7d8] sm:$0xff] %v1931
        %2192 = vst [vmem:[%s2063 + $0x800] sm:$0xff] %v1932
        %2193 = vst [vmem:[%s2063 + $0x808] sm:$0xff] %v1933
        %2194 = vst [vmem:[%s2063 + $0x810] sm:$0xff] %v1934
        %2195 = vst [vmem:[%s2063 + $0x818] sm:$0xff] %v1935
        %2196 = vst [vmem:[%s2063 + $0x840] sm:$0xff] %v1936
        %2197 = vst [vmem:[%s2063 + $0x848] sm:$0xff] %v1937
        %2198 = vst [vmem:[%s2063 + $0x850] sm:$0xff] %v1938
        %2199 = vst [vmem:[%s2063 + $0x858] sm:$0xff] %v1939
        %2200 = vst [vmem:[%s2063 + $0x880] sm:$0xff] %v1940
        %2201 = vst [vmem:[%s2063 + $0x888] sm:$0xff] %v1941
        %2202 = vst [vmem:[%s2063 + $0x890] sm:$0xff] %v1942
        %2203 = vst [vmem:[%s2063 + $0x898] sm:$0xff] %v1943
        %2204 = vst [vmem:[%s2063 + $0x8c0] sm:$0xff] %v1944
        %2205 = vst [vmem:[%s2063 + $0x8c8] sm:$0xff] %v1945
        %2206 = vst [vmem:[%s2063 + $0x8d0] sm:$0xff] %v1946
        %2207 = vst [vmem:[%s2063 + $0x8d8] sm:$0xff] %v1947
        %2208 = vst [vmem:[%s2063 + $0x900] sm:$0xff] %v1948
        %2209 = vst [vmem:[%s2063 + $0x908] sm:$0xff] %v1949
        %2210 = vst [vmem:[%s2063 + $0x910] sm:$0xff] %v1950
        %2211 = vst [vmem:[%s2063 + $0x918] sm:$0xff] %v1951
        %2212 = vst [vmem:[%s2063 + $0x940] sm:$0xff] %v1952
        %2213 = vst [vmem:[%s2063 + $0x948] sm:$0xff] %v1953
        %2214 = vst [vmem:[%s2063 + $0x950] sm:$0xff] %v1954
        %2215 = vst [vmem:[%s2063 + $0x958] sm:$0xff] %v1955
        %2216 = vst [vmem:[%s2063 + $0x980] sm:$0xff] %v1956
        %2217 = vst [vmem:[%s2063 + $0x988] sm:$0xff] %v1957
        %2218 = vst [vmem:[%s2063 + $0x990] sm:$0xff] %v1958
        %2219 = vst [vmem:[%s2063 + $0x998] sm:$0xff] %v1959
        %2220 = vst [vmem:[%s2063 + $0x9c0] sm:$0xff] %v1960
        %2221 = vst [vmem:[%s2063 + $0x9c8] sm:$0xff] %v1961
        %2222 = vst [vmem:[%s2063 + $0x9d0] sm:$0xff] %v1962
        %2223 = vst [vmem:[%s2063 + $0x9d8] sm:$0xff] %v1963
        %2224 = vst [vmem:[%s2063 + $0xa00] sm:$0xff] %v1964
        %2225 = vst [vmem:[%s2063 + $0xa08] sm:$0xff] %v1965
        %2226 = vst [vmem:[%s2063 + $0xa10] sm:$0xff] %v1966
        %2227 = vst [vmem:[%s2063 + $0xa18] sm:$0xff] %v1967
        %2228 = vst [vmem:[%s2063 + $0xa40] sm:$0xff] %v1968
        %2229 = vst [vmem:[%s2063 + $0xa48] sm:$0xff] %v1969
        %2230 = vst [vmem:[%s2063 + $0xa50] sm:$0xff] %v1970
        %2231 = vst [vmem:[%s2063 + $0xa58] sm:$0xff] %v1971
        %2232 = vst [vmem:[%s2063 + $0xa80] sm:$0xff] %v1972
        %2233 = vst [vmem:[%s2063 + $0xa88] sm:$0xff] %v1973
        %2234 = vst [vmem:[%s2063 + $0xa90] sm:$0xff] %v1974
        %2235 = vst [vmem:[%s2063 + $0xa98] sm:$0xff] %v1975
        %2236 = vst [vmem:[%s2063 + $0xac0] sm:$0xff] %v1976
        %2237 = vst [vmem:[%s2063 + $0xac8] sm:$0xff] %v1977
        %2238 = vst [vmem:[%s2063 + $0xad0] sm:$0xff] %v1978
        %2239 = vst [vmem:[%s2063 + $0xad8] sm:$0xff] %v1979
        %2240 = vst [vmem:[%s2063 + $0xb00] sm:$0xff] %v1980
        %2241 = vst [vmem:[%s2063 + $0xb08] sm:$0xff] %v1981
        %2242 = vst [vmem:[%s2063 + $0xb10] sm:$0xff] %v1982
        %2243 = vst [vmem:[%s2063 + $0xb18] sm:$0xff] %v1983
        %2244 = vst [vmem:[%s2063 + $0xb40] sm:$0xff] %v1984
        %2245 = vst [vmem:[%s2063 + $0xb48] sm:$0xff] %v1985
        %2246 = vst [vmem:[%s2063 + $0xb50] sm:$0xff] %v1986
        %2247 = vst [vmem:[%s2063 + $0xb58] sm:$0xff] %v1987
        %2248 = vst [vmem:[%s2063 + $0xb80] sm:$0xff] %v1988
        %2249 = vst [vmem:[%s2063 + $0xb88] sm:$0xff] %v1989
        %2250 = vst [vmem:[%s2063 + $0xb90] sm:$0xff] %v1990
        %2251 = vst [vmem:[%s2063 + $0xb98] sm:$0xff] %v1991
        %2252 = vst [vmem:[%s2063 + $0xbc0] sm:$0xff] %v1992
        %2253 = vst [vmem:[%s2063 + $0xbc8] sm:$0xff] %v1993
        %2254 = vst [vmem:[%s2063 + $0xbd0] sm:$0xff] %v1994
        %2255 = vst [vmem:[%s2063 + $0xbd8] sm:$0xff] %v1995
        %2256 = vst [vmem:[%s2063 + $0xc00] sm:$0xff] %v1996
        %2257 = vst [vmem:[%s2063 + $0xc08] sm:$0xff] %v1997
        %2258 = vst [vmem:[%s2063 + $0xc10] sm:$0xff] %v1998
        %2259 = vst [vmem:[%s2063 + $0xc18] sm:$0xff] %v1999
        %2260 = vst [vmem:[%s2063 + $0xc40] sm:$0xff] %v2000
        %2261 = vst [vmem:[%s2063 + $0xc48] sm:$0xff] %v2001
        %2262 = vst [vmem:[%s2063 + $0xc50] sm:$0xff] %v2002
        %2263 = vst [vmem:[%s2063 + $0xc58] sm:$0xff] %v2003
        %2264 = vst [vmem:[%s2063 + $0xc80] sm:$0xff] %v2004
        %2265 = vst [vmem:[%s2063 + $0xc88] sm:$0xff] %v2005
        %2266 = vst [vmem:[%s2063 + $0xc90] sm:$0xff] %v2006
        %2267 = vst [vmem:[%s2063 + $0xc98] sm:$0xff] %v2007
        %2268 = vst [vmem:[%s2063 + $0xcc0] sm:$0xff] %v2008
        %2269 = vst [vmem:[%s2063 + $0xcc8] sm:$0xff] %v2009
        %2270 = vst [vmem:[%s2063 + $0xcd0] sm:$0xff] %v2010
        %2271 = vst [vmem:[%s2063 + $0xcd8] sm:$0xff] %v2011
        %2272 = vst [vmem:[%s2063 + $0xd00] sm:$0xff] %v2012
        %2273 = vst [vmem:[%s2063 + $0xd08] sm:$0xff] %v2013
        %2274 = vst [vmem:[%s2063 + $0xd10] sm:$0xff] %v2014
        %2275 = vst [vmem:[%s2063 + $0xd18] sm:$0xff] %v2015
        %2276 = vst [vmem:[%s2063 + $0xd40] sm:$0xff] %v2016
        %2277 = vst [vmem:[%s2063 + $0xd48] sm:$0xff] %v2017
        %2278 = vst [vmem:[%s2063 + $0xd50] sm:$0xff] %v2018
        %2279 = vst [vmem:[%s2063 + $0xd58] sm:$0xff] %v2019
        %2280 = vst [vmem:[%s2063 + $0xd80] sm:$0xff] %v2020
        %2281 = vst [vmem:[%s2063 + $0xd88] sm:$0xff] %v2021
        %2282 = vst [vmem:[%s2063 + $0xd90] sm:$0xff] %v2022
        %2283 = vst [vmem:[%s2063 + $0xd98] sm:$0xff] %v2023
        %2284 = vst [vmem:[%s2063 + $0xdc0] sm:$0xff] %v2024
        %2285 = vst [vmem:[%s2063 + $0xdc8] sm:$0xff] %v2025
        %2286 = vst [vmem:[%s2063 + $0xdd0] sm:$0xff] %v2026
        %2287 = vst [vmem:[%s2063 + $0xdd8] sm:$0xff] %v2027
        %2288 = vst [vmem:[%s2063 + $0xe00] sm:$0xff] %v2028
        %2289 = vst [vmem:[%s2063 + $0xe08] sm:$0xff] %v2029
        %2290 = vst [vmem:[%s2063 + $0xe10] sm:$0xff] %v2030
        %2291 = vst [vmem:[%s2063 + $0xe18] sm:$0xff] %v2031
        %2292 = vst [vmem:[%s2063 + $0xe40] sm:$0xff] %v2032
        %2293 = vst [vmem:[%s2063 + $0xe48] sm:$0xff] %v2033
        %2294 = vst [vmem:[%s2063 + $0xe50] sm:$0xff] %v2034
        %2295 = vst [vmem:[%s2063 + $0xe58] sm:$0xff] %v2035
        %2296 = vst [vmem:[%s2063 + $0xe80] sm:$0xff] %v2036
        %2297 = vst [vmem:[%s2063 + $0xe88] sm:$0xff] %v2037
        %2298 = vst [vmem:[%s2063 + $0xe90] sm:$0xff] %v2038
        %2299 = vst [vmem:[%s2063 + $0xe98] sm:$0xff] %v2039
        %2300 = vst [vmem:[%s2063 + $0xec0] sm:$0xff] %v2040
        %2301 = vst [vmem:[%s2063 + $0xec8] sm:$0xff] %v2041
        %2302 = vst [vmem:[%s2063 + $0xed0] sm:$0xff] %v2042
        %2303 = vst [vmem:[%s2063 + $0xed8] sm:$0xff] %v2043
        %2304 = vst [vmem:[%s2063 + $0xf00] sm:$0xff] %v2044
        %2305 = vst [vmem:[%s2063 + $0xf08] sm:$0xff] %v2045
        %2306 = vst [vmem:[%s2063 + $0xf10] sm:$0xff] %v2046
        %2307 = vst [vmem:[%s2063 + $0xf18] sm:$0xff] %v2047
        %2308 = vst [vmem:[%s2063 + $0xf40] sm:$0xff] %v2048
        %2309 = vst [vmem:[%s2063 + $0xf48] sm:$0xff] %v2049
        %2310 = vst [vmem:[%s2063 + $0xf50] sm:$0xff] %v2050
        %2311 = vst [vmem:[%s2063 + $0xf58] sm:$0xff] %v2051
        %2312 = vst [vmem:[%s2063 + $0xf80] sm:$0xff] %v2052
        %2313 = vst [vmem:[%s2063 + $0xf88] sm:$0xff] %v2053
        %2314 = vst [vmem:[%s2063 + $0xf90] sm:$0xff] %v2054
        %2315 = vst [vmem:[%s2063 + $0xf98] sm:$0xff] %v2055
        %2316 = vst [vmem:[%s2063 + $0xfc0] sm:$0xff] %v2056
        %2317 = vst [vmem:[%s2063 + $0xfc8] sm:$0xff] %v2057
        %2318 = vst [vmem:[%s2063 + $0xfd0] sm:$0xff] %v2058
        %2319 = vst [vmem:[%s2063 + $0xfd8] sm:$0xff] %v2059
        %v2321 = vperm.slane %v430, 0
        %v2322 = vperm.slane %v430, 1
        %v2323 = vperm.slane %v430, 2
        %v2324 = vperm.slane %v430, 3
        %v2329 = vsel %vm1538, %v2321, 0.0
        %v2330 = vsel %vm1539, %v2322, 0.0
        %v2331 = vsel %vm1540, %v2323, 0.0
        %v2332 = vsel %vm1541, %v2324, 0.0
        %v2333 = vsel %vm1542, %v2321, 0.0
        %v2334 = vsel %vm1543, %v2322, 0.0
        %v2335 = vsel %vm1544, %v2323, 0.0
        %v2336 = vsel %vm1545, %v2324, 0.0
        %v2337 = vsel %vm1546, %v2321, 0.0
        %v2338 = vsel %vm1547, %v2322, 0.0
        %v2339 = vsel %vm1548, %v2323, 0.0
        %v2340 = vsel %vm1549, %v2324, 0.0
        %v2341 = vsel %vm1550, %v2321, 0.0
        %v2342 = vsel %vm1551, %v2322, 0.0
        %v2343 = vsel %vm1552, %v2323, 0.0
        %v2344 = vsel %vm1553, %v2324, 0.0
        %v2345 = vsel %vm1554, %v2321, 0.0
        %v2346 = vsel %vm1555, %v2322, 0.0
        %v2347 = vsel %vm1556, %v2323, 0.0
        %v2348 = vsel %vm1557, %v2324, 0.0
        %v2349 = vsel %vm1558, %v2321, 0.0
        %v2350 = vsel %vm1559, %v2322, 0.0
        %v2351 = vsel %vm1560, %v2323, 0.0
        %v2352 = vsel %vm1561, %v2324, 0.0
        %v2353 = vsel %vm1562, %v2321, 0.0
        %v2354 = vsel %vm1563, %v2322, 0.0
        %v2355 = vsel %vm1564, %v2323, 0.0
        %v2356 = vsel %vm1565, %v2324, 0.0
        %v2357 = vsel %vm1566, %v2321, 0.0
        %v2358 = vsel %vm1567, %v2322, 0.0
        %v2359 = vsel %vm1568, %v2323, 0.0
        %v2360 = vsel %vm1569, %v2324, 0.0
        %v2361 = vsel %vm1570, %v2321, 0.0
        %v2362 = vsel %vm1571, %v2322, 0.0
        %v2363 = vsel %vm1572, %v2323, 0.0
        %v2364 = vsel %vm1573, %v2324, 0.0
        %v2365 = vsel %vm1574, %v2321, 0.0
        %v2366 = vsel %vm1575, %v2322, 0.0
        %v2367 = vsel %vm1576, %v2323, 0.0
        %v2368 = vsel %vm1577, %v2324, 0.0
        %v2369 = vsel %vm1578, %v2321, 0.0
        %v2370 = vsel %vm1579, %v2322, 0.0
        %v2371 = vsel %vm1580, %v2323, 0.0
        %v2372 = vsel %vm1581, %v2324, 0.0
        %v2373 = vsel %vm1582, %v2321, 0.0
        %v2374 = vsel %vm1583, %v2322, 0.0
        %v2375 = vsel %vm1584, %v2323, 0.0
        %v2376 = vsel %vm1585, %v2324, 0.0
        %v2377 = vsel %vm1586, %v2321, 0.0
        %v2378 = vsel %vm1587, %v2322, 0.0
        %v2379 = vsel %vm1588, %v2323, 0.0
        %v2380 = vsel %vm1589, %v2324, 0.0
        %v2381 = vsel %vm1590, %v2321, 0.0
        %v2382 = vsel %vm1591, %v2322, 0.0
        %v2383 = vsel %vm1592, %v2323, 0.0
        %v2384 = vsel %vm1593, %v2324, 0.0
        %v2385 = vsel %vm1594, %v2321, 0.0
        %v2386 = vsel %vm1595, %v2322, 0.0
        %v2387 = vsel %vm1596, %v2323, 0.0
        %v2388 = vsel %vm1597, %v2324, 0.0
        %v2389 = vsel %vm1598, %v2321, 0.0
        %v2390 = vsel %vm1599, %v2322, 0.0
        %v2391 = vsel %vm1600, %v2323, 0.0
        %v2392 = vsel %vm1601, %v2324, 0.0
        %v2393 = vsel %vm1602, %v2321, 0.0
        %v2394 = vsel %vm1603, %v2322, 0.0
        %v2395 = vsel %vm1604, %v2323, 0.0
        %v2396 = vsel %vm1605, %v2324, 0.0
        %v2397 = vsel %vm1606, %v2321, 0.0
        %v2398 = vsel %vm1607, %v2322, 0.0
        %v2399 = vsel %vm1608, %v2323, 0.0
        %v2400 = vsel %vm1609, %v2324, 0.0
        %v2401 = vsel %vm1610, %v2321, 0.0
        %v2402 = vsel %vm1611, %v2322, 0.0
        %v2403 = vsel %vm1612, %v2323, 0.0
        %v2404 = vsel %vm1613, %v2324, 0.0
        %v2405 = vsel %vm1614, %v2321, 0.0
        %v2406 = vsel %vm1615, %v2322, 0.0
        %v2407 = vsel %vm1616, %v2323, 0.0
        %v2408 = vsel %vm1617, %v2324, 0.0
        %v2409 = vsel %vm1618, %v2321, 0.0
        %v2410 = vsel %vm1619, %v2322, 0.0
        %v2411 = vsel %vm1620, %v2323, 0.0
        %v2412 = vsel %vm1621, %v2324, 0.0
        %v2413 = vsel %vm1622, %v2321, 0.0
        %v2414 = vsel %vm1623, %v2322, 0.0
        %v2415 = vsel %vm1624, %v2323, 0.0
        %v2416 = vsel %vm1625, %v2324, 0.0
        %v2417 = vsel %vm1626, %v2321, 0.0
        %v2418 = vsel %vm1627, %v2322, 0.0
        %v2419 = vsel %vm1628, %v2323, 0.0
        %v2420 = vsel %vm1629, %v2324, 0.0
        %v2421 = vsel %vm1630, %v2321, 0.0
        %v2422 = vsel %vm1631, %v2322, 0.0
        %v2423 = vsel %vm1632, %v2323, 0.0
        %v2424 = vsel %vm1633, %v2324, 0.0
        %v2425 = vsel %vm1634, %v2321, 0.0
        %v2426 = vsel %vm1635, %v2322, 0.0
        %v2427 = vsel %vm1636, %v2323, 0.0
        %v2428 = vsel %vm1637, %v2324, 0.0
        %v2429 = vsel %vm1638, %v2321, 0.0
        %v2430 = vsel %vm1639, %v2322, 0.0
        %v2431 = vsel %vm1640, %v2323, 0.0
        %v2432 = vsel %vm1641, %v2324, 0.0
        %v2433 = vsel %vm1642, %v2321, 0.0
        %v2434 = vsel %vm1643, %v2322, 0.0
        %v2435 = vsel %vm1644, %v2323, 0.0
        %v2436 = vsel %vm1645, %v2324, 0.0
        %v2437 = vsel %vm1646, %v2321, 0.0
        %v2438 = vsel %vm1647, %v2322, 0.0
        %v2439 = vsel %vm1648, %v2323, 0.0
        %v2440 = vsel %vm1649, %v2324, 0.0
        %v2441 = vsel %vm1650, %v2321, 0.0
        %v2442 = vsel %vm1651, %v2322, 0.0
        %v2443 = vsel %vm1652, %v2323, 0.0
        %v2444 = vsel %vm1653, %v2324, 0.0
        %v2445 = vsel %vm1654, %v2321, 0.0
        %v2446 = vsel %vm1655, %v2322, 0.0
        %v2447 = vsel %vm1656, %v2323, 0.0
        %v2448 = vsel %vm1657, %v2324, 0.0
        %v2449 = vsel %vm1658, %v2321, 0.0
        %v2450 = vsel %vm1659, %v2322, 0.0
        %v2451 = vsel %vm1660, %v2323, 0.0
        %v2452 = vsel %vm1661, %v2324, 0.0
        %v2453 = vsel %vm1662, %v2321, 0.0
        %v2454 = vsel %vm1663, %v2322, 0.0
        %v2455 = vsel %vm1664, %v2323, 0.0
        %v2456 = vsel %vm1665, %v2324, 0.0
        %v2457 = vsel %vm1666, %v2321, 0.0
        %v2458 = vsel %vm1667, %v2322, 0.0
        %v2459 = vsel %vm1668, %v2323, 0.0
        %v2460 = vsel %vm1669, %v2324, 0.0
        %v2461 = vsel %vm1670, %v2321, 0.0
        %v2462 = vsel %vm1671, %v2322, 0.0
        %v2463 = vsel %vm1672, %v2323, 0.0
        %v2464 = vsel %vm1673, %v2324, 0.0
        %v2465 = vsel %vm1674, %v2321, 0.0
        %v2466 = vsel %vm1675, %v2322, 0.0
        %v2467 = vsel %vm1676, %v2323, 0.0
        %v2468 = vsel %vm1677, %v2324, 0.0
        %v2469 = vsel %vm1678, %v2321, 0.0
        %v2470 = vsel %vm1679, %v2322, 0.0
        %v2471 = vsel %vm1680, %v2323, 0.0
        %v2472 = vsel %vm1681, %v2324, 0.0
        %v2473 = vsel %vm1682, %v2321, 0.0
        %v2474 = vsel %vm1683, %v2322, 0.0
        %v2475 = vsel %vm1684, %v2323, 0.0
        %v2476 = vsel %vm1685, %v2324, 0.0
        %v2477 = vsel %vm1686, %v2321, 0.0
        %v2478 = vsel %vm1687, %v2322, 0.0
        %v2479 = vsel %vm1688, %v2323, 0.0
        %v2480 = vsel %vm1689, %v2324, 0.0
        %v2481 = vsel %vm1690, %v2321, 0.0
        %v2482 = vsel %vm1691, %v2322, 0.0
        %v2483 = vsel %vm1692, %v2323, 0.0
        %v2484 = vsel %vm1693, %v2324, 0.0
        %v2485 = vsel %vm1694, %v2321, 0.0
        %v2486 = vsel %vm1695, %v2322, 0.0
        %v2487 = vsel %vm1696, %v2323, 0.0
        %v2488 = vsel %vm1697, %v2324, 0.0
        %v2489 = vsel %vm1698, %v2321, 0.0
        %v2490 = vsel %vm1699, %v2322, 0.0
        %v2491 = vsel %vm1700, %v2323, 0.0
        %v2492 = vsel %vm1701, %v2324, 0.0
        %v2493 = vsel %vm1702, %v2321, 0.0
        %v2494 = vsel %vm1703, %v2322, 0.0
        %v2495 = vsel %vm1704, %v2323, 0.0
        %v2496 = vsel %vm1705, %v2324, 0.0
        %v2497 = vsel %vm1706, %v2321, 0.0
        %v2498 = vsel %vm1707, %v2322, 0.0
        %v2499 = vsel %vm1708, %v2323, 0.0
        %v2500 = vsel %vm1709, %v2324, 0.0
        %v2501 = vsel %vm1710, %v2321, 0.0
        %v2502 = vsel %vm1711, %v2322, 0.0
        %v2503 = vsel %vm1712, %v2323, 0.0
        %v2504 = vsel %vm1713, %v2324, 0.0
        %v2505 = vsel %vm1714, %v2321, 0.0
        %v2506 = vsel %vm1715, %v2322, 0.0
        %v2507 = vsel %vm1716, %v2323, 0.0
        %v2508 = vsel %vm1717, %v2324, 0.0
        %v2509 = vsel %vm1718, %v2321, 0.0
        %v2510 = vsel %vm1719, %v2322, 0.0
        %v2511 = vsel %vm1720, %v2323, 0.0
        %v2512 = vsel %vm1721, %v2324, 0.0
        %v2513 = vsel %vm1722, %v2321, 0.0
        %v2514 = vsel %vm1723, %v2322, 0.0
        %v2515 = vsel %vm1724, %v2323, 0.0
        %v2516 = vsel %vm1725, %v2324, 0.0
        %v2517 = vsel %vm1726, %v2321, 0.0
        %v2518 = vsel %vm1727, %v2322, 0.0
        %v2519 = vsel %vm1728, %v2323, 0.0
        %v2520 = vsel %vm1729, %v2324, 0.0
        %v2521 = vsel %vm1730, %v2321, 0.0
        %v2522 = vsel %vm1731, %v2322, 0.0
        %v2523 = vsel %vm1732, %v2323, 0.0
        %v2524 = vsel %vm1733, %v2324, 0.0
        %v2525 = vsel %vm1734, %v2321, 0.0
        %v2526 = vsel %vm1735, %v2322, 0.0
        %v2527 = vsel %vm1736, %v2323, 0.0
        %v2528 = vsel %vm1737, %v2324, 0.0
        %v2529 = vsel %vm1738, %v2321, 0.0
        %v2530 = vsel %vm1739, %v2322, 0.0
        %v2531 = vsel %vm1740, %v2323, 0.0
        %v2532 = vsel %vm1741, %v2324, 0.0
        %v2533 = vsel %vm1742, %v2321, 0.0
        %v2534 = vsel %vm1743, %v2322, 0.0
        %v2535 = vsel %vm1744, %v2323, 0.0
        %v2536 = vsel %vm1745, %v2324, 0.0
        %v2537 = vsel %vm1746, %v2321, 0.0
        %v2538 = vsel %vm1747, %v2322, 0.0
        %v2539 = vsel %vm1748, %v2323, 0.0
        %v2540 = vsel %vm1749, %v2324, 0.0
        %v2541 = vsel %vm1750, %v2321, 0.0
        %v2542 = vsel %vm1751, %v2322, 0.0
        %v2543 = vsel %vm1752, %v2323, 0.0
        %v2544 = vsel %vm1753, %v2324, 0.0
        %v2545 = vsel %vm1754, %v2321, 0.0
        %v2546 = vsel %vm1755, %v2322, 0.0
        %v2547 = vsel %vm1756, %v2323, 0.0
        %v2548 = vsel %vm1757, %v2324, 0.0
        %v2549 = vsel %vm1758, %v2321, 0.0
        %v2550 = vsel %vm1759, %v2322, 0.0
        %v2551 = vsel %vm1760, %v2323, 0.0
        %v2552 = vsel %vm1761, %v2324, 0.0
        %v2553 = vsel %vm1762, %v2321, 0.0
        %v2554 = vsel %vm1763, %v2322, 0.0
        %v2555 = vsel %vm1764, %v2323, 0.0
        %v2556 = vsel %vm1765, %v2324, 0.0
        %v2557 = vsel %vm1766, %v2321, 0.0
        %v2558 = vsel %vm1767, %v2322, 0.0
        %v2559 = vsel %vm1768, %v2323, 0.0
        %v2560 = vsel %vm1769, %v2324, 0.0
        %v2561 = vsel %vm1770, %v2321, 0.0
        %v2562 = vsel %vm1771, %v2322, 0.0
        %v2563 = vsel %vm1772, %v2323, 0.0
        %v2564 = vsel %vm1773, %v2324, 0.0
        %v2565 = vsel %vm1774, %v2321, 0.0
        %v2566 = vsel %vm1775, %v2322, 0.0
        %v2567 = vsel %vm1776, %v2323, 0.0
        %v2568 = vsel %vm1777, %v2324, 0.0
        %v2569 = vsel %vm1778, %v2321, 0.0
        %v2570 = vsel %vm1779, %v2322, 0.0
        %v2571 = vsel %vm1780, %v2323, 0.0
        %v2572 = vsel %vm1781, %v2324, 0.0
        %v2573 = vsel %vm1782, %v2321, 0.0
        %v2574 = vsel %vm1783, %v2322, 0.0
        %v2575 = vsel %vm1784, %v2323, 0.0
        %v2576 = vsel %vm1785, %v2324, 0.0
        %v2577 = vsel %vm1786, %v2321, 0.0
        %v2578 = vsel %vm1787, %v2322, 0.0
        %v2579 = vsel %vm1788, %v2323, 0.0
        %v2580 = vsel %vm1789, %v2324, 0.0
        %v2581 = vsel %vm1790, %v2321, 0.0
        %v2582 = vsel %vm1791, %v2322, 0.0
        %v2583 = vsel %vm1792, %v2323, 0.0
        %v2584 = vsel %vm1793, %v2324, 0.0
        %s2585 = smul.addr %s2060, 8
        %s2586 = scalar_lea.vmem %s357, %s2585 [#allocation9]
        %2587 = vst [vmem:[%s2586] sm:$0xff] %v2329
        %2588 = vst [vmem:[%s2586 + $0x8] sm:$0xff] %v2330
        %2589 = vst [vmem:[%s2586 + $0x10] sm:$0xff] %v2331
        %2590 = vst [vmem:[%s2586 + $0x18] sm:$0xff] %v2332
        %2591 = vst [vmem:[%s2586 + $0x40] sm:$0xff] %v2333
        %2592 = vst [vmem:[%s2586 + $0x48] sm:$0xff] %v2334
        %2593 = vst [vmem:[%s2586 + $0x50] sm:$0xff] %v2335
        %2594 = vst [vmem:[%s2586 + $0x58] sm:$0xff] %v2336
        %2595 = vst [vmem:[%s2586 + $0x80] sm:$0xff] %v2337
        %2596 = vst [vmem:[%s2586 + $0x88] sm:$0xff] %v2338
        %2597 = vst [vmem:[%s2586 + $0x90] sm:$0xff] %v2339
        %2598 = vst [vmem:[%s2586 + $0x98] sm:$0xff] %v2340
        %2599 = vst [vmem:[%s2586 + $0xc0] sm:$0xff] %v2341
        %2600 = vst [vmem:[%s2586 + $0xc8] sm:$0xff] %v2342
        %2601 = vst [vmem:[%s2586 + $0xd0] sm:$0xff] %v2343
        %2602 = vst [vmem:[%s2586 + $0xd8] sm:$0xff] %v2344
        %2603 = vst [vmem:[%s2586 + $0x100] sm:$0xff] %v2345
        %2604 = vst [vmem:[%s2586 + $0x108] sm:$0xff] %v2346
        %2605 = vst [vmem:[%s2586 + $0x110] sm:$0xff] %v2347
        %2606 = vst [vmem:[%s2586 + $0x118] sm:$0xff] %v2348
        %2607 = vst [vmem:[%s2586 + $0x140] sm:$0xff] %v2349
        %2608 = vst [vmem:[%s2586 + $0x148] sm:$0xff] %v2350
        %2609 = vst [vmem:[%s2586 + $0x150] sm:$0xff] %v2351
        %2610 = vst [vmem:[%s2586 + $0x158] sm:$0xff] %v2352
        %2611 = vst [vmem:[%s2586 + $0x180] sm:$0xff] %v2353
        %2612 = vst [vmem:[%s2586 + $0x188] sm:$0xff] %v2354
        %2613 = vst [vmem:[%s2586 + $0x190] sm:$0xff] %v2355
        %2614 = vst [vmem:[%s2586 + $0x198] sm:$0xff] %v2356
        %2615 = vst [vmem:[%s2586 + $0x1c0] sm:$0xff] %v2357
        %2616 = vst [vmem:[%s2586 + $0x1c8] sm:$0xff] %v2358
        %2617 = vst [vmem:[%s2586 + $0x1d0] sm:$0xff] %v2359
        %2618 = vst [vmem:[%s2586 + $0x1d8] sm:$0xff] %v2360
        %2619 = vst [vmem:[%s2586 + $0x200] sm:$0xff] %v2361
        %2620 = vst [vmem:[%s2586 + $0x208] sm:$0xff] %v2362
        %2621 = vst [vmem:[%s2586 + $0x210] sm:$0xff] %v2363
        %2622 = vst [vmem:[%s2586 + $0x218] sm:$0xff] %v2364
        %2623 = vst [vmem:[%s2586 + $0x240] sm:$0xff] %v2365
        %2624 = vst [vmem:[%s2586 + $0x248] sm:$0xff] %v2366
        %2625 = vst [vmem:[%s2586 + $0x250] sm:$0xff] %v2367
        %2626 = vst [vmem:[%s2586 + $0x258] sm:$0xff] %v2368
        %2627 = vst [vmem:[%s2586 + $0x280] sm:$0xff] %v2369
        %2628 = vst [vmem:[%s2586 + $0x288] sm:$0xff] %v2370
        %2629 = vst [vmem:[%s2586 + $0x290] sm:$0xff] %v2371
        %2630 = vst [vmem:[%s2586 + $0x298] sm:$0xff] %v2372
        %2631 = vst [vmem:[%s2586 + $0x2c0] sm:$0xff] %v2373
        %2632 = vst [vmem:[%s2586 + $0x2c8] sm:$0xff] %v2374
        %2633 = vst [vmem:[%s2586 + $0x2d0] sm:$0xff] %v2375
        %2634 = vst [vmem:[%s2586 + $0x2d8] sm:$0xff] %v2376
        %2635 = vst [vmem:[%s2586 + $0x300] sm:$0xff] %v2377
        %2636 = vst [vmem:[%s2586 + $0x308] sm:$0xff] %v2378
        %2637 = vst [vmem:[%s2586 + $0x310] sm:$0xff] %v2379
        %2638 = vst [vmem:[%s2586 + $0x318] sm:$0xff] %v2380
        %2639 = vst [vmem:[%s2586 + $0x340] sm:$0xff] %v2381
        %2640 = vst [vmem:[%s2586 + $0x348] sm:$0xff] %v2382
        %2641 = vst [vmem:[%s2586 + $0x350] sm:$0xff] %v2383
        %2642 = vst [vmem:[%s2586 + $0x358] sm:$0xff] %v2384
        %2643 = vst [vmem:[%s2586 + $0x380] sm:$0xff] %v2385
        %2644 = vst [vmem:[%s2586 + $0x388] sm:$0xff] %v2386
        %2645 = vst [vmem:[%s2586 + $0x390] sm:$0xff] %v2387
        %2646 = vst [vmem:[%s2586 + $0x398] sm:$0xff] %v2388
        %2647 = vst [vmem:[%s2586 + $0x3c0] sm:$0xff] %v2389
        %2648 = vst [vmem:[%s2586 + $0x3c8] sm:$0xff] %v2390
        %2649 = vst [vmem:[%s2586 + $0x3d0] sm:$0xff] %v2391
        %2650 = vst [vmem:[%s2586 + $0x3d8] sm:$0xff] %v2392
        %2651 = vst [vmem:[%s2586 + $0x400] sm:$0xff] %v2393
        %2652 = vst [vmem:[%s2586 + $0x408] sm:$0xff] %v2394
        %2653 = vst [vmem:[%s2586 + $0x410] sm:$0xff] %v2395
        %2654 = vst [vmem:[%s2586 + $0x418] sm:$0xff] %v2396
        %2655 = vst [vmem:[%s2586 + $0x440] sm:$0xff] %v2397
        %2656 = vst [vmem:[%s2586 + $0x448] sm:$0xff] %v2398
        %2657 = vst [vmem:[%s2586 + $0x450] sm:$0xff] %v2399
        %2658 = vst [vmem:[%s2586 + $0x458] sm:$0xff] %v2400
        %2659 = vst [vmem:[%s2586 + $0x480] sm:$0xff] %v2401
        %2660 = vst [vmem:[%s2586 + $0x488] sm:$0xff] %v2402
        %2661 = vst [vmem:[%s2586 + $0x490] sm:$0xff] %v2403
        %2662 = vst [vmem:[%s2586 + $0x498] sm:$0xff] %v2404
        %2663 = vst [vmem:[%s2586 + $0x4c0] sm:$0xff] %v2405
        %2664 = vst [vmem:[%s2586 + $0x4c8] sm:$0xff] %v2406
        %2665 = vst [vmem:[%s2586 + $0x4d0] sm:$0xff] %v2407
        %2666 = vst [vmem:[%s2586 + $0x4d8] sm:$0xff] %v2408
        %2667 = vst [vmem:[%s2586 + $0x500] sm:$0xff] %v2409
        %2668 = vst [vmem:[%s2586 + $0x508] sm:$0xff] %v2410
        %2669 = vst [vmem:[%s2586 + $0x510] sm:$0xff] %v2411
        %2670 = vst [vmem:[%s2586 + $0x518] sm:$0xff] %v2412
        %2671 = vst [vmem:[%s2586 + $0x540] sm:$0xff] %v2413
        %2672 = vst [vmem:[%s2586 + $0x548] sm:$0xff] %v2414
        %2673 = vst [vmem:[%s2586 + $0x550] sm:$0xff] %v2415
        %2674 = vst [vmem:[%s2586 + $0x558] sm:$0xff] %v2416
        %2675 = vst [vmem:[%s2586 + $0x580] sm:$0xff] %v2417
        %2676 = vst [vmem:[%s2586 + $0x588] sm:$0xff] %v2418
        %2677 = vst [vmem:[%s2586 + $0x590] sm:$0xff] %v2419
        %2678 = vst [vmem:[%s2586 + $0x598] sm:$0xff] %v2420
        %2679 = vst [vmem:[%s2586 + $0x5c0] sm:$0xff] %v2421
        %2680 = vst [vmem:[%s2586 + $0x5c8] sm:$0xff] %v2422
        %2681 = vst [vmem:[%s2586 + $0x5d0] sm:$0xff] %v2423
        %2682 = vst [vmem:[%s2586 + $0x5d8] sm:$0xff] %v2424
        %2683 = vst [vmem:[%s2586 + $0x600] sm:$0xff] %v2425
        %2684 = vst [vmem:[%s2586 + $0x608] sm:$0xff] %v2426
        %2685 = vst [vmem:[%s2586 + $0x610] sm:$0xff] %v2427
        %2686 = vst [vmem:[%s2586 + $0x618] sm:$0xff] %v2428
        %2687 = vst [vmem:[%s2586 + $0x640] sm:$0xff] %v2429
        %2688 = vst [vmem:[%s2586 + $0x648] sm:$0xff] %v2430
        %2689 = vst [vmem:[%s2586 + $0x650] sm:$0xff] %v2431
        %2690 = vst [vmem:[%s2586 + $0x658] sm:$0xff] %v2432
        %2691 = vst [vmem:[%s2586 + $0x680] sm:$0xff] %v2433
        %2692 = vst [vmem:[%s2586 + $0x688] sm:$0xff] %v2434
        %2693 = vst [vmem:[%s2586 + $0x690] sm:$0xff] %v2435
        %2694 = vst [vmem:[%s2586 + $0x698] sm:$0xff] %v2436
        %2695 = vst [vmem:[%s2586 + $0x6c0] sm:$0xff] %v2437
        %2696 = vst [vmem:[%s2586 + $0x6c8] sm:$0xff] %v2438
        %2697 = vst [vmem:[%s2586 + $0x6d0] sm:$0xff] %v2439
        %2698 = vst [vmem:[%s2586 + $0x6d8] sm:$0xff] %v2440
        %2699 = vst [vmem:[%s2586 + $0x700] sm:$0xff] %v2441
        %2700 = vst [vmem:[%s2586 + $0x708] sm:$0xff] %v2442
        %2701 = vst [vmem:[%s2586 + $0x710] sm:$0xff] %v2443
        %2702 = vst [vmem:[%s2586 + $0x718] sm:$0xff] %v2444
        %2703 = vst [vmem:[%s2586 + $0x740] sm:$0xff] %v2445
        %2704 = vst [vmem:[%s2586 + $0x748] sm:$0xff] %v2446
        %2705 = vst [vmem:[%s2586 + $0x750] sm:$0xff] %v2447
        %2706 = vst [vmem:[%s2586 + $0x758] sm:$0xff] %v2448
        %2707 = vst [vmem:[%s2586 + $0x780] sm:$0xff] %v2449
        %2708 = vst [vmem:[%s2586 + $0x788] sm:$0xff] %v2450
        %2709 = vst [vmem:[%s2586 + $0x790] sm:$0xff] %v2451
        %2710 = vst [vmem:[%s2586 + $0x798] sm:$0xff] %v2452
        %2711 = vst [vmem:[%s2586 + $0x7c0] sm:$0xff] %v2453
        %2712 = vst [vmem:[%s2586 + $0x7c8] sm:$0xff] %v2454
        %2713 = vst [vmem:[%s2586 + $0x7d0] sm:$0xff] %v2455
        %2714 = vst [vmem:[%s2586 + $0x7d8] sm:$0xff] %v2456
        %2715 = vst [vmem:[%s2586 + $0x800] sm:$0xff] %v2457
        %2716 = vst [vmem:[%s2586 + $0x808] sm:$0xff] %v2458
        %2717 = vst [vmem:[%s2586 + $0x810] sm:$0xff] %v2459
        %2718 = vst [vmem:[%s2586 + $0x818] sm:$0xff] %v2460
        %2719 = vst [vmem:[%s2586 + $0x840] sm:$0xff] %v2461
        %2720 = vst [vmem:[%s2586 + $0x848] sm:$0xff] %v2462
        %2721 = vst [vmem:[%s2586 + $0x850] sm:$0xff] %v2463
        %2722 = vst [vmem:[%s2586 + $0x858] sm:$0xff] %v2464
        %2723 = vst [vmem:[%s2586 + $0x880] sm:$0xff] %v2465
        %2724 = vst [vmem:[%s2586 + $0x888] sm:$0xff] %v2466
        %2725 = vst [vmem:[%s2586 + $0x890] sm:$0xff] %v2467
        %2726 = vst [vmem:[%s2586 + $0x898] sm:$0xff] %v2468
        %2727 = vst [vmem:[%s2586 + $0x8c0] sm:$0xff] %v2469
        %2728 = vst [vmem:[%s2586 + $0x8c8] sm:$0xff] %v2470
        %2729 = vst [vmem:[%s2586 + $0x8d0] sm:$0xff] %v2471
        %2730 = vst [vmem:[%s2586 + $0x8d8] sm:$0xff] %v2472
        %2731 = vst [vmem:[%s2586 + $0x900] sm:$0xff] %v2473
        %2732 = vst [vmem:[%s2586 + $0x908] sm:$0xff] %v2474
        %2733 = vst [vmem:[%s2586 + $0x910] sm:$0xff] %v2475
        %2734 = vst [vmem:[%s2586 + $0x918] sm:$0xff] %v2476
        %2735 = vst [vmem:[%s2586 + $0x940] sm:$0xff] %v2477
        %2736 = vst [vmem:[%s2586 + $0x948] sm:$0xff] %v2478
        %2737 = vst [vmem:[%s2586 + $0x950] sm:$0xff] %v2479
        %2738 = vst [vmem:[%s2586 + $0x958] sm:$0xff] %v2480
        %2739 = vst [vmem:[%s2586 + $0x980] sm:$0xff] %v2481
        %2740 = vst [vmem:[%s2586 + $0x988] sm:$0xff] %v2482
        %2741 = vst [vmem:[%s2586 + $0x990] sm:$0xff] %v2483
        %2742 = vst [vmem:[%s2586 + $0x998] sm:$0xff] %v2484
        %2743 = vst [vmem:[%s2586 + $0x9c0] sm:$0xff] %v2485
        %2744 = vst [vmem:[%s2586 + $0x9c8] sm:$0xff] %v2486
        %2745 = vst [vmem:[%s2586 + $0x9d0] sm:$0xff] %v2487
        %2746 = vst [vmem:[%s2586 + $0x9d8] sm:$0xff] %v2488
        %2747 = vst [vmem:[%s2586 + $0xa00] sm:$0xff] %v2489
        %2748 = vst [vmem:[%s2586 + $0xa08] sm:$0xff] %v2490
        %2749 = vst [vmem:[%s2586 + $0xa10] sm:$0xff] %v2491
        %2750 = vst [vmem:[%s2586 + $0xa18] sm:$0xff] %v2492
        %2751 = vst [vmem:[%s2586 + $0xa40] sm:$0xff] %v2493
        %2752 = vst [vmem:[%s2586 + $0xa48] sm:$0xff] %v2494
        %2753 = vst [vmem:[%s2586 + $0xa50] sm:$0xff] %v2495
        %2754 = vst [vmem:[%s2586 + $0xa58] sm:$0xff] %v2496
        %2755 = vst [vmem:[%s2586 + $0xa80] sm:$0xff] %v2497
        %2756 = vst [vmem:[%s2586 + $0xa88] sm:$0xff] %v2498
        %2757 = vst [vmem:[%s2586 + $0xa90] sm:$0xff] %v2499
        %2758 = vst [vmem:[%s2586 + $0xa98] sm:$0xff] %v2500
        %2759 = vst [vmem:[%s2586 + $0xac0] sm:$0xff] %v2501
        %2760 = vst [vmem:[%s2586 + $0xac8] sm:$0xff] %v2502
        %2761 = vst [vmem:[%s2586 + $0xad0] sm:$0xff] %v2503
        %2762 = vst [vmem:[%s2586 + $0xad8] sm:$0xff] %v2504
        %2763 = vst [vmem:[%s2586 + $0xb00] sm:$0xff] %v2505
        %2764 = vst [vmem:[%s2586 + $0xb08] sm:$0xff] %v2506
        %2765 = vst [vmem:[%s2586 + $0xb10] sm:$0xff] %v2507
        %2766 = vst [vmem:[%s2586 + $0xb18] sm:$0xff] %v2508
        %2767 = vst [vmem:[%s2586 + $0xb40] sm:$0xff] %v2509
        %2768 = vst [vmem:[%s2586 + $0xb48] sm:$0xff] %v2510
        %2769 = vst [vmem:[%s2586 + $0xb50] sm:$0xff] %v2511
        %2770 = vst [vmem:[%s2586 + $0xb58] sm:$0xff] %v2512
        %2771 = vst [vmem:[%s2586 + $0xb80] sm:$0xff] %v2513
        %2772 = vst [vmem:[%s2586 + $0xb88] sm:$0xff] %v2514
        %2773 = vst [vmem:[%s2586 + $0xb90] sm:$0xff] %v2515
        %2774 = vst [vmem:[%s2586 + $0xb98] sm:$0xff] %v2516
        %2775 = vst [vmem:[%s2586 + $0xbc0] sm:$0xff] %v2517
        %2776 = vst [vmem:[%s2586 + $0xbc8] sm:$0xff] %v2518
        %2777 = vst [vmem:[%s2586 + $0xbd0] sm:$0xff] %v2519
        %2778 = vst [vmem:[%s2586 + $0xbd8] sm:$0xff] %v2520
        %2779 = vst [vmem:[%s2586 + $0xc00] sm:$0xff] %v2521
        %2780 = vst [vmem:[%s2586 + $0xc08] sm:$0xff] %v2522
        %2781 = vst [vmem:[%s2586 + $0xc10] sm:$0xff] %v2523
        %2782 = vst [vmem:[%s2586 + $0xc18] sm:$0xff] %v2524
        %2783 = vst [vmem:[%s2586 + $0xc40] sm:$0xff] %v2525
        %2784 = vst [vmem:[%s2586 + $0xc48] sm:$0xff] %v2526
        %2785 = vst [vmem:[%s2586 + $0xc50] sm:$0xff] %v2527
        %2786 = vst [vmem:[%s2586 + $0xc58] sm:$0xff] %v2528
        %2787 = vst [vmem:[%s2586 + $0xc80] sm:$0xff] %v2529
        %2788 = vst [vmem:[%s2586 + $0xc88] sm:$0xff] %v2530
        %2789 = vst [vmem:[%s2586 + $0xc90] sm:$0xff] %v2531
        %2790 = vst [vmem:[%s2586 + $0xc98] sm:$0xff] %v2532
        %2791 = vst [vmem:[%s2586 + $0xcc0] sm:$0xff] %v2533
        %2792 = vst [vmem:[%s2586 + $0xcc8] sm:$0xff] %v2534
        %2793 = vst [vmem:[%s2586 + $0xcd0] sm:$0xff] %v2535
        %2794 = vst [vmem:[%s2586 + $0xcd8] sm:$0xff] %v2536
        %2795 = vst [vmem:[%s2586 + $0xd00] sm:$0xff] %v2537
        %2796 = vst [vmem:[%s2586 + $0xd08] sm:$0xff] %v2538
        %2797 = vst [vmem:[%s2586 + $0xd10] sm:$0xff] %v2539
        %2798 = vst [vmem:[%s2586 + $0xd18] sm:$0xff] %v2540
        %2799 = vst [vmem:[%s2586 + $0xd40] sm:$0xff] %v2541
        %2800 = vst [vmem:[%s2586 + $0xd48] sm:$0xff] %v2542
        %2801 = vst [vmem:[%s2586 + $0xd50] sm:$0xff] %v2543
        %2802 = vst [vmem:[%s2586 + $0xd58] sm:$0xff] %v2544
        %2803 = vst [vmem:[%s2586 + $0xd80] sm:$0xff] %v2545
        %2804 = vst [vmem:[%s2586 + $0xd88] sm:$0xff] %v2546
        %2805 = vst [vmem:[%s2586 + $0xd90] sm:$0xff] %v2547
        %2806 = vst [vmem:[%s2586 + $0xd98] sm:$0xff] %v2548
        %2807 = vst [vmem:[%s2586 + $0xdc0] sm:$0xff] %v2549
        %2808 = vst [vmem:[%s2586 + $0xdc8] sm:$0xff] %v2550
        %2809 = vst [vmem:[%s2586 + $0xdd0] sm:$0xff] %v2551
        %2810 = vst [vmem:[%s2586 + $0xdd8] sm:$0xff] %v2552
        %2811 = vst [vmem:[%s2586 + $0xe00] sm:$0xff] %v2553
        %2812 = vst [vmem:[%s2586 + $0xe08] sm:$0xff] %v2554
        %2813 = vst [vmem:[%s2586 + $0xe10] sm:$0xff] %v2555
        %2814 = vst [vmem:[%s2586 + $0xe18] sm:$0xff] %v2556
        %2815 = vst [vmem:[%s2586 + $0xe40] sm:$0xff] %v2557
        %2816 = vst [vmem:[%s2586 + $0xe48] sm:$0xff] %v2558
        %2817 = vst [vmem:[%s2586 + $0xe50] sm:$0xff] %v2559
        %2818 = vst [vmem:[%s2586 + $0xe58] sm:$0xff] %v2560
        %2819 = vst [vmem:[%s2586 + $0xe80] sm:$0xff] %v2561
        %2820 = vst [vmem:[%s2586 + $0xe88] sm:$0xff] %v2562
        %2821 = vst [vmem:[%s2586 + $0xe90] sm:$0xff] %v2563
        %2822 = vst [vmem:[%s2586 + $0xe98] sm:$0xff] %v2564
        %2823 = vst [vmem:[%s2586 + $0xec0] sm:$0xff] %v2565
        %2824 = vst [vmem:[%s2586 + $0xec8] sm:$0xff] %v2566
        %2825 = vst [vmem:[%s2586 + $0xed0] sm:$0xff] %v2567
        %2826 = vst [vmem:[%s2586 + $0xed8] sm:$0xff] %v2568
        %2827 = vst [vmem:[%s2586 + $0xf00] sm:$0xff] %v2569
        %2828 = vst [vmem:[%s2586 + $0xf08] sm:$0xff] %v2570
        %2829 = vst [vmem:[%s2586 + $0xf10] sm:$0xff] %v2571
        %2830 = vst [vmem:[%s2586 + $0xf18] sm:$0xff] %v2572
        %2831 = vst [vmem:[%s2586 + $0xf40] sm:$0xff] %v2573
        %2832 = vst [vmem:[%s2586 + $0xf48] sm:$0xff] %v2574
        %2833 = vst [vmem:[%s2586 + $0xf50] sm:$0xff] %v2575
        %2834 = vst [vmem:[%s2586 + $0xf58] sm:$0xff] %v2576
        %2835 = vst [vmem:[%s2586 + $0xf80] sm:$0xff] %v2577
        %2836 = vst [vmem:[%s2586 + $0xf88] sm:$0xff] %v2578
        %2837 = vst [vmem:[%s2586 + $0xf90] sm:$0xff] %v2579
        %2838 = vst [vmem:[%s2586 + $0xf98] sm:$0xff] %v2580
        %2839 = vst [vmem:[%s2586 + $0xfc0] sm:$0xff] %v2581
        %2840 = vst [vmem:[%s2586 + $0xfc8] sm:$0xff] %v2582
        %2841 = vst [vmem:[%s2586 + $0xfd0] sm:$0xff] %v2583
        %2842 = vst [vmem:[%s2586 + $0xfd8] sm:$0xff] %v2584
        %s2843 = sand.u32 %s119, 1
        %s2844 = scalar_lea.sflag [#allocation4], %s2843
        %s2845 = sand.u32 %s119, 1
        %s2846 = smul.addr %s2845, 4096
        %s2847 = scalar_lea.vmem [#allocation8], %s2846
        %s2848 = sand.u32 %s33, 1
        %s2849 = scalar_lea.sflag [#allocation10], %s2848
        %s2850 = sand.u32 %s145, 1
        %s2851 = smul.addr %s2850, 4096
        %s2852 = scalar_lea.vmem [#allocation9], %s2851
        %s2853 = sand.u32 %s33, 1
        %s2854 = scalar_lea.sflag [#allocation10], %s2853
        %s2855 = sand.u32 %s171, 1
        %s2856 = smul.addr %s2855, 4
        %s2857 = scalar_lea.vmem [#allocation11], %s2856
        %s2858 = sand.u32 %s197, 1
        %s2859 = scalar_lea.sflag [#allocation13], %s2858
        %s2860 = sand.u32 %s197, 1
        %s2861 = smul.addr %s2860, 4
        %s2862 = scalar_lea.vmem [#allocation12], %s2861
        // Predicated region
        $region45: #{tpu_custom_call.1} parent=31 // pred_check
          %p2863 = pneg %p129
        $region46: #{tpu_custom_call.1} parent=31 // pred_check_branch
          %2865 = sbr.rel (%p2863) target = $region48
        $region47: #{tpu_custom_call.1} parent=31 // pred_region
          %s2866 = smul.u32 64, %s33
          %2868 = vsyncadd %s2844, 0
          %s2869 = smul.addr %s2866, 8
          %s2870 = smul.addr %s2869, 8
          %s2871 = scalar_lea.hbm %s3, %s2870
          %s2872 = sshll.u32 %s2847, 4
          %s2873 = int_to_ptr.vmem [resolvable:$true] %s2872
          %s2874 = sshll.u32 %s2871, 4
          %s2875 = int_to_ptr.hbm [resolvable:$true] %s2874
          %2880 = dma.vmem_to_hbm [thread:$0]  %s2873, 65536, %s2875, %s2844, 1024, 1024, 64
        $region48: #{tpu_custom_call.1} parent=31 // pred_fallthru
          _
        // Predicated region
        $region49: #{tpu_custom_call.1} parent=31 // pred_check
          %p2881 = pneg %p155
        $region50: #{tpu_custom_call.1} parent=31 // pred_check_branch
          %2883 = sbr.rel (%p2881) target = $region52
        $region51: #{tpu_custom_call.1} parent=31 // pred_region
          %s2884 = smul.u32 64, %s33
          %2886 = vsyncadd %s2849, 0
          %s2887 = smul.addr %s2884, 8
          %s2888 = smul.addr %s2887, 8
          %s2889 = scalar_lea.hbm %s4, %s2888
          %s2890 = sshll.u32 %s2852, 4
          %s2891 = int_to_ptr.vmem [resolvable:$true] %s2890
          %s2892 = sshll.u32 %s2889, 4
          %s2893 = int_to_ptr.hbm [resolvable:$true] %s2892
          %2898 = dma.vmem_to_hbm [thread:$0]  %s2891, 65536, %s2893, %s2849, 1024, 1024, 64
        $region52: #{tpu_custom_call.1} parent=31 // pred_fallthru
          _
        // Predicated region
        $region53: #{tpu_custom_call.1} parent=31 // pred_check
          %p2899 = pneg %p181
        $region54: #{tpu_custom_call.1} parent=31 // pred_check_branch
          %2901 = sbr.rel (%p2899) target = $region56
        $region55: #{tpu_custom_call.1} parent=31 // pred_region
          %s2902 = smul.u32 4, %s33
          %2904 = vsyncadd %s2854, 0
          %s2905 = scalar_lea.hbm %s5, %s2902
          %s2907 = sshll.u32 %s2857, 4
          %s2908 = int_to_ptr.vmem [resolvable:$true] %s2907
          %s2909 = sshll.u32 %s2905, 4
          %s2910 = int_to_ptr.hbm [resolvable:$true] %s2909
          %2912 = dma.vmem_to_hbm [thread:$0]  %s2908, 64, %s2910, %s2854
        $region56: #{tpu_custom_call.1} parent=31 // pred_fallthru
          _
        // Predicated region
        $region57: #{tpu_custom_call.1} parent=31 // pred_check
          %p2913 = pneg %p207
        $region58: #{tpu_custom_call.1} parent=31 // pred_check_branch
          %2915 = sbr.rel (%p2913) target = $region60
        $region59: #{tpu_custom_call.1} parent=31 // pred_region
          %s2916 = smul.u32 4, %s33
          %2918 = vsyncadd %s2859, 0
          %s2919 = scalar_lea.hbm %s6, %s2916
          %s2921 = sshll.u32 %s2862, 4
          %s2922 = int_to_ptr.vmem [resolvable:$true] %s2921
          %s2923 = sshll.u32 %s2919, 4
          %s2924 = int_to_ptr.hbm [resolvable:$true] %s2923
          %2926 = dma.vmem_to_hbm [thread:$0]  %s2922, 64, %s2924, %s2859
        $region60: #{tpu_custom_call.1} parent=31 // pred_fallthru
          _
      $region32: #{tpu_custom_call.1} parent=5 // pred_fallthru
        _
      %p2927 = scmp.le.s32.totalorder 2, %s28
      // Predicated region
      $region61: #{tpu_custom_call.1} parent=5 // pred_check
        %p2928 = pneg %p2927
      $region62: #{tpu_custom_call.1} parent=5 // pred_check_branch
        %2930 = sbr.rel (%p2928) target = $region64
      $region63: #{tpu_custom_call.1} parent=5 // pred_region
        %s2931 = ssub.s32 %s28, 2
        // Predicated region
        $region65: #{tpu_custom_call.1} parent=63 // pred_check
          %p2932 = pneg %p135
        $region66: #{tpu_custom_call.1} parent=63 // pred_check_branch
          %2934 = sbr.rel (%p2932) target = $region68
        $region67: #{tpu_custom_call.1} parent=63 // pred_region
          %s2935 = sand.u32 %s120, 1
          %s2936 = scalar_lea.sflag [#allocation4], %s2935
          %s2937 = sand.u32 %s120, 1
          %s2938 = smul.addr %s2937, 4096
          %s2939 = scalar_lea.vmem [#allocation8], %s2938
          %2941 = dma.done %s2936, 65536
        $region68: #{tpu_custom_call.1} parent=63 // pred_fallthru
          _
        // Predicated region
        $region69: #{tpu_custom_call.1} parent=63 // pred_check
          %p2942 = pneg %p161
        $region70: #{tpu_custom_call.1} parent=63 // pred_check_branch
          %2944 = sbr.rel (%p2942) target = $region72
        $region71: #{tpu_custom_call.1} parent=63 // pred_region
          %s2945 = sand.u32 %s34, 1
          %s2946 = scalar_lea.sflag [#allocation10], %s2945
          %s2947 = sand.u32 %s146, 1
          %s2948 = smul.addr %s2947, 4096
          %s2949 = scalar_lea.vmem [#allocation9], %s2948
          %2951 = dma.done %s2946, 65536
        $region72: #{tpu_custom_call.1} parent=63 // pred_fallthru
          _
        // Predicated region
        $region73: #{tpu_custom_call.1} parent=63 // pred_check
          %p2952 = pneg %p187
        $region74: #{tpu_custom_call.1} parent=63 // pred_check_branch
          %2954 = sbr.rel (%p2952) target = $region76
        $region75: #{tpu_custom_call.1} parent=63 // pred_region
          %s2955 = sand.u32 %s34, 1
          %s2956 = scalar_lea.sflag [#allocation10], %s2955
          %s2957 = sand.u32 %s172, 1
          %s2958 = smul.addr %s2957, 4
          %s2959 = scalar_lea.vmem [#allocation11], %s2958
          %2961 = dma.done %s2956, 64
        $region76: #{tpu_custom_call.1} parent=63 // pred_fallthru
          _
        // Predicated region
        $region77: #{tpu_custom_call.1} parent=63 // pred_check
          %p2962 = pneg %p213
        $region78: #{tpu_custom_call.1} parent=63 // pred_check_branch
          %2964 = sbr.rel (%p2962) target = $region80
        $region79: #{tpu_custom_call.1} parent=63 // pred_region
          %s2965 = sand.u32 %s198, 1
          %s2966 = scalar_lea.sflag [#allocation13], %s2965
          %s2967 = sand.u32 %s198, 1
          %s2968 = smul.addr %s2967, 4
          %s2969 = scalar_lea.vmem [#allocation12], %s2968
          %2971 = dma.done %s2966, 64
        $region80: #{tpu_custom_call.1} parent=63 // pred_fallthru
          _
      $region64: #{tpu_custom_call.1} parent=5 // pred_fallthru
        _
    $region6: #{tpu_custom_call.1} parent=1 // loop_footer
      %s32 = sadd.s32 1, %s28
    $region7: #{tpu_custom_call.1} parent=1 // loop_footer_branch
      %27 = sbr.rel target = $region3
    $region8: #{tpu_custom_call.1} parent=1 // loop_exit
      _
    %2972 = vsyncpa [#allocation3], 1
    %s2973 = scalar_lea.sflag [#allocation3], 1
    %2974 = vsyncpa %s2973, 1
    %2975 = vsyncpa [#allocation6], 1
    %s2976 = scalar_lea.sflag [#allocation6], 1
    %2977 = vsyncpa %s2976, 1
    %2978 = vsyncpa [#allocation4], 1
    %s2979 = scalar_lea.sflag [#allocation4], 1
    %2980 = vsyncpa %s2979, 1
    %2981 = vsyncpa [#allocation10], 1
    %s2982 = scalar_lea.sflag [#allocation10], 1
    %2983 = vsyncpa %s2982, 1
    %2984 = vsyncpa [#allocation13], 1
    %s2985 = scalar_lea.sflag [#allocation13], 1
    %2986 = vsyncpa %s2985, 1

</llo_original>
